<compile_context>
chip_gen: v7x
topology: tpu7x:2x2x1
jax: 0.10.0
libtpu: 0.0.40
codegen_flags: <defaults>
</compile_context>

<pallas_src>
import jax
import jax.numpy as jnp
from jax.experimental import pallas as pl
from jax.experimental.pallas import tpu as pltpu

# ----------------------------- configuration --------------------------------
B = 2
TEXT_OUT = 32           # stand-in for BERT [CLS] feature size (args.text_out)
AUDIO_IN, VIDEO_IN = 16, 24
A_HID = V_HID = 32      # must be equal for the block-diagonal combined LSTM
AUDIO_OUT = VIDEO_OUT = 16
SEQ = 8
POST_FUSION_DIM = 32
POST_TEXT_DIM = POST_AUDIO_DIM = POST_VIDEO_DIM = 16
FUSION_IN = TEXT_OUT + AUDIO_OUT + VIDEO_OUT + 64   # 128

H = A_HID                       # 32
H2 = 2 * H                      # 64  hidden lanes: [audio | video]
GATE_W = 4 * H2                 # 256 gate lanes:   [i|f|g|o] x [audio|video]
DIN_CAT = AUDIO_IN + VIDEO_IN   # 40  input lanes:  [audio | video]
BP = 8                          # batch rows padded to one sublane tile

# slab geometry
D_COLS = 384                    # data slab lanes
WL_COLS = 512                   # lstm + small-head f32 weight slab lanes
WB_COLS = 1152                  # big bf16 slab: enc | dec2 | mu | var
WM_COLS = 768                   # mid bf16 slab: dec1 | proj
OUT_COLS = 640                  # single dense output slab


# ------------------------- bias slab layout (static) ------------------------
BIAS_SPEC = [
    ("lstm_b", 256), ("lstm_b_lin", 32), ("proj_b", 384),
    ("enc_b", 384), ("enc_g", 384), ("enc_beta", 384),
    ("mu_b", 192), ("var_b", 192),
    ("dec1_b", 384), ("dec1_g", 384), ("dec1_beta", 384),
    ("dec2_b", 384), ("dec2_g", 384), ("dec2_beta", 384),
    ("fus_b1", 32), ("fus_b2", 32), ("fus_b3", 1),
    ("cls_b1", 48), ("cls_b2", 3),
]


def _bias_layout():
    off, cur = {}, 0
    for name, w in BIAS_SPEC:
        off[name] = (cur, w)
        cur += ((w + 127) // 128) * 128      # keep every entry 128-lane aligned
    return off, cur


BIAS_OFF, BIAS_COLS = _bias_layout()


# ----------------------------- parameter init -------------------------------
def _dense(key, din, dout, scale=0.05):
    return scale * jax.random.normal(key, (din, dout), jnp.float32)


def _z(d):
    return jnp.zeros((1, d), jnp.float32)


def _ones(d):
    return jnp.ones((1, d), jnp.float32)


def init_lstm_params(key, in_size, hidden, out_size):
    ks = jax.random.split(key, 9)
    p = {}
    for idx, n in enumerate(("i", "f", "g", "o")):
        p[f"w_ih_{n}"] = _dense(ks[idx], in_size, hidden)
        p[f"w_hh_{n}"] = _dense(ks[4 + idx], hidden, hidden)
        p[f"b_{n}"] = _z(hidden)
    p["w_lin"] = _dense(ks[8], hidden, out_size)
    p["b_lin"] = _z(out_size)
    return p


def init_uncertain_block(key, prefix):
    ks = jax.random.split(key, 5)
    p = {}
    p[f"{prefix}_enc_w"] = _dense(ks[0], 128, 128)
    p[f"{prefix}_enc_b"] = _z(128)
    p[f"{prefix}_enc_g"] = _ones(128)
    p[f"{prefix}_enc_beta"] = _z(128)
    p[f"{prefix}_mu_w"] = _dense(ks[1], 128, 64)
    p[f"{prefix}_mu_b"] = _z(64)
    p[f"{prefix}_var_w"] = _dense(ks[2], 128, 64)
    p[f"{prefix}_var_b"] = _z(64)
    p[f"{prefix}_dec_w1"] = _dense(ks[3], 64, 128)
    p[f"{prefix}_dec_b1"] = _z(128)
    p[f"{prefix}_dec_g1"] = _ones(128)
    p[f"{prefix}_dec_beta1"] = _z(128)
    p[f"{prefix}_dec_w2"] = _dense(ks[4], 128, 128)
    p[f"{prefix}_dec_b2"] = _z(128)
    p[f"{prefix}_dec_g2"] = _ones(128)
    p[f"{prefix}_dec_beta2"] = _z(128)
    return p


def init_fused_params(key):
    ks = jax.random.split(key, 16)
    p = {}
    p["proj_t_w"] = _dense(ks[0], TEXT_OUT, 128); p["proj_t_b"] = _z(128)
    p["proj_v_w"] = _dense(ks[1], VIDEO_OUT, 128); p["proj_v_b"] = _z(128)
    p["proj_a_w"] = _dense(ks[2], AUDIO_OUT, 128); p["proj_a_b"] = _z(128)
    p.update(init_uncertain_block(ks[3], "t"))
    p.update(init_uncertain_block(ks[4], "v"))
    p.update(init_uncertain_block(ks[5], "a"))
    p["fus_w1"] = _dense(ks[6], FUSION_IN, POST_FUSION_DIM); p["fus_b1"] = _z(POST_FUSION_DIM)
    p["fus_w2"] = _dense(ks[7], POST_FUSION_DIM, POST_FUSION_DIM); p["fus_b2"] = _z(POST_FUSION_DIM)
    p["fus_w3"] = _dense(ks[8], POST_FUSION_DIM, 1); p["fus_b3"] = _z(1)
    p["tcls_w1"] = _dense(ks[9], TEXT_OUT, POST_TEXT_DIM); p["tcls_b1"] = _z(POST_TEXT_DIM)
    p["tcls_w2"] = _dense(ks[10], POST_TEXT_DIM, 1); p["tcls_b2"] = _z(1)
    p["acls_w1"] = _dense(ks[11], AUDIO_OUT, POST_AUDIO_DIM); p["acls_b1"] = _z(POST_AUDIO_DIM)
    p["acls_w2"] = _dense(ks[12], POST_AUDIO_DIM, 1); p["acls_b2"] = _z(1)
    p["vcls_w1"] = _dense(ks[13], VIDEO_OUT, POST_VIDEO_DIM); p["vcls_b1"] = _z(POST_VIDEO_DIM)
    p["vcls_w2"] = _dense(ks[14], POST_VIDEO_DIM, 1); p["vcls_b2"] = _z(1)
    return p


# ------------------------------ slab packing ---------------------------------
def pack_params(pa, pv, p):
    """One-time packing of every module weight into 4 lane-dense slabs.

    wlstm (128, 512) f32:
      cols   0:256 rows  0:64  combined W_ih (rows 40:64 zero-padded)
      cols   0:256 rows 64:128 combined W_hh
      cols 256:288 rows  0:64  LSTM output Linear   (block-diag audio|video)
      cols 288:320 rows  0:128 fusion W1, 320:352 W2, 352:353 W3
      cols 384:432 rows  0:64  block-diag t/a/v classifier W1
      cols 432:435 rows  0:48  block-diag t/a/v classifier W2
    wbig (384, 1152) bf16: block-diag(t,v,a) enc(0:384) | dec2(384:768)
                           | mu(768:960) | var(960:1152)
    wmid (192, 768) bf16:  block-diag dec1 (cols 0:384, rows 0:192)
                           | projections (rows 0:64, cols 384:768 = [f_t|f_v|f_a])
    bias (1, BIAS_COLS) f32: every bias/gain/beta at a 128-aligned lane offset.
    """
    f32 = jnp.float32

    # ---------------- wlstm + small heads (f32) ----------------
    wl = jnp.zeros((128, WL_COLS), f32)
    for gi, g in enumerate(("i", "f", "g", "o")):
        c0 = gi * H2
        wl = wl.at[0:AUDIO_IN, c0:c0 + H].set(pa[f"w_ih_{g}"])
        wl = wl.at[AUDIO_IN:DIN_CAT, c0 + H:c0 + H2].set(pv[f"w_ih_{g}"])
        wl = wl.at[64:64 + H, c0:c0 + H].set(pa[f"w_hh_{g}"])
        wl = wl.at[64 + H:128, c0 + H:c0 + H2].set(pv[f"w_hh_{g}"])
    wl = wl.at[0:H, 256:256 + AUDIO_OUT].set(pa["w_lin"])
    wl = wl.at[H:H2, 256 + AUDIO_OUT:288].set(pv["w_lin"])
    wl = wl.at[0:128, 288:320].set(p["fus_w1"])
    wl = wl.at[0:32, 320:352].set(p["fus_w2"])
    wl = wl.at[0:32, 352:353].set(p["fus_w3"])
    wl = wl.at[0:32, 384:400].set(p["tcls_w1"])
    wl = wl.at[32:48, 400:416].set(p["acls_w1"])
    wl = wl.at[48:64, 416:432].set(p["vcls_w1"])
    wl = wl.at[0:16, 432:433].set(p["tcls_w2"])
    wl = wl.at[16:32, 433:434].set(p["acls_w2"])
    wl = wl.at[32:48, 434:435].set(p["vcls_w2"])

    # ---------------- block-diagonal uncertain blocks (bf16) ----------------
    wb = jnp.zeros((384, WB_COLS), f32)
    wm = jnp.zeros((192, WM_COLS), f32)
    for k, m in enumerate(("t", "v", "a")):
        r0 = 128 * k
        wb = wb.at[r0:r0 + 128, r0:r0 + 128].set(p[f"{m}_enc_w"])
        wb = wb.at[r0:r0 + 128, 384 + r0:384 + r0 + 128].set(p[f"{m}_dec_w2"])
        wb = wb.at[r0:r0 + 128, 768 + 64 * k:768 + 64 * k + 64].set(p[f"{m}_mu_w"])
        wb = wb.at[r0:r0 + 128, 960 + 64 * k:960 + 64 * k + 64].set(p[f"{m}_var_w"])
        wm = wm.at[64 * k:64 * k + 64, r0:r0 + 128].set(p[f"{m}_dec_w1"])
    # projections: base rows [text 0:32 | audio 32:48 | video 48:64]
    #              output blocks [f_t 0:128 | f_v 128:256 | f_a 256:384]
    wm = wm.at[0:TEXT_OUT, 384:512].set(p["proj_t_w"])
    wm = wm.at[48:64, 512:640].set(p["proj_v_w"])
    wm = wm.at[32:48, 640:768].set(p["proj_a_w"])

    # ---------------- bias / gain / beta slab (f32) ----------------
    bias = jnp.zeros((1, BIAS_COLS), f32)

    def put(b, name, val):
        o, w = BIAS_OFF[name]
        assert val.shape[-1] == w, (name, val.shape, w)
        return b.at[:, o:o + w].set(val)

    def cat3(suffix):
        return jnp.concatenate([p[f"t_{suffix}"], p[f"v_{suffix}"], p[f"a_{suffix}"]], -1)

    lstm_b = jnp.concatenate([pa["b_i"], pv["b_i"], pa["b_f"], pv["b_f"],
                              pa["b_g"], pv["b_g"], pa["b_o"], pv["b_o"]], -1)
    bias = put(bias, "lstm_b", lstm_b)
    bias = put(bias, "lstm_b_lin", jnp.concatenate([pa["b_lin"], pv["b_lin"]], -1))
    bias = put(bias, "proj_b",
               jnp.concatenate([p["proj_t_b"], p["proj_v_b"], p["proj_a_b"]], -1))
    bias = put(bias, "enc_b", cat3("enc_b"))
    bias = put(bias, "enc_g", cat3("enc_g"))
    bias = put(bias, "enc_beta", cat3("enc_beta"))
    bias = put(bias, "mu_b", cat3("mu_b"))
    bias = put(bias, "var_b", cat3("var_b"))
    bias = put(bias, "dec1_b", cat3("dec_b1"))
    bias = put(bias, "dec1_g", cat3("dec_g1"))
    bias = put(bias, "dec1_beta", cat3("dec_beta1"))
    bias = put(bias, "dec2_b", cat3("dec_b2"))
    bias = put(bias, "dec2_g", cat3("dec_g2"))
    bias = put(bias, "dec2_beta", cat3("dec_beta2"))
    bias = put(bias, "fus_b1", p["fus_b1"])
    bias = put(bias, "fus_b2", p["fus_b2"])
    bias = put(bias, "fus_b3", p["fus_b3"])
    bias = put(bias, "cls_b1",
               jnp.concatenate([p["tcls_b1"], p["acls_b1"], p["vcls_b1"]], -1))
    bias = put(bias, "cls_b2",
               jnp.concatenate([p["tcls_b2"], p["acls_b2"], p["vcls_b2"]], -1))

    return {"wlstm": wl,
            "wbig": wb.astype(jnp.bfloat16),
            "wmid": wm.astype(jnp.bfloat16),
            "bias": bias}


# --------------------------------- kernel ------------------------------------
def tmson_kernel(data_ref, wl_ref, wb_ref, wm_ref, bias_ref, out_ref):
    f32 = jnp.float32

    def mm(x, w):
        # MXU matmul; cast the activation operand to the weight dtype (bf16 for
        # the big slabs) and keep f32 accumulation / f32 activations.
        return jnp.dot(x.astype(w.dtype), w, preferred_element_type=f32)

    def bias(name):
        o, w = BIAS_OFF[name]
        return bias_ref[:, o:o + w]                    # (1, w), broadcasts over rows

    def ln3(x, gname, bname):
        # Per-modality LayerNorm(128) applied to the lane-concatenated (BP,384).
        parts = []
        for k in range(3):
            xs = x[:, k * 128:(k + 1) * 128]
            mu = jnp.mean(xs, axis=-1, keepdims=True)
            var = jnp.mean((xs - mu) ** 2, axis=-1, keepdims=True)
            parts.append((xs - mu) * jax.lax.rsqrt(var + 1e-5))
        return jnp.concatenate(parts, axis=-1) * bias(gname) + bias(bname)

    data = data_ref[...]                               # (64, 384) f32

    # ---------- combined audio|video LSTM (block-diagonal recurrence) --------
    x_pad = data[:, 0:64]                              # (64, 64) cols 40:64 zero
    w_ih = wl_ref[0:64, 0:256]                         # rows 40:64 zero
    w_hh = wl_ref[64:128, 0:256]
    # input projection hoisted out of the serial recurrence
    x_proj = mm(x_pad, w_ih) + bias("lstm_b")          # (64, 256)

    # in-kernel validity mask from the packed lengths (no host-side mask tensor)
    lens_a = data[0:BP, 96:97]
    lens_v = data[0:BP, 97:98]
    lane = jax.lax.broadcasted_iota(jnp.int32, (BP, H2), 1)
    len_lanes = jnp.where(lane < H, lens_a, lens_v)    # (8, 64)

    h = jnp.zeros((BP, H2), f32)
    c = jnp.zeros((BP, H2), f32)
    for t in range(SEQ):                               # static -> fully unrolled
        lo = t * BP
        gates = x_proj[lo:lo + BP, :] + mm(h, w_hh)    # (8, 256)
        ig = jax.nn.sigmoid(gates[:, 0:H2])
        fg = jax.nn.sigmoid(gates[:, H2:2 * H2])
        gg = jnp.tanh(gates[:, 2 * H2:3 * H2])
        og = jax.nn.sigmoid(gates[:, 3 * H2:4 * H2])
        c_new = fg * c + ig * gg
        h_new = og * jnp.tanh(c_new)
        upd = len_lanes > float(t)                     # 2 selects instead of 6 VALU ops
        h = jnp.where(upd, h_new, h)
        c = jnp.where(upd, c_new, c)

    # dropout (inference) is identity; final Linear(hidden -> out) both nets
    feat = mm(h, wl_ref[0:64, 256:288]) + bias("lstm_b_lin")   # (8, 32) [audio|video]
    text = data[0:BP, 64:96]                                   # (8, 32)
    base = jnp.concatenate([text, feat], axis=-1)              # (8, 64) [text|audio|video]

    # -------------- fused projections + 3x Uncertain_Block (block-diag) -------
    f_cat = jnp.tanh(mm(base, wm_ref[0:64, 384:768]) + bias("proj_b"))   # (8,384)=[f_t|f_v|f_a]
    h_enc = jnp.tanh(ln3(mm(f_cat, wb_ref[:, 0:384]) + bias("enc_b"),
                         "enc_g", "enc_beta"))                           # (8,384)
    mu_cat = jax.nn.sigmoid(mm(h_enc, wb_ref[:, 768:960]) + bias("mu_b"))    # (8,192)
    var_cat = jax.nn.sigmoid(mm(h_enc, wb_ref[:, 960:1152]) + bias("var_b"))

    eps_tva = data[0:BP, 128:320]                                        # (8,192)
    sample_cat = jnp.exp(var_cat * 0.5) * eps_tva + mu_cat               # reparametrize

    d1 = jnp.tanh(ln3(mm(sample_cat, wm_ref[:, 0:384]) + bias("dec1_b"),
                      "dec1_g", "dec1_beta"))                            # (8,384)
    rec_cat = jnp.tanh(ln3(mm(d1, wb_ref[:, 384:768]) + bias("dec2_b"),
                           "dec2_g", "dec2_beta"))                       # (8,384)

    # ----- losses, reduced over valid batch rows only (batch padded to 8) ----
    row = jax.lax.broadcasted_iota(jnp.int32, (BP, 1), 0)
    valid = (row < B).astype(f32)
    kl_terms = 1.0 + var_cat - mu_cat * mu_cat - jnp.exp(var_cat)
    kl = (-0.5 / B) * jnp.sum(valid * kl_terms)
    diff = f_cat - rec_cat
    rec_loss = jnp.sum(valid * diff * diff) / (B * 128.0)

    # ------------------------- uncertainty-aware fusion ----------------------
    t_mu, v_mu, a_mu = mu_cat[:, 0:64], mu_cat[:, 64:128], mu_cat[:, 128:192]
    t_var, v_var, a_var = var_cat[:, 0:64], var_cat[:, 64:128], var_cat[:, 128:192]
    inv1 = pl.reciprocal(jnp.clip(t_var + v_var, 1e-6, 1.0), approx=True)
    nmu = (t_mu * v_var + v_mu * t_var) * inv1
    nvar = t_var * v_var * inv1
    inv2 = pl.reciprocal(jnp.clip(nvar + a_var, 1e-6, 1.0), approx=True)
    new_mu = (nmu * a_var + a_mu * nvar) * inv2
    new_var = nvar * a_var * inv2
    eps_f = data[0:BP, 320:384]
    new_sample = jnp.exp(new_var * 0.5) * eps_f + new_mu                 # (8,64)

    # ------------------ fusion classifier + t/a/v heads ----------------------
    fusion_h = jnp.concatenate([base, new_sample], axis=-1)              # (8,128)
    h1 = jax.nn.relu(mm(fusion_h, wl_ref[0:128, 288:320]) + bias("fus_b1"))
    h2 = jax.nn.relu(mm(h1, wl_ref[0:32, 320:352]) + bias("fus_b2"))
    m_out = mm(h2, wl_ref[0:32, 352:353]) + bias("fus_b3")               # (8,1)

    hcls = jax.nn.relu(mm(base, wl_ref[0:64, 384:432]) + bias("cls_b1")) # (8,48)
    tav = mm(hcls, wl_ref[0:48, 432:435]) + bias("cls_b2")               # (8,3) [t|a|v]

    # ----------------- single dense (8, 640) output store --------------------
    ones = jnp.ones((BP, 1), f32)
    small = jnp.concatenate(
        [m_out, tav, kl * ones, rec_loss * ones, jnp.zeros((BP, 122), f32)], axis=-1)
    out_ref[...] = jnp.concatenate(
        [new_mu, new_var, mu_cat, var_cat, small], axis=-1)              # (8, 640)


# --------------------------------- wrapper ------------------------------------
def tmson_forward(text, audio, audio_lengths, video, video_lengths, eps, packed):
    """eps: (B, 256) = [eps_text | eps_visual | eps_acoustic | eps_fusion]."""
    Bb, T, _ = audio.shape

    # ----- single (64, 384) data slab: x_seq + lengths + text + eps ----------
    x_tb = jnp.transpose(jnp.concatenate([audio, video], axis=-1), (1, 0, 2))  # (T,B,40)
    x_seq = jnp.zeros((T, BP, DIN_CAT), jnp.float32).at[:, :Bb].set(x_tb)
    x_seq = x_seq.reshape(T * BP, DIN_CAT)

    data = jnp.zeros((T * BP, D_COLS), jnp.float32)
    data = data.at[:, 0:DIN_CAT].set(x_seq)
    data = data.at[0:Bb, 64:64 + TEXT_OUT].set(text.astype(jnp.float32))
    data = data.at[0:Bb, 96].set(audio_lengths.astype(jnp.float32))
    data = data.at[0:Bb, 97].set(video_lengths.astype(jnp.float32))
    data = data.at[0:Bb, 128:384].set(eps.astype(jnp.float32))

    out = pl.pallas_call(
        tmson_kernel,
        out_shape=jax.ShapeDtypeStruct((BP, OUT_COLS), jnp.float32),
        in_specs=[pl.BlockSpec(memory_space=pltpu.MemorySpace.VMEM)] * 5,
        out_specs=pl.BlockSpec(memory_space=pltpu.MemorySpace.VMEM),
        cost_estimate=pl.CostEstimate(flops=13_000_000, transcendentals=30_000,
                                      bytes_accessed=2_000_000),
    )(data, packed["wlstm"], packed["wbig"], packed["wmid"], packed["bias"])

    s = out[0:Bb]
    return {
        "M": s[:, 512:513], "T": s[:, 513:514], "A": s[:, 514:515], "V": s[:, 515:516],
        "kl_loss": s[0:1, 516:517], "rec_loss": s[0:1, 517:518],
        "mu": s[:, 0:64], "var": s[:, 64:128],
        "t_mu": s[:, 128:192], "v_mu": s[:, 192:256], "a_mu": s[:, 256:320],
        "t_var": s[:, 320:384], "v_var": s[:, 384:448], "a_var": s[:, 448:512],
    }


# ----------------------------------- main ------------------------------------
if __name__ == "__main__":
    key = jax.random.PRNGKey(0)
    k = jax.random.split(key, 8)

    # TODO(synk): BertTextEncoder (pretrained transformer) is not reproduced; the
    # kernel consumes the encoded [CLS] feature directly as `text` (B, TEXT_OUT).
    text = jax.random.normal(k[0], (B, TEXT_OUT), jnp.float32)
    audio = jax.random.normal(k[1], (B, SEQ, AUDIO_IN), jnp.float32)
    video = jax.random.normal(k[2], (B, SEQ, VIDEO_IN), jnp.float32)
    audio_lengths = jnp.array([8, 5], jnp.int32)
    video_lengths = jnp.array([6, 8], jnp.int32)
    # Gaussian noise for the four reparametrize() calls, packed lane-dense.
    eps = jax.random.normal(k[3], (B, 256), jnp.float32)

    audio_params = init_lstm_params(k[4], AUDIO_IN, A_HID, AUDIO_OUT)
    video_params = init_lstm_params(k[5], VIDEO_IN, V_HID, VIDEO_OUT)
    fused_params = init_fused_params(k[6])

    # One-time weight packing into lane-dense slabs (not per forward call).
    packed = pack_params(audio_params, video_params, fused_params)

    fwd = jax.jit(tmson_forward)
    res = fwd(text, audio, audio_lengths, video, video_lengths, eps, packed)

    jax.tree_util.tree_map(jax.block_until_ready, res)
    print("KERNEL_OK")
</pallas_src>

<mosaic_0001>
module attributes {stable_mosaic.version = 11 : i64} {
  func.func @tmson_kernel(%arg0: memref<64x384xf32, #tpu.memory_space<vmem>>, %arg1: memref<128x512xf32, #tpu.memory_space<vmem>>, %arg2: memref<384x1152xbf16, #tpu.memory_space<vmem>>, %arg3: memref<192x768xbf16, #tpu.memory_space<vmem>>, %arg4: memref<1x5376xf32, #tpu.memory_space<vmem>>, %arg5: memref<8x640xf32, #tpu.memory_space<vmem>>) attributes {dimension_semantics = [], scalar_prefetch = 0 : i64, scratch_operands = 0 : i64, tpu.core_type = #tpu.core_type<tc>} {
    %c0 = arith.constant 0 : index
    %c0_0 = arith.constant 0 : index
    %0 = vector.load %arg0[%c0, %c0_0] : memref<64x384xf32, #tpu.memory_space<vmem>>, vector<64x384xf32>
    %1 = vector.extract_strided_slice %0 {offsets = [0, 0], sizes = [64, 64], strides = [1, 1]} : vector<64x384xf32> to vector<64x64xf32>
    %c0_1 = arith.constant 0 : index
    %c0_2 = arith.constant 0 : index
    %2 = vector.load %arg1[%c0_1, %c0_2] : memref<128x512xf32, #tpu.memory_space<vmem>>, vector<64x256xf32>
    %c64 = arith.constant 64 : index
    %c0_3 = arith.constant 0 : index
    %3 = vector.load %arg1[%c64, %c0_3] : memref<128x512xf32, #tpu.memory_space<vmem>>, vector<64x256xf32>
    %cst = arith.constant dense<0.000000e+00> : vector<64x256xf32>
    %4 = tpu.matmul %1, %2, %cst {dimension_numbers = #tpu.dot_dimension_numbers<[1], [0], [0], [1], [0, 0, 1, 1], [], []>} : vector<64x64xf32>, vector<64x256xf32>, vector<64x256xf32> -> vector<64x256xf32>
    %c0_4 = arith.constant 0 : index
    %c0_5 = arith.constant 0 : index
    %5 = vector.load %arg4[%c0_4, %c0_5] : memref<1x5376xf32, #tpu.memory_space<vmem>>, vector<1x256xf32>
    %6 = vector.broadcast %5 : vector<1x256xf32> to vector<64x256xf32>
    %7 = arith.addf %4, %6 : vector<64x256xf32>
    %8 = vector.extract_strided_slice %0 {offsets = [0, 96], sizes = [8, 1], strides = [1, 1]} : vector<64x384xf32> to vector<8x1xf32>
    %9 = vector.extract_strided_slice %0 {offsets = [0, 97], sizes = [8, 1], strides = [1, 1]} : vector<64x384xf32> to vector<8x1xf32>
    %10 = tpu.iota {dimensions = array<i32: 1>} : vector<8x64xi32>
    %c32_i32 = arith.constant 32 : i32
    %11 = vector.broadcast %c32_i32 : i32 to vector<8x64xi32>
    %12 = arith.cmpi slt, %10, %11 : vector<8x64xi32>
    %13 = vector.shape_cast %8 : vector<8x1xf32> to vector<8x1xf32>
    %14 = vector.broadcast %13 : vector<8x1xf32> to vector<8x64xf32>
    %15 = vector.shape_cast %9 : vector<8x1xf32> to vector<8x1xf32>
    %16 = vector.broadcast %15 : vector<8x1xf32> to vector<8x64xf32>
    %17 = arith.select %12, %14, %16 : vector<8x64xi1>, vector<8x64xf32>
    %cst_6 = arith.constant 0.000000e+00 : f32
    %18 = vector.broadcast %cst_6 : f32 to vector<8x64xf32>
    %cst_7 = arith.constant 0.000000e+00 : f32
    %19 = vector.broadcast %cst_7 : f32 to vector<8x64xf32>
    %20 = vector.extract_strided_slice %7 {offsets = [0, 0], sizes = [8, 256], strides = [1, 1]} : vector<64x256xf32> to vector<8x256xf32>
    %cst_8 = arith.constant dense<0.000000e+00> : vector<8x256xf32>
    %21 = tpu.matmul %18, %3, %cst_8 {dimension_numbers = #tpu.dot_dimension_numbers<[1], [0], [0], [1], [0, 0, 1, 1], [], []>} : vector<8x64xf32>, vector<64x256xf32>, vector<8x256xf32> -> vector<8x256xf32>
    %22 = arith.addf %20, %21 : vector<8x256xf32>
    %23 = vector.extract_strided_slice %22 {offsets = [0, 0], sizes = [8, 64], strides = [1, 1]} : vector<8x256xf32> to vector<8x64xf32>
    %24 = arith.negf %23 : vector<8x64xf32>
    %25 = math.exp %24 : vector<8x64xf32>
    %cst_9 = arith.constant 1.000000e+00 : f32
    %26 = vector.broadcast %cst_9 : f32 to vector<8x64xf32>
    %27 = arith.addf %26, %25 : vector<8x64xf32>
    %28 = arith.divf %26, %27 : vector<8x64xf32>
    %29 = vector.extract_strided_slice %22 {offsets = [0, 64], sizes = [8, 64], strides = [1, 1]} : vector<8x256xf32> to vector<8x64xf32>
    %30 = arith.negf %29 : vector<8x64xf32>
    %31 = math.exp %30 : vector<8x64xf32>
    %cst_10 = arith.constant 1.000000e+00 : f32
    %32 = vector.broadcast %cst_10 : f32 to vector<8x64xf32>
    %33 = arith.addf %32, %31 : vector<8x64xf32>
    %34 = arith.divf %32, %33 : vector<8x64xf32>
    %35 = vector.extract_strided_slice %22 {offsets = [0, 128], sizes = [8, 64], strides = [1, 1]} : vector<8x256xf32> to vector<8x64xf32>
    %36 = math.tanh %35 : vector<8x64xf32>
    %37 = vector.extract_strided_slice %22 {offsets = [0, 192], sizes = [8, 64], strides = [1, 1]} : vector<8x256xf32> to vector<8x64xf32>
    %38 = arith.negf %37 : vector<8x64xf32>
    %39 = math.exp %38 : vector<8x64xf32>
    %cst_11 = arith.constant 1.000000e+00 : f32
    %40 = vector.broadcast %cst_11 : f32 to vector<8x64xf32>
    %41 = arith.addf %40, %39 : vector<8x64xf32>
    %42 = arith.divf %40, %41 : vector<8x64xf32>
    %43 = arith.mulf %34, %19 : vector<8x64xf32>
    %44 = arith.mulf %28, %36 : vector<8x64xf32>
    %45 = arith.addf %43, %44 : vector<8x64xf32>
    %46 = math.tanh %45 : vector<8x64xf32>
    %47 = arith.mulf %42, %46 : vector<8x64xf32>
    %cst_12 = arith.constant 0.000000e+00 : f32
    %48 = vector.broadcast %cst_12 : f32 to vector<8x64xf32>
    %49 = arith.cmpf ogt, %17, %48 : vector<8x64xf32>
    %50 = arith.select %49, %47, %18 : vector<8x64xi1>, vector<8x64xf32>
    %51 = arith.select %49, %45, %19 : vector<8x64xi1>, vector<8x64xf32>
    %52 = vector.extract_strided_slice %7 {offsets = [8, 0], sizes = [8, 256], strides = [1, 1]} : vector<64x256xf32> to vector<8x256xf32>
    %cst_13 = arith.constant dense<0.000000e+00> : vector<8x256xf32>
    %53 = tpu.matmul %50, %3, %cst_13 {dimension_numbers = #tpu.dot_dimension_numbers<[1], [0], [0], [1], [0, 0, 1, 1], [], []>} : vector<8x64xf32>, vector<64x256xf32>, vector<8x256xf32> -> vector<8x256xf32>
    %54 = arith.addf %52, %53 : vector<8x256xf32>
    %55 = vector.extract_strided_slice %54 {offsets = [0, 0], sizes = [8, 64], strides = [1, 1]} : vector<8x256xf32> to vector<8x64xf32>
    %56 = arith.negf %55 : vector<8x64xf32>
    %57 = math.exp %56 : vector<8x64xf32>
    %cst_14 = arith.constant 1.000000e+00 : f32
    %58 = vector.broadcast %cst_14 : f32 to vector<8x64xf32>
    %59 = arith.addf %58, %57 : vector<8x64xf32>
    %60 = arith.divf %58, %59 : vector<8x64xf32>
    %61 = vector.extract_strided_slice %54 {offsets = [0, 64], sizes = [8, 64], strides = [1, 1]} : vector<8x256xf32> to vector<8x64xf32>
    %62 = arith.negf %61 : vector<8x64xf32>
    %63 = math.exp %62 : vector<8x64xf32>
    %cst_15 = arith.constant 1.000000e+00 : f32
    %64 = vector.broadcast %cst_15 : f32 to vector<8x64xf32>
    %65 = arith.addf %64, %63 : vector<8x64xf32>
    %66 = arith.divf %64, %65 : vector<8x64xf32>
    %67 = vector.extract_strided_slice %54 {offsets = [0, 128], sizes = [8, 64], strides = [1, 1]} : vector<8x256xf32> to vector<8x64xf32>
    %68 = math.tanh %67 : vector<8x64xf32>
    %69 = vector.extract_strided_slice %54 {offsets = [0, 192], sizes = [8, 64], strides = [1, 1]} : vector<8x256xf32> to vector<8x64xf32>
    %70 = arith.negf %69 : vector<8x64xf32>
    %71 = math.exp %70 : vector<8x64xf32>
    %cst_16 = arith.constant 1.000000e+00 : f32
    %72 = vector.broadcast %cst_16 : f32 to vector<8x64xf32>
    %73 = arith.addf %72, %71 : vector<8x64xf32>
    %74 = arith.divf %72, %73 : vector<8x64xf32>
    %75 = arith.mulf %66, %51 : vector<8x64xf32>
    %76 = arith.mulf %60, %68 : vector<8x64xf32>
    %77 = arith.addf %75, %76 : vector<8x64xf32>
    %78 = math.tanh %77 : vector<8x64xf32>
    %79 = arith.mulf %74, %78 : vector<8x64xf32>
    %cst_17 = arith.constant 1.000000e+00 : f32
    %80 = vector.broadcast %cst_17 : f32 to vector<8x64xf32>
    %81 = arith.cmpf ogt, %17, %80 : vector<8x64xf32>
    %82 = arith.select %81, %79, %50 : vector<8x64xi1>, vector<8x64xf32>
    %83 = arith.select %81, %77, %51 : vector<8x64xi1>, vector<8x64xf32>
    %84 = vector.extract_strided_slice %7 {offsets = [16, 0], sizes = [8, 256], strides = [1, 1]} : vector<64x256xf32> to vector<8x256xf32>
    %cst_18 = arith.constant dense<0.000000e+00> : vector<8x256xf32>
    %85 = tpu.matmul %82, %3, %cst_18 {dimension_numbers = #tpu.dot_dimension_numbers<[1], [0], [0], [1], [0, 0, 1, 1], [], []>} : vector<8x64xf32>, vector<64x256xf32>, vector<8x256xf32> -> vector<8x256xf32>
    %86 = arith.addf %84, %85 : vector<8x256xf32>
    %87 = vector.extract_strided_slice %86 {offsets = [0, 0], sizes = [8, 64], strides = [1, 1]} : vector<8x256xf32> to vector<8x64xf32>
    %88 = arith.negf %87 : vector<8x64xf32>
    %89 = math.exp %88 : vector<8x64xf32>
    %cst_19 = arith.constant 1.000000e+00 : f32
    %90 = vector.broadcast %cst_19 : f32 to vector<8x64xf32>
    %91 = arith.addf %90, %89 : vector<8x64xf32>
    %92 = arith.divf %90, %91 : vector<8x64xf32>
    %93 = vector.extract_strided_slice %86 {offsets = [0, 64], sizes = [8, 64], strides = [1, 1]} : vector<8x256xf32> to vector<8x64xf32>
    %94 = arith.negf %93 : vector<8x64xf32>
    %95 = math.exp %94 : vector<8x64xf32>
    %cst_20 = arith.constant 1.000000e+00 : f32
    %96 = vector.broadcast %cst_20 : f32 to vector<8x64xf32>
    %97 = arith.addf %96, %95 : vector<8x64xf32>
    %98 = arith.divf %96, %97 : vector<8x64xf32>
    %99 = vector.extract_strided_slice %86 {offsets = [0, 128], sizes = [8, 64], strides = [1, 1]} : vector<8x256xf32> to vector<8x64xf32>
    %100 = math.tanh %99 : vector<8x64xf32>
    %101 = vector.extract_strided_slice %86 {offsets = [0, 192], sizes = [8, 64], strides = [1, 1]} : vector<8x256xf32> to vector<8x64xf32>
    %102 = arith.negf %101 : vector<8x64xf32>
    %103 = math.exp %102 : vector<8x64xf32>
    %cst_21 = arith.constant 1.000000e+00 : f32
    %104 = vector.broadcast %cst_21 : f32 to vector<8x64xf32>
    %105 = arith.addf %104, %103 : vector<8x64xf32>
    %106 = arith.divf %104, %105 : vector<8x64xf32>
    %107 = arith.mulf %98, %83 : vector<8x64xf32>
    %108 = arith.mulf %92, %100 : vector<8x64xf32>
    %109 = arith.addf %107, %108 : vector<8x64xf32>
    %110 = math.tanh %109 : vector<8x64xf32>
    %111 = arith.mulf %106, %110 : vector<8x64xf32>
    %cst_22 = arith.constant 2.000000e+00 : f32
    %112 = vector.broadcast %cst_22 : f32 to vector<8x64xf32>
    %113 = arith.cmpf ogt, %17, %112 : vector<8x64xf32>
    %114 = arith.select %113, %111, %82 : vector<8x64xi1>, vector<8x64xf32>
    %115 = arith.select %113, %109, %83 : vector<8x64xi1>, vector<8x64xf32>
    %116 = vector.extract_strided_slice %7 {offsets = [24, 0], sizes = [8, 256], strides = [1, 1]} : vector<64x256xf32> to vector<8x256xf32>
    %cst_23 = arith.constant dense<0.000000e+00> : vector<8x256xf32>
    %117 = tpu.matmul %114, %3, %cst_23 {dimension_numbers = #tpu.dot_dimension_numbers<[1], [0], [0], [1], [0, 0, 1, 1], [], []>} : vector<8x64xf32>, vector<64x256xf32>, vector<8x256xf32> -> vector<8x256xf32>
    %118 = arith.addf %116, %117 : vector<8x256xf32>
    %119 = vector.extract_strided_slice %118 {offsets = [0, 0], sizes = [8, 64], strides = [1, 1]} : vector<8x256xf32> to vector<8x64xf32>
    %120 = arith.negf %119 : vector<8x64xf32>
    %121 = math.exp %120 : vector<8x64xf32>
    %cst_24 = arith.constant 1.000000e+00 : f32
    %122 = vector.broadcast %cst_24 : f32 to vector<8x64xf32>
    %123 = arith.addf %122, %121 : vector<8x64xf32>
    %124 = arith.divf %122, %123 : vector<8x64xf32>
    %125 = vector.extract_strided_slice %118 {offsets = [0, 64], sizes = [8, 64], strides = [1, 1]} : vector<8x256xf32> to vector<8x64xf32>
    %126 = arith.negf %125 : vector<8x64xf32>
    %127 = math.exp %126 : vector<8x64xf32>
    %cst_25 = arith.constant 1.000000e+00 : f32
    %128 = vector.broadcast %cst_25 : f32 to vector<8x64xf32>
    %129 = arith.addf %128, %127 : vector<8x64xf32>
    %130 = arith.divf %128, %129 : vector<8x64xf32>
    %131 = vector.extract_strided_slice %118 {offsets = [0, 128], sizes = [8, 64], strides = [1, 1]} : vector<8x256xf32> to vector<8x64xf32>
    %132 = math.tanh %131 : vector<8x64xf32>
    %133 = vector.extract_strided_slice %118 {offsets = [0, 192], sizes = [8, 64], strides = [1, 1]} : vector<8x256xf32> to vector<8x64xf32>
    %134 = arith.negf %133 : vector<8x64xf32>
    %135 = math.exp %134 : vector<8x64xf32>
    %cst_26 = arith.constant 1.000000e+00 : f32
    %136 = vector.broadcast %cst_26 : f32 to vector<8x64xf32>
    %137 = arith.addf %136, %135 : vector<8x64xf32>
    %138 = arith.divf %136, %137 : vector<8x64xf32>
    %139 = arith.mulf %130, %115 : vector<8x64xf32>
    %140 = arith.mulf %124, %132 : vector<8x64xf32>
    %141 = arith.addf %139, %140 : vector<8x64xf32>
    %142 = math.tanh %141 : vector<8x64xf32>
    %143 = arith.mulf %138, %142 : vector<8x64xf32>
    %cst_27 = arith.constant 3.000000e+00 : f32
    %144 = vector.broadcast %cst_27 : f32 to vector<8x64xf32>
    %145 = arith.cmpf ogt, %17, %144 : vector<8x64xf32>
    %146 = arith.select %145, %143, %114 : vector<8x64xi1>, vector<8x64xf32>
    %147 = arith.select %145, %141, %115 : vector<8x64xi1>, vector<8x64xf32>
    %148 = vector.extract_strided_slice %7 {offsets = [32, 0], sizes = [8, 256], strides = [1, 1]} : vector<64x256xf32> to vector<8x256xf32>
    %cst_28 = arith.constant dense<0.000000e+00> : vector<8x256xf32>
    %149 = tpu.matmul %146, %3, %cst_28 {dimension_numbers = #tpu.dot_dimension_numbers<[1], [0], [0], [1], [0, 0, 1, 1], [], []>} : vector<8x64xf32>, vector<64x256xf32>, vector<8x256xf32> -> vector<8x256xf32>
    %150 = arith.addf %148, %149 : vector<8x256xf32>
    %151 = vector.extract_strided_slice %150 {offsets = [0, 0], sizes = [8, 64], strides = [1, 1]} : vector<8x256xf32> to vector<8x64xf32>
    %152 = arith.negf %151 : vector<8x64xf32>
    %153 = math.exp %152 : vector<8x64xf32>
    %cst_29 = arith.constant 1.000000e+00 : f32
    %154 = vector.broadcast %cst_29 : f32 to vector<8x64xf32>
    %155 = arith.addf %154, %153 : vector<8x64xf32>
    %156 = arith.divf %154, %155 : vector<8x64xf32>
    %157 = vector.extract_strided_slice %150 {offsets = [0, 64], sizes = [8, 64], strides = [1, 1]} : vector<8x256xf32> to vector<8x64xf32>
    %158 = arith.negf %157 : vector<8x64xf32>
    %159 = math.exp %158 : vector<8x64xf32>
    %cst_30 = arith.constant 1.000000e+00 : f32
    %160 = vector.broadcast %cst_30 : f32 to vector<8x64xf32>
    %161 = arith.addf %160, %159 : vector<8x64xf32>
    %162 = arith.divf %160, %161 : vector<8x64xf32>
    %163 = vector.extract_strided_slice %150 {offsets = [0, 128], sizes = [8, 64], strides = [1, 1]} : vector<8x256xf32> to vector<8x64xf32>
    %164 = math.tanh %163 : vector<8x64xf32>
    %165 = vector.extract_strided_slice %150 {offsets = [0, 192], sizes = [8, 64], strides = [1, 1]} : vector<8x256xf32> to vector<8x64xf32>
    %166 = arith.negf %165 : vector<8x64xf32>
    %167 = math.exp %166 : vector<8x64xf32>
    %cst_31 = arith.constant 1.000000e+00 : f32
    %168 = vector.broadcast %cst_31 : f32 to vector<8x64xf32>
    %169 = arith.addf %168, %167 : vector<8x64xf32>
    %170 = arith.divf %168, %169 : vector<8x64xf32>
    %171 = arith.mulf %162, %147 : vector<8x64xf32>
    %172 = arith.mulf %156, %164 : vector<8x64xf32>
    %173 = arith.addf %171, %172 : vector<8x64xf32>
    %174 = math.tanh %173 : vector<8x64xf32>
    %175 = arith.mulf %170, %174 : vector<8x64xf32>
    %cst_32 = arith.constant 4.000000e+00 : f32
    %176 = vector.broadcast %cst_32 : f32 to vector<8x64xf32>
    %177 = arith.cmpf ogt, %17, %176 : vector<8x64xf32>
    %178 = arith.select %177, %175, %146 : vector<8x64xi1>, vector<8x64xf32>
    %179 = arith.select %177, %173, %147 : vector<8x64xi1>, vector<8x64xf32>
    %180 = vector.extract_strided_slice %7 {offsets = [40, 0], sizes = [8, 256], strides = [1, 1]} : vector<64x256xf32> to vector<8x256xf32>
    %cst_33 = arith.constant dense<0.000000e+00> : vector<8x256xf32>
    %181 = tpu.matmul %178, %3, %cst_33 {dimension_numbers = #tpu.dot_dimension_numbers<[1], [0], [0], [1], [0, 0, 1, 1], [], []>} : vector<8x64xf32>, vector<64x256xf32>, vector<8x256xf32> -> vector<8x256xf32>
    %182 = arith.addf %180, %181 : vector<8x256xf32>
    %183 = vector.extract_strided_slice %182 {offsets = [0, 0], sizes = [8, 64], strides = [1, 1]} : vector<8x256xf32> to vector<8x64xf32>
    %184 = arith.negf %183 : vector<8x64xf32>
    %185 = math.exp %184 : vector<8x64xf32>
    %cst_34 = arith.constant 1.000000e+00 : f32
    %186 = vector.broadcast %cst_34 : f32 to vector<8x64xf32>
    %187 = arith.addf %186, %185 : vector<8x64xf32>
    %188 = arith.divf %186, %187 : vector<8x64xf32>
    %189 = vector.extract_strided_slice %182 {offsets = [0, 64], sizes = [8, 64], strides = [1, 1]} : vector<8x256xf32> to vector<8x64xf32>
    %190 = arith.negf %189 : vector<8x64xf32>
    %191 = math.exp %190 : vector<8x64xf32>
    %cst_35 = arith.constant 1.000000e+00 : f32
    %192 = vector.broadcast %cst_35 : f32 to vector<8x64xf32>
    %193 = arith.addf %192, %191 : vector<8x64xf32>
    %194 = arith.divf %192, %193 : vector<8x64xf32>
    %195 = vector.extract_strided_slice %182 {offsets = [0, 128], sizes = [8, 64], strides = [1, 1]} : vector<8x256xf32> to vector<8x64xf32>
    %196 = math.tanh %195 : vector<8x64xf32>
    %197 = vector.extract_strided_slice %182 {offsets = [0, 192], sizes = [8, 64], strides = [1, 1]} : vector<8x256xf32> to vector<8x64xf32>
    %198 = arith.negf %197 : vector<8x64xf32>
    %199 = math.exp %198 : vector<8x64xf32>
    %cst_36 = arith.constant 1.000000e+00 : f32
    %200 = vector.broadcast %cst_36 : f32 to vector<8x64xf32>
    %201 = arith.addf %200, %199 : vector<8x64xf32>
    %202 = arith.divf %200, %201 : vector<8x64xf32>
    %203 = arith.mulf %194, %179 : vector<8x64xf32>
    %204 = arith.mulf %188, %196 : vector<8x64xf32>
    %205 = arith.addf %203, %204 : vector<8x64xf32>
    %206 = math.tanh %205 : vector<8x64xf32>
    %207 = arith.mulf %202, %206 : vector<8x64xf32>
    %cst_37 = arith.constant 5.000000e+00 : f32
    %208 = vector.broadcast %cst_37 : f32 to vector<8x64xf32>
    %209 = arith.cmpf ogt, %17, %208 : vector<8x64xf32>
    %210 = arith.select %209, %207, %178 : vector<8x64xi1>, vector<8x64xf32>
    %211 = arith.select %209, %205, %179 : vector<8x64xi1>, vector<8x64xf32>
    %212 = vector.extract_strided_slice %7 {offsets = [48, 0], sizes = [8, 256], strides = [1, 1]} : vector<64x256xf32> to vector<8x256xf32>
    %cst_38 = arith.constant dense<0.000000e+00> : vector<8x256xf32>
    %213 = tpu.matmul %210, %3, %cst_38 {dimension_numbers = #tpu.dot_dimension_numbers<[1], [0], [0], [1], [0, 0, 1, 1], [], []>} : vector<8x64xf32>, vector<64x256xf32>, vector<8x256xf32> -> vector<8x256xf32>
    %214 = arith.addf %212, %213 : vector<8x256xf32>
    %215 = vector.extract_strided_slice %214 {offsets = [0, 0], sizes = [8, 64], strides = [1, 1]} : vector<8x256xf32> to vector<8x64xf32>
    %216 = arith.negf %215 : vector<8x64xf32>
    %217 = math.exp %216 : vector<8x64xf32>
    %cst_39 = arith.constant 1.000000e+00 : f32
    %218 = vector.broadcast %cst_39 : f32 to vector<8x64xf32>
    %219 = arith.addf %218, %217 : vector<8x64xf32>
    %220 = arith.divf %218, %219 : vector<8x64xf32>
    %221 = vector.extract_strided_slice %214 {offsets = [0, 64], sizes = [8, 64], strides = [1, 1]} : vector<8x256xf32> to vector<8x64xf32>
    %222 = arith.negf %221 : vector<8x64xf32>
    %223 = math.exp %222 : vector<8x64xf32>
    %cst_40 = arith.constant 1.000000e+00 : f32
    %224 = vector.broadcast %cst_40 : f32 to vector<8x64xf32>
    %225 = arith.addf %224, %223 : vector<8x64xf32>
    %226 = arith.divf %224, %225 : vector<8x64xf32>
    %227 = vector.extract_strided_slice %214 {offsets = [0, 128], sizes = [8, 64], strides = [1, 1]} : vector<8x256xf32> to vector<8x64xf32>
    %228 = math.tanh %227 : vector<8x64xf32>
    %229 = vector.extract_strided_slice %214 {offsets = [0, 192], sizes = [8, 64], strides = [1, 1]} : vector<8x256xf32> to vector<8x64xf32>
    %230 = arith.negf %229 : vector<8x64xf32>
    %231 = math.exp %230 : vector<8x64xf32>
    %cst_41 = arith.constant 1.000000e+00 : f32
    %232 = vector.broadcast %cst_41 : f32 to vector<8x64xf32>
    %233 = arith.addf %232, %231 : vector<8x64xf32>
    %234 = arith.divf %232, %233 : vector<8x64xf32>
    %235 = arith.mulf %226, %211 : vector<8x64xf32>
    %236 = arith.mulf %220, %228 : vector<8x64xf32>
    %237 = arith.addf %235, %236 : vector<8x64xf32>
    %238 = math.tanh %237 : vector<8x64xf32>
    %239 = arith.mulf %234, %238 : vector<8x64xf32>
    %cst_42 = arith.constant 6.000000e+00 : f32
    %240 = vector.broadcast %cst_42 : f32 to vector<8x64xf32>
    %241 = arith.cmpf ogt, %17, %240 : vector<8x64xf32>
    %242 = arith.select %241, %239, %210 : vector<8x64xi1>, vector<8x64xf32>
    %243 = arith.select %241, %237, %211 : vector<8x64xi1>, vector<8x64xf32>
    %244 = vector.extract_strided_slice %7 {offsets = [56, 0], sizes = [8, 256], strides = [1, 1]} : vector<64x256xf32> to vector<8x256xf32>
    %cst_43 = arith.constant dense<0.000000e+00> : vector<8x256xf32>
    %245 = tpu.matmul %242, %3, %cst_43 {dimension_numbers = #tpu.dot_dimension_numbers<[1], [0], [0], [1], [0, 0, 1, 1], [], []>} : vector<8x64xf32>, vector<64x256xf32>, vector<8x256xf32> -> vector<8x256xf32>
    %246 = arith.addf %244, %245 : vector<8x256xf32>
    %247 = vector.extract_strided_slice %246 {offsets = [0, 0], sizes = [8, 64], strides = [1, 1]} : vector<8x256xf32> to vector<8x64xf32>
    %248 = arith.negf %247 : vector<8x64xf32>
    %249 = math.exp %248 : vector<8x64xf32>
    %cst_44 = arith.constant 1.000000e+00 : f32
    %250 = vector.broadcast %cst_44 : f32 to vector<8x64xf32>
    %251 = arith.addf %250, %249 : vector<8x64xf32>
    %252 = arith.divf %250, %251 : vector<8x64xf32>
    %253 = vector.extract_strided_slice %246 {offsets = [0, 64], sizes = [8, 64], strides = [1, 1]} : vector<8x256xf32> to vector<8x64xf32>
    %254 = arith.negf %253 : vector<8x64xf32>
    %255 = math.exp %254 : vector<8x64xf32>
    %cst_45 = arith.constant 1.000000e+00 : f32
    %256 = vector.broadcast %cst_45 : f32 to vector<8x64xf32>
    %257 = arith.addf %256, %255 : vector<8x64xf32>
    %258 = arith.divf %256, %257 : vector<8x64xf32>
    %259 = vector.extract_strided_slice %246 {offsets = [0, 128], sizes = [8, 64], strides = [1, 1]} : vector<8x256xf32> to vector<8x64xf32>
    %260 = math.tanh %259 : vector<8x64xf32>
    %261 = vector.extract_strided_slice %246 {offsets = [0, 192], sizes = [8, 64], strides = [1, 1]} : vector<8x256xf32> to vector<8x64xf32>
    %262 = arith.negf %261 : vector<8x64xf32>
    %263 = math.exp %262 : vector<8x64xf32>
    %cst_46 = arith.constant 1.000000e+00 : f32
    %264 = vector.broadcast %cst_46 : f32 to vector<8x64xf32>
    %265 = arith.addf %264, %263 : vector<8x64xf32>
    %266 = arith.divf %264, %265 : vector<8x64xf32>
    %267 = arith.mulf %258, %243 : vector<8x64xf32>
    %268 = arith.mulf %252, %260 : vector<8x64xf32>
    %269 = arith.addf %267, %268 : vector<8x64xf32>
    %270 = math.tanh %269 : vector<8x64xf32>
    %271 = arith.mulf %266, %270 : vector<8x64xf32>
    %cst_47 = arith.constant 7.000000e+00 : f32
    %272 = vector.broadcast %cst_47 : f32 to vector<8x64xf32>
    %273 = arith.cmpf ogt, %17, %272 : vector<8x64xf32>
    %274 = arith.select %273, %271, %242 : vector<8x64xi1>, vector<8x64xf32>
    %c0_48 = arith.constant 0 : index
    %c256 = arith.constant 256 : index
    %275 = vector.load %arg1[%c0_48, %c256] : memref<128x512xf32, #tpu.memory_space<vmem>>, vector<64x32xf32>
    %cst_49 = arith.constant dense<0.000000e+00> : vector<8x32xf32>
    %276 = tpu.matmul %274, %275, %cst_49 {dimension_numbers = #tpu.dot_dimension_numbers<[1], [0], [0], [1], [0, 0, 1, 1], [], []>} : vector<8x64xf32>, vector<64x32xf32>, vector<8x32xf32> -> vector<8x32xf32>
    %c0_50 = arith.constant 0 : index
    %c256_51 = arith.constant 256 : index
    %277 = vector.load %arg4[%c0_50, %c256_51] : memref<1x5376xf32, #tpu.memory_space<vmem>>, vector<1x32xf32>
    %278 = vector.broadcast %277 : vector<1x32xf32> to vector<8x32xf32>
    %279 = arith.addf %276, %278 : vector<8x32xf32>
    %280 = vector.extract_strided_slice %0 {offsets = [0, 64], sizes = [8, 32], strides = [1, 1]} : vector<64x384xf32> to vector<8x32xf32>
    %281 = tpu.concatenate %280, %279 in 1 : vector<8x32xf32>, vector<8x32xf32> -> vector<8x64xf32>
    %c0_52 = arith.constant 0 : index
    %c384 = arith.constant 384 : index
    %282 = vector.load %arg3[%c0_52, %c384] : memref<192x768xbf16, #tpu.memory_space<vmem>>, vector<64x384xbf16>
    %283 = arith.truncf %281 : vector<8x64xf32> to vector<8x64xbf16>
    %cst_53 = arith.constant dense<0.000000e+00> : vector<8x384xf32>
    %284 = tpu.matmul %283, %282, %cst_53 {dimension_numbers = #tpu.dot_dimension_numbers<[1], [0], [0], [1], [0, 0, 1, 1], [], []>} : vector<8x64xbf16>, vector<64x384xbf16>, vector<8x384xf32> -> vector<8x384xf32>
    %c0_54 = arith.constant 0 : index
    %c384_55 = arith.constant 384 : index
    %285 = vector.load %arg4[%c0_54, %c384_55] : memref<1x5376xf32, #tpu.memory_space<vmem>>, vector<1x384xf32>
    %286 = vector.broadcast %285 : vector<1x384xf32> to vector<8x384xf32>
    %287 = arith.addf %284, %286 : vector<8x384xf32>
    %288 = math.tanh %287 : vector<8x384xf32>
    %c0_56 = arith.constant 0 : index
    %c0_57 = arith.constant 0 : index
    %289 = vector.load %arg2[%c0_56, %c0_57] : memref<384x1152xbf16, #tpu.memory_space<vmem>>, vector<384x384xbf16>
    %290 = arith.truncf %288 : vector<8x384xf32> to vector<8x384xbf16>
    %cst_58 = arith.constant dense<0.000000e+00> : vector<8x384xf32>
    %291 = tpu.matmul %290, %289, %cst_58 {dimension_numbers = #tpu.dot_dimension_numbers<[1], [0], [0], [1], [0, 0, 1, 1], [], []>} : vector<8x384xbf16>, vector<384x384xbf16>, vector<8x384xf32> -> vector<8x384xf32>
    %c0_59 = arith.constant 0 : index
    %c768 = arith.constant 768 : index
    %292 = vector.load %arg4[%c0_59, %c768] : memref<1x5376xf32, #tpu.memory_space<vmem>>, vector<1x384xf32>
    %293 = vector.broadcast %292 : vector<1x384xf32> to vector<8x384xf32>
    %294 = arith.addf %291, %293 : vector<8x384xf32>
    %295 = vector.extract_strided_slice %294 {offsets = [0, 0], sizes = [8, 128], strides = [1, 1]} : vector<8x384xf32> to vector<8x128xf32>
    %cst_60 = arith.constant dense<0.000000e+00> : vector<8xf32>
    %296 = vector.multi_reduction <add>, %295, %cst_60 [1] : vector<8x128xf32> to vector<8xf32>
    %297 = vector.shape_cast %296 : vector<8xf32> to vector<8x1xf32>
    %cst_61 = arith.constant 1.280000e+02 : f32
    %298 = vector.broadcast %cst_61 : f32 to vector<8x1xf32>
    %299 = arith.divf %297, %298 : vector<8x1xf32>
    %300 = vector.broadcast %299 : vector<8x1xf32> to vector<8x128xf32>
    %301 = arith.subf %295, %300 : vector<8x128xf32>
    %302 = arith.mulf %301, %301 : vector<8x128xf32>
    %cst_62 = arith.constant dense<0.000000e+00> : vector<8xf32>
    %303 = vector.multi_reduction <add>, %302, %cst_62 [1] : vector<8x128xf32> to vector<8xf32>
    %304 = vector.shape_cast %303 : vector<8xf32> to vector<8x1xf32>
    %cst_63 = arith.constant 1.280000e+02 : f32
    %305 = vector.broadcast %cst_63 : f32 to vector<8x1xf32>
    %306 = arith.divf %304, %305 : vector<8x1xf32>
    %307 = vector.broadcast %299 : vector<8x1xf32> to vector<8x128xf32>
    %308 = arith.subf %295, %307 : vector<8x128xf32>
    %cst_64 = arith.constant 9.99999974E-6 : f32
    %309 = vector.broadcast %cst_64 : f32 to vector<8x1xf32>
    %310 = arith.addf %306, %309 : vector<8x1xf32>
    %311 = math.rsqrt %310 : vector<8x1xf32>
    %312 = vector.broadcast %311 : vector<8x1xf32> to vector<8x128xf32>
    %313 = arith.mulf %308, %312 : vector<8x128xf32>
    %314 = vector.extract_strided_slice %294 {offsets = [0, 128], sizes = [8, 128], strides = [1, 1]} : vector<8x384xf32> to vector<8x128xf32>
    %cst_65 = arith.constant dense<0.000000e+00> : vector<8xf32>
    %315 = vector.multi_reduction <add>, %314, %cst_65 [1] : vector<8x128xf32> to vector<8xf32>
    %316 = vector.shape_cast %315 : vector<8xf32> to vector<8x1xf32>
    %cst_66 = arith.constant 1.280000e+02 : f32
    %317 = vector.broadcast %cst_66 : f32 to vector<8x1xf32>
    %318 = arith.divf %316, %317 : vector<8x1xf32>
    %319 = vector.broadcast %318 : vector<8x1xf32> to vector<8x128xf32>
    %320 = arith.subf %314, %319 : vector<8x128xf32>
    %321 = arith.mulf %320, %320 : vector<8x128xf32>
    %cst_67 = arith.constant dense<0.000000e+00> : vector<8xf32>
    %322 = vector.multi_reduction <add>, %321, %cst_67 [1] : vector<8x128xf32> to vector<8xf32>
    %323 = vector.shape_cast %322 : vector<8xf32> to vector<8x1xf32>
    %cst_68 = arith.constant 1.280000e+02 : f32
    %324 = vector.broadcast %cst_68 : f32 to vector<8x1xf32>
    %325 = arith.divf %323, %324 : vector<8x1xf32>
    %326 = vector.broadcast %318 : vector<8x1xf32> to vector<8x128xf32>
    %327 = arith.subf %314, %326 : vector<8x128xf32>
    %cst_69 = arith.constant 9.99999974E-6 : f32
    %328 = vector.broadcast %cst_69 : f32 to vector<8x1xf32>
    %329 = arith.addf %325, %328 : vector<8x1xf32>
    %330 = math.rsqrt %329 : vector<8x1xf32>
    %331 = vector.broadcast %330 : vector<8x1xf32> to vector<8x128xf32>
    %332 = arith.mulf %327, %331 : vector<8x128xf32>
    %333 = vector.extract_strided_slice %294 {offsets = [0, 256], sizes = [8, 128], strides = [1, 1]} : vector<8x384xf32> to vector<8x128xf32>
    %cst_70 = arith.constant dense<0.000000e+00> : vector<8xf32>
    %334 = vector.multi_reduction <add>, %333, %cst_70 [1] : vector<8x128xf32> to vector<8xf32>
    %335 = vector.shape_cast %334 : vector<8xf32> to vector<8x1xf32>
    %cst_71 = arith.constant 1.280000e+02 : f32
    %336 = vector.broadcast %cst_71 : f32 to vector<8x1xf32>
    %337 = arith.divf %335, %336 : vector<8x1xf32>
    %338 = vector.broadcast %337 : vector<8x1xf32> to vector<8x128xf32>
    %339 = arith.subf %333, %338 : vector<8x128xf32>
    %340 = arith.mulf %339, %339 : vector<8x128xf32>
    %cst_72 = arith.constant dense<0.000000e+00> : vector<8xf32>
    %341 = vector.multi_reduction <add>, %340, %cst_72 [1] : vector<8x128xf32> to vector<8xf32>
    %342 = vector.shape_cast %341 : vector<8xf32> to vector<8x1xf32>
    %cst_73 = arith.constant 1.280000e+02 : f32
    %343 = vector.broadcast %cst_73 : f32 to vector<8x1xf32>
    %344 = arith.divf %342, %343 : vector<8x1xf32>
    %345 = vector.broadcast %337 : vector<8x1xf32> to vector<8x128xf32>
    %346 = arith.subf %333, %345 : vector<8x128xf32>
    %cst_74 = arith.constant 9.99999974E-6 : f32
    %347 = vector.broadcast %cst_74 : f32 to vector<8x1xf32>
    %348 = arith.addf %344, %347 : vector<8x1xf32>
    %349 = math.rsqrt %348 : vector<8x1xf32>
    %350 = vector.broadcast %349 : vector<8x1xf32> to vector<8x128xf32>
    %351 = arith.mulf %346, %350 : vector<8x128xf32>
    %352 = tpu.concatenate %313, %332, %351 in 1 : vector<8x128xf32>, vector<8x128xf32>, vector<8x128xf32> -> vector<8x384xf32>
    %c0_75 = arith.constant 0 : index
    %c1152 = arith.constant 1152 : index
    %353 = vector.load %arg4[%c0_75, %c1152] : memref<1x5376xf32, #tpu.memory_space<vmem>>, vector<1x384xf32>
    %354 = vector.broadcast %353 : vector<1x384xf32> to vector<8x384xf32>
    %355 = arith.mulf %352, %354 : vector<8x384xf32>
    %c0_76 = arith.constant 0 : index
    %c1536 = arith.constant 1536 : index
    %356 = vector.load %arg4[%c0_76, %c1536] : memref<1x5376xf32, #tpu.memory_space<vmem>>, vector<1x384xf32>
    %357 = vector.broadcast %356 : vector<1x384xf32> to vector<8x384xf32>
    %358 = arith.addf %355, %357 : vector<8x384xf32>
    %359 = math.tanh %358 : vector<8x384xf32>
    %c0_77 = arith.constant 0 : index
    %c768_78 = arith.constant 768 : index
    %360 = vector.load %arg2[%c0_77, %c768_78] : memref<384x1152xbf16, #tpu.memory_space<vmem>>, vector<384x192xbf16>
    %361 = arith.truncf %359 : vector<8x384xf32> to vector<8x384xbf16>
    %cst_79 = arith.constant dense<0.000000e+00> : vector<8x192xf32>
    %362 = tpu.matmul %361, %360, %cst_79 {dimension_numbers = #tpu.dot_dimension_numbers<[1], [0], [0], [1], [0, 0, 1, 1], [], []>} : vector<8x384xbf16>, vector<384x192xbf16>, vector<8x192xf32> -> vector<8x192xf32>
    %c0_80 = arith.constant 0 : index
    %c1920 = arith.constant 1920 : index
    %363 = vector.load %arg4[%c0_80, %c1920] : memref<1x5376xf32, #tpu.memory_space<vmem>>, vector<1x192xf32>
    %364 = vector.broadcast %363 : vector<1x192xf32> to vector<8x192xf32>
    %365 = arith.addf %362, %364 : vector<8x192xf32>
    %366 = arith.negf %365 : vector<8x192xf32>
    %367 = math.exp %366 : vector<8x192xf32>
    %cst_81 = arith.constant 1.000000e+00 : f32
    %368 = vector.broadcast %cst_81 : f32 to vector<8x192xf32>
    %369 = arith.addf %368, %367 : vector<8x192xf32>
    %370 = arith.divf %368, %369 : vector<8x192xf32>
    %c0_82 = arith.constant 0 : index
    %c960 = arith.constant 960 : index
    %371 = vector.load %arg2[%c0_82, %c960] : memref<384x1152xbf16, #tpu.memory_space<vmem>>, vector<384x192xbf16>
    %372 = arith.truncf %359 : vector<8x384xf32> to vector<8x384xbf16>
    %cst_83 = arith.constant dense<0.000000e+00> : vector<8x192xf32>
    %373 = tpu.matmul %372, %371, %cst_83 {dimension_numbers = #tpu.dot_dimension_numbers<[1], [0], [0], [1], [0, 0, 1, 1], [], []>} : vector<8x384xbf16>, vector<384x192xbf16>, vector<8x192xf32> -> vector<8x192xf32>
    %c0_84 = arith.constant 0 : index
    %c2176 = arith.constant 2176 : index
    %374 = vector.load %arg4[%c0_84, %c2176] : memref<1x5376xf32, #tpu.memory_space<vmem>>, vector<1x192xf32>
    %375 = vector.broadcast %374 : vector<1x192xf32> to vector<8x192xf32>
    %376 = arith.addf %373, %375 : vector<8x192xf32>
    %377 = arith.negf %376 : vector<8x192xf32>
    %378 = math.exp %377 : vector<8x192xf32>
    %cst_85 = arith.constant 1.000000e+00 : f32
    %379 = vector.broadcast %cst_85 : f32 to vector<8x192xf32>
    %380 = arith.addf %379, %378 : vector<8x192xf32>
    %381 = arith.divf %379, %380 : vector<8x192xf32>
    %382 = vector.extract_strided_slice %0 {offsets = [0, 128], sizes = [8, 192], strides = [1, 1]} : vector<64x384xf32> to vector<8x192xf32>
    %cst_86 = arith.constant 5.000000e-01 : f32
    %383 = vector.broadcast %cst_86 : f32 to vector<8x192xf32>
    %384 = arith.mulf %381, %383 : vector<8x192xf32>
    %385 = math.exp %384 : vector<8x192xf32>
    %386 = arith.mulf %385, %382 : vector<8x192xf32>
    %387 = arith.addf %386, %370 : vector<8x192xf32>
    %c0_87 = arith.constant 0 : index
    %c0_88 = arith.constant 0 : index
    %388 = vector.load %arg3[%c0_87, %c0_88] : memref<192x768xbf16, #tpu.memory_space<vmem>>, vector<192x384xbf16>
    %389 = arith.truncf %387 : vector<8x192xf32> to vector<8x192xbf16>
    %cst_89 = arith.constant dense<0.000000e+00> : vector<8x384xf32>
    %390 = tpu.matmul %389, %388, %cst_89 {dimension_numbers = #tpu.dot_dimension_numbers<[1], [0], [0], [1], [0, 0, 1, 1], [], []>} : vector<8x192xbf16>, vector<192x384xbf16>, vector<8x384xf32> -> vector<8x384xf32>
    %c0_90 = arith.constant 0 : index
    %c2432 = arith.constant 2432 : index
    %391 = vector.load %arg4[%c0_90, %c2432] : memref<1x5376xf32, #tpu.memory_space<vmem>>, vector<1x384xf32>
    %392 = vector.broadcast %391 : vector<1x384xf32> to vector<8x384xf32>
    %393 = arith.addf %390, %392 : vector<8x384xf32>
    %394 = vector.extract_strided_slice %393 {offsets = [0, 0], sizes = [8, 128], strides = [1, 1]} : vector<8x384xf32> to vector<8x128xf32>
    %cst_91 = arith.constant dense<0.000000e+00> : vector<8xf32>
    %395 = vector.multi_reduction <add>, %394, %cst_91 [1] : vector<8x128xf32> to vector<8xf32>
    %396 = vector.shape_cast %395 : vector<8xf32> to vector<8x1xf32>
    %cst_92 = arith.constant 1.280000e+02 : f32
    %397 = vector.broadcast %cst_92 : f32 to vector<8x1xf32>
    %398 = arith.divf %396, %397 : vector<8x1xf32>
    %399 = vector.broadcast %398 : vector<8x1xf32> to vector<8x128xf32>
    %400 = arith.subf %394, %399 : vector<8x128xf32>
    %401 = arith.mulf %400, %400 : vector<8x128xf32>
    %cst_93 = arith.constant dense<0.000000e+00> : vector<8xf32>
    %402 = vector.multi_reduction <add>, %401, %cst_93 [1] : vector<8x128xf32> to vector<8xf32>
    %403 = vector.shape_cast %402 : vector<8xf32> to vector<8x1xf32>
    %cst_94 = arith.constant 1.280000e+02 : f32
    %404 = vector.broadcast %cst_94 : f32 to vector<8x1xf32>
    %405 = arith.divf %403, %404 : vector<8x1xf32>
    %406 = vector.broadcast %398 : vector<8x1xf32> to vector<8x128xf32>
    %407 = arith.subf %394, %406 : vector<8x128xf32>
    %cst_95 = arith.constant 9.99999974E-6 : f32
    %408 = vector.broadcast %cst_95 : f32 to vector<8x1xf32>
    %409 = arith.addf %405, %408 : vector<8x1xf32>
    %410 = math.rsqrt %409 : vector<8x1xf32>
    %411 = vector.broadcast %410 : vector<8x1xf32> to vector<8x128xf32>
    %412 = arith.mulf %407, %411 : vector<8x128xf32>
    %413 = vector.extract_strided_slice %393 {offsets = [0, 128], sizes = [8, 128], strides = [1, 1]} : vector<8x384xf32> to vector<8x128xf32>
    %cst_96 = arith.constant dense<0.000000e+00> : vector<8xf32>
    %414 = vector.multi_reduction <add>, %413, %cst_96 [1] : vector<8x128xf32> to vector<8xf32>
    %415 = vector.shape_cast %414 : vector<8xf32> to vector<8x1xf32>
    %cst_97 = arith.constant 1.280000e+02 : f32
    %416 = vector.broadcast %cst_97 : f32 to vector<8x1xf32>
    %417 = arith.divf %415, %416 : vector<8x1xf32>
    %418 = vector.broadcast %417 : vector<8x1xf32> to vector<8x128xf32>
    %419 = arith.subf %413, %418 : vector<8x128xf32>
    %420 = arith.mulf %419, %419 : vector<8x128xf32>
    %cst_98 = arith.constant dense<0.000000e+00> : vector<8xf32>
    %421 = vector.multi_reduction <add>, %420, %cst_98 [1] : vector<8x128xf32> to vector<8xf32>
    %422 = vector.shape_cast %421 : vector<8xf32> to vector<8x1xf32>
    %cst_99 = arith.constant 1.280000e+02 : f32
    %423 = vector.broadcast %cst_99 : f32 to vector<8x1xf32>
    %424 = arith.divf %422, %423 : vector<8x1xf32>
    %425 = vector.broadcast %417 : vector<8x1xf32> to vector<8x128xf32>
    %426 = arith.subf %413, %425 : vector<8x128xf32>
    %cst_100 = arith.constant 9.99999974E-6 : f32
    %427 = vector.broadcast %cst_100 : f32 to vector<8x1xf32>
    %428 = arith.addf %424, %427 : vector<8x1xf32>
    %429 = math.rsqrt %428 : vector<8x1xf32>
    %430 = vector.broadcast %429 : vector<8x1xf32> to vector<8x128xf32>
    %431 = arith.mulf %426, %430 : vector<8x128xf32>
    %432 = vector.extract_strided_slice %393 {offsets = [0, 256], sizes = [8, 128], strides = [1, 1]} : vector<8x384xf32> to vector<8x128xf32>
    %cst_101 = arith.constant dense<0.000000e+00> : vector<8xf32>
    %433 = vector.multi_reduction <add>, %432, %cst_101 [1] : vector<8x128xf32> to vector<8xf32>
    %434 = vector.shape_cast %433 : vector<8xf32> to vector<8x1xf32>
    %cst_102 = arith.constant 1.280000e+02 : f32
    %435 = vector.broadcast %cst_102 : f32 to vector<8x1xf32>
    %436 = arith.divf %434, %435 : vector<8x1xf32>
    %437 = vector.broadcast %436 : vector<8x1xf32> to vector<8x128xf32>
    %438 = arith.subf %432, %437 : vector<8x128xf32>
    %439 = arith.mulf %438, %438 : vector<8x128xf32>
    %cst_103 = arith.constant dense<0.000000e+00> : vector<8xf32>
    %440 = vector.multi_reduction <add>, %439, %cst_103 [1] : vector<8x128xf32> to vector<8xf32>
    %441 = vector.shape_cast %440 : vector<8xf32> to vector<8x1xf32>
    %cst_104 = arith.constant 1.280000e+02 : f32
    %442 = vector.broadcast %cst_104 : f32 to vector<8x1xf32>
    %443 = arith.divf %441, %442 : vector<8x1xf32>
    %444 = vector.broadcast %436 : vector<8x1xf32> to vector<8x128xf32>
    %445 = arith.subf %432, %444 : vector<8x128xf32>
    %cst_105 = arith.constant 9.99999974E-6 : f32
    %446 = vector.broadcast %cst_105 : f32 to vector<8x1xf32>
    %447 = arith.addf %443, %446 : vector<8x1xf32>
    %448 = math.rsqrt %447 : vector<8x1xf32>
    %449 = vector.broadcast %448 : vector<8x1xf32> to vector<8x128xf32>
    %450 = arith.mulf %445, %449 : vector<8x128xf32>
    %451 = tpu.concatenate %412, %431, %450 in 1 : vector<8x128xf32>, vector<8x128xf32>, vector<8x128xf32> -> vector<8x384xf32>
    %c0_106 = arith.constant 0 : index
    %c2816 = arith.constant 2816 : index
    %452 = vector.load %arg4[%c0_106, %c2816] : memref<1x5376xf32, #tpu.memory_space<vmem>>, vector<1x384xf32>
    %453 = vector.broadcast %452 : vector<1x384xf32> to vector<8x384xf32>
    %454 = arith.mulf %451, %453 : vector<8x384xf32>
    %c0_107 = arith.constant 0 : index
    %c3200 = arith.constant 3200 : index
    %455 = vector.load %arg4[%c0_107, %c3200] : memref<1x5376xf32, #tpu.memory_space<vmem>>, vector<1x384xf32>
    %456 = vector.broadcast %455 : vector<1x384xf32> to vector<8x384xf32>
    %457 = arith.addf %454, %456 : vector<8x384xf32>
    %458 = math.tanh %457 : vector<8x384xf32>
    %c0_108 = arith.constant 0 : index
    %c384_109 = arith.constant 384 : index
    %459 = vector.load %arg2[%c0_108, %c384_109] : memref<384x1152xbf16, #tpu.memory_space<vmem>>, vector<384x384xbf16>
    %460 = arith.truncf %458 : vector<8x384xf32> to vector<8x384xbf16>
    %cst_110 = arith.constant dense<0.000000e+00> : vector<8x384xf32>
    %461 = tpu.matmul %460, %459, %cst_110 {dimension_numbers = #tpu.dot_dimension_numbers<[1], [0], [0], [1], [0, 0, 1, 1], [], []>} : vector<8x384xbf16>, vector<384x384xbf16>, vector<8x384xf32> -> vector<8x384xf32>
    %c0_111 = arith.constant 0 : index
    %c3584 = arith.constant 3584 : index
    %462 = vector.load %arg4[%c0_111, %c3584] : memref<1x5376xf32, #tpu.memory_space<vmem>>, vector<1x384xf32>
    %463 = vector.broadcast %462 : vector<1x384xf32> to vector<8x384xf32>
    %464 = arith.addf %461, %463 : vector<8x384xf32>
    %465 = vector.extract_strided_slice %464 {offsets = [0, 0], sizes = [8, 128], strides = [1, 1]} : vector<8x384xf32> to vector<8x128xf32>
    %cst_112 = arith.constant dense<0.000000e+00> : vector<8xf32>
    %466 = vector.multi_reduction <add>, %465, %cst_112 [1] : vector<8x128xf32> to vector<8xf32>
    %467 = vector.shape_cast %466 : vector<8xf32> to vector<8x1xf32>
    %cst_113 = arith.constant 1.280000e+02 : f32
    %468 = vector.broadcast %cst_113 : f32 to vector<8x1xf32>
    %469 = arith.divf %467, %468 : vector<8x1xf32>
    %470 = vector.broadcast %469 : vector<8x1xf32> to vector<8x128xf32>
    %471 = arith.subf %465, %470 : vector<8x128xf32>
    %472 = arith.mulf %471, %471 : vector<8x128xf32>
    %cst_114 = arith.constant dense<0.000000e+00> : vector<8xf32>
    %473 = vector.multi_reduction <add>, %472, %cst_114 [1] : vector<8x128xf32> to vector<8xf32>
    %474 = vector.shape_cast %473 : vector<8xf32> to vector<8x1xf32>
    %cst_115 = arith.constant 1.280000e+02 : f32
    %475 = vector.broadcast %cst_115 : f32 to vector<8x1xf32>
    %476 = arith.divf %474, %475 : vector<8x1xf32>
    %477 = vector.broadcast %469 : vector<8x1xf32> to vector<8x128xf32>
    %478 = arith.subf %465, %477 : vector<8x128xf32>
    %cst_116 = arith.constant 9.99999974E-6 : f32
    %479 = vector.broadcast %cst_116 : f32 to vector<8x1xf32>
    %480 = arith.addf %476, %479 : vector<8x1xf32>
    %481 = math.rsqrt %480 : vector<8x1xf32>
    %482 = vector.broadcast %481 : vector<8x1xf32> to vector<8x128xf32>
    %483 = arith.mulf %478, %482 : vector<8x128xf32>
    %484 = vector.extract_strided_slice %464 {offsets = [0, 128], sizes = [8, 128], strides = [1, 1]} : vector<8x384xf32> to vector<8x128xf32>
    %cst_117 = arith.constant dense<0.000000e+00> : vector<8xf32>
    %485 = vector.multi_reduction <add>, %484, %cst_117 [1] : vector<8x128xf32> to vector<8xf32>
    %486 = vector.shape_cast %485 : vector<8xf32> to vector<8x1xf32>
    %cst_118 = arith.constant 1.280000e+02 : f32
    %487 = vector.broadcast %cst_118 : f32 to vector<8x1xf32>
    %488 = arith.divf %486, %487 : vector<8x1xf32>
    %489 = vector.broadcast %488 : vector<8x1xf32> to vector<8x128xf32>
    %490 = arith.subf %484, %489 : vector<8x128xf32>
    %491 = arith.mulf %490, %490 : vector<8x128xf32>
    %cst_119 = arith.constant dense<0.000000e+00> : vector<8xf32>
    %492 = vector.multi_reduction <add>, %491, %cst_119 [1] : vector<8x128xf32> to vector<8xf32>
    %493 = vector.shape_cast %492 : vector<8xf32> to vector<8x1xf32>
    %cst_120 = arith.constant 1.280000e+02 : f32
    %494 = vector.broadcast %cst_120 : f32 to vector<8x1xf32>
    %495 = arith.divf %493, %494 : vector<8x1xf32>
    %496 = vector.broadcast %488 : vector<8x1xf32> to vector<8x128xf32>
    %497 = arith.subf %484, %496 : vector<8x128xf32>
    %cst_121 = arith.constant 9.99999974E-6 : f32
    %498 = vector.broadcast %cst_121 : f32 to vector<8x1xf32>
    %499 = arith.addf %495, %498 : vector<8x1xf32>
    %500 = math.rsqrt %499 : vector<8x1xf32>
    %501 = vector.broadcast %500 : vector<8x1xf32> to vector<8x128xf32>
    %502 = arith.mulf %497, %501 : vector<8x128xf32>
    %503 = vector.extract_strided_slice %464 {offsets = [0, 256], sizes = [8, 128], strides = [1, 1]} : vector<8x384xf32> to vector<8x128xf32>
    %cst_122 = arith.constant dense<0.000000e+00> : vector<8xf32>
    %504 = vector.multi_reduction <add>, %503, %cst_122 [1] : vector<8x128xf32> to vector<8xf32>
    %505 = vector.shape_cast %504 : vector<8xf32> to vector<8x1xf32>
    %cst_123 = arith.constant 1.280000e+02 : f32
    %506 = vector.broadcast %cst_123 : f32 to vector<8x1xf32>
    %507 = arith.divf %505, %506 : vector<8x1xf32>
    %508 = vector.broadcast %507 : vector<8x1xf32> to vector<8x128xf32>
    %509 = arith.subf %503, %508 : vector<8x128xf32>
    %510 = arith.mulf %509, %509 : vector<8x128xf32>
    %cst_124 = arith.constant dense<0.000000e+00> : vector<8xf32>
    %511 = vector.multi_reduction <add>, %510, %cst_124 [1] : vector<8x128xf32> to vector<8xf32>
    %512 = vector.shape_cast %511 : vector<8xf32> to vector<8x1xf32>
    %cst_125 = arith.constant 1.280000e+02 : f32
    %513 = vector.broadcast %cst_125 : f32 to vector<8x1xf32>
    %514 = arith.divf %512, %513 : vector<8x1xf32>
    %515 = vector.broadcast %507 : vector<8x1xf32> to vector<8x128xf32>
    %516 = arith.subf %503, %515 : vector<8x128xf32>
    %cst_126 = arith.constant 9.99999974E-6 : f32
    %517 = vector.broadcast %cst_126 : f32 to vector<8x1xf32>
    %518 = arith.addf %514, %517 : vector<8x1xf32>
    %519 = math.rsqrt %518 : vector<8x1xf32>
    %520 = vector.broadcast %519 : vector<8x1xf32> to vector<8x128xf32>
    %521 = arith.mulf %516, %520 : vector<8x128xf32>
    %522 = tpu.concatenate %483, %502, %521 in 1 : vector<8x128xf32>, vector<8x128xf32>, vector<8x128xf32> -> vector<8x384xf32>
    %c0_127 = arith.constant 0 : index
    %c3968 = arith.constant 3968 : index
    %523 = vector.load %arg4[%c0_127, %c3968] : memref<1x5376xf32, #tpu.memory_space<vmem>>, vector<1x384xf32>
    %524 = vector.broadcast %523 : vector<1x384xf32> to vector<8x384xf32>
    %525 = arith.mulf %522, %524 : vector<8x384xf32>
    %c0_128 = arith.constant 0 : index
    %c4352 = arith.constant 4352 : index
    %526 = vector.load %arg4[%c0_128, %c4352] : memref<1x5376xf32, #tpu.memory_space<vmem>>, vector<1x384xf32>
    %527 = vector.broadcast %526 : vector<1x384xf32> to vector<8x384xf32>
    %528 = arith.addf %525, %527 : vector<8x384xf32>
    %529 = math.tanh %528 : vector<8x384xf32>
    %530 = tpu.iota {dimensions = array<i32: 0>} : vector<8x1xi32>
    %c2_i32 = arith.constant 2 : i32
    %531 = vector.broadcast %c2_i32 : i32 to vector<8x1xi32>
    %532 = arith.cmpi slt, %530, %531 : vector<8x1xi32>
    %533 = arith.extui %532 : vector<8x1xi1> to vector<8x1xi32>
    %534 = arith.sitofp %533 : vector<8x1xi32> to vector<8x1xf32>
    %cst_129 = arith.constant 1.000000e+00 : f32
    %535 = vector.broadcast %cst_129 : f32 to vector<8x192xf32>
    %536 = arith.addf %535, %381 : vector<8x192xf32>
    %537 = arith.mulf %370, %370 : vector<8x192xf32>
    %538 = arith.subf %536, %537 : vector<8x192xf32>
    %539 = math.exp %381 : vector<8x192xf32>
    %540 = arith.subf %538, %539 : vector<8x192xf32>
    %541 = vector.broadcast %534 : vector<8x1xf32> to vector<8x192xf32>
    %542 = arith.mulf %541, %540 : vector<8x192xf32>
    %543 = vector.shape_cast %542 : vector<8x192xf32> to vector<1x8x192xf32>
    %cst_130 = arith.constant dense<0.000000e+00> : vector<1xf32>
    %544 = vector.multi_reduction <add>, %543, %cst_130 [1, 2] : vector<1x8x192xf32> to vector<1xf32>
    %545 = vector.shape_cast %544 : vector<1xf32> to vector<1x1x1xf32>
    %546 = vector.extract %545[0, 0, 0] : f32 from vector<1x1x1xf32>
    %cst_131 = arith.constant -2.500000e-01 : f32
    %547 = arith.mulf %cst_131, %546 : f32
    %548 = arith.subf %288, %529 : vector<8x384xf32>
    %549 = vector.broadcast %534 : vector<8x1xf32> to vector<8x384xf32>
    %550 = arith.mulf %549, %548 : vector<8x384xf32>
    %551 = arith.mulf %550, %548 : vector<8x384xf32>
    %552 = vector.shape_cast %551 : vector<8x384xf32> to vector<1x8x384xf32>
    %cst_132 = arith.constant dense<0.000000e+00> : vector<1xf32>
    %553 = vector.multi_reduction <add>, %552, %cst_132 [1, 2] : vector<1x8x384xf32> to vector<1xf32>
    %554 = vector.shape_cast %553 : vector<1xf32> to vector<1x1x1xf32>
    %555 = vector.extract %554[0, 0, 0] : f32 from vector<1x1x1xf32>
    %cst_133 = arith.constant 2.560000e+02 : f32
    %556 = arith.divf %555, %cst_133 : f32
    %557 = vector.extract_strided_slice %370 {offsets = [0, 0], sizes = [8, 64], strides = [1, 1]} : vector<8x192xf32> to vector<8x64xf32>
    %558 = vector.extract_strided_slice %370 {offsets = [0, 64], sizes = [8, 64], strides = [1, 1]} : vector<8x192xf32> to vector<8x64xf32>
    %559 = vector.extract_strided_slice %370 {offsets = [0, 128], sizes = [8, 64], strides = [1, 1]} : vector<8x192xf32> to vector<8x64xf32>
    %560 = vector.extract_strided_slice %381 {offsets = [0, 0], sizes = [8, 64], strides = [1, 1]} : vector<8x192xf32> to vector<8x64xf32>
    %561 = vector.extract_strided_slice %381 {offsets = [0, 64], sizes = [8, 64], strides = [1, 1]} : vector<8x192xf32> to vector<8x64xf32>
    %562 = vector.extract_strided_slice %381 {offsets = [0, 128], sizes = [8, 64], strides = [1, 1]} : vector<8x192xf32> to vector<8x64xf32>
    %563 = arith.addf %560, %561 : vector<8x64xf32>
    %cst_134 = arith.constant 9.99999997E-7 : f32
    %cst_135 = arith.constant 1.000000e+00 : f32
    %564 = vector.broadcast %cst_134 : f32 to vector<8x64xf32>
    %565 = arith.maximumf %564, %563 : vector<8x64xf32>
    %566 = vector.broadcast %cst_135 : f32 to vector<8x64xf32>
    %567 = arith.minimumf %566, %565 : vector<8x64xf32>
    %568 = tpu.reciprocal %567 {approx = true} : vector<8x64xf32> -> vector<8x64xf32>
    %569 = arith.mulf %557, %561 : vector<8x64xf32>
    %570 = arith.mulf %558, %560 : vector<8x64xf32>
    %571 = arith.addf %569, %570 : vector<8x64xf32>
    %572 = arith.mulf %571, %568 : vector<8x64xf32>
    %573 = arith.mulf %560, %561 : vector<8x64xf32>
    %574 = arith.mulf %573, %568 : vector<8x64xf32>
    %575 = arith.addf %574, %562 : vector<8x64xf32>
    %cst_136 = arith.constant 9.99999997E-7 : f32
    %cst_137 = arith.constant 1.000000e+00 : f32
    %576 = vector.broadcast %cst_136 : f32 to vector<8x64xf32>
    %577 = arith.maximumf %576, %575 : vector<8x64xf32>
    %578 = vector.broadcast %cst_137 : f32 to vector<8x64xf32>
    %579 = arith.minimumf %578, %577 : vector<8x64xf32>
    %580 = tpu.reciprocal %579 {approx = true} : vector<8x64xf32> -> vector<8x64xf32>
    %581 = arith.mulf %572, %562 : vector<8x64xf32>
    %582 = arith.mulf %559, %574 : vector<8x64xf32>
    %583 = arith.addf %581, %582 : vector<8x64xf32>
    %584 = arith.mulf %583, %580 : vector<8x64xf32>
    %585 = arith.mulf %574, %562 : vector<8x64xf32>
    %586 = arith.mulf %585, %580 : vector<8x64xf32>
    %587 = vector.extract_strided_slice %0 {offsets = [0, 320], sizes = [8, 64], strides = [1, 1]} : vector<64x384xf32> to vector<8x64xf32>
    %cst_138 = arith.constant 5.000000e-01 : f32
    %588 = vector.broadcast %cst_138 : f32 to vector<8x64xf32>
    %589 = arith.mulf %586, %588 : vector<8x64xf32>
    %590 = math.exp %589 : vector<8x64xf32>
    %591 = arith.mulf %590, %587 : vector<8x64xf32>
    %592 = arith.addf %591, %584 : vector<8x64xf32>
    %593 = tpu.concatenate %281, %592 in 1 : vector<8x64xf32>, vector<8x64xf32> -> vector<8x128xf32>
    %c0_139 = arith.constant 0 : index
    %c288 = arith.constant 288 : index
    %594 = vector.load %arg1[%c0_139, %c288] : memref<128x512xf32, #tpu.memory_space<vmem>>, vector<128x32xf32>
    %cst_140 = arith.constant dense<0.000000e+00> : vector<8x32xf32>
    %595 = tpu.matmul %593, %594, %cst_140 {dimension_numbers = #tpu.dot_dimension_numbers<[1], [0], [0], [1], [0, 0, 1, 1], [], []>} : vector<8x128xf32>, vector<128x32xf32>, vector<8x32xf32> -> vector<8x32xf32>
    %c0_141 = arith.constant 0 : index
    %c4736 = arith.constant 4736 : index
    %596 = vector.load %arg4[%c0_141, %c4736] : memref<1x5376xf32, #tpu.memory_space<vmem>>, vector<1x32xf32>
    %597 = vector.broadcast %596 : vector<1x32xf32> to vector<8x32xf32>
    %598 = arith.addf %595, %597 : vector<8x32xf32>
    %cst_142 = arith.constant 0.000000e+00 : f32
    %599 = vector.broadcast %cst_142 : f32 to vector<8x32xf32>
    %600 = arith.maximumf %598, %599 : vector<8x32xf32>
    %c0_143 = arith.constant 0 : index
    %c320 = arith.constant 320 : index
    %601 = vector.load %arg1[%c0_143, %c320] : memref<128x512xf32, #tpu.memory_space<vmem>>, vector<32x32xf32>
    %cst_144 = arith.constant dense<0.000000e+00> : vector<8x32xf32>
    %602 = tpu.matmul %600, %601, %cst_144 {dimension_numbers = #tpu.dot_dimension_numbers<[1], [0], [0], [1], [0, 0, 1, 1], [], []>} : vector<8x32xf32>, vector<32x32xf32>, vector<8x32xf32> -> vector<8x32xf32>
    %c0_145 = arith.constant 0 : index
    %c4864 = arith.constant 4864 : index
    %603 = vector.load %arg4[%c0_145, %c4864] : memref<1x5376xf32, #tpu.memory_space<vmem>>, vector<1x32xf32>
    %604 = vector.broadcast %603 : vector<1x32xf32> to vector<8x32xf32>
    %605 = arith.addf %602, %604 : vector<8x32xf32>
    %cst_146 = arith.constant 0.000000e+00 : f32
    %606 = vector.broadcast %cst_146 : f32 to vector<8x32xf32>
    %607 = arith.maximumf %605, %606 : vector<8x32xf32>
    %c0_147 = arith.constant 0 : index
    %c352 = arith.constant 352 : index
    %608 = vector.load %arg1[%c0_147, %c352] : memref<128x512xf32, #tpu.memory_space<vmem>>, vector<32x1xf32>
    %cst_148 = arith.constant dense<0.000000e+00> : vector<8x1xf32>
    %609 = tpu.matmul %607, %608, %cst_148 {dimension_numbers = #tpu.dot_dimension_numbers<[1], [0], [0], [1], [0, 0, 1, 1], [], []>} : vector<8x32xf32>, vector<32x1xf32>, vector<8x1xf32> -> vector<8x1xf32>
    %c0_149 = arith.constant 0 : index
    %c4992 = arith.constant 4992 : index
    %610 = vector.load %arg4[%c0_149, %c4992] : memref<1x5376xf32, #tpu.memory_space<vmem>>, vector<1x1xf32>
    %611 = vector.broadcast %610 : vector<1x1xf32> to vector<8x1xf32>
    %612 = arith.addf %609, %611 : vector<8x1xf32>
    %c0_150 = arith.constant 0 : index
    %c384_151 = arith.constant 384 : index
    %613 = vector.load %arg1[%c0_150, %c384_151] : memref<128x512xf32, #tpu.memory_space<vmem>>, vector<64x48xf32>
    %cst_152 = arith.constant dense<0.000000e+00> : vector<8x48xf32>
    %614 = tpu.matmul %281, %613, %cst_152 {dimension_numbers = #tpu.dot_dimension_numbers<[1], [0], [0], [1], [0, 0, 1, 1], [], []>} : vector<8x64xf32>, vector<64x48xf32>, vector<8x48xf32> -> vector<8x48xf32>
    %c0_153 = arith.constant 0 : index
    %c5120 = arith.constant 5120 : index
    %615 = vector.load %arg4[%c0_153, %c5120] : memref<1x5376xf32, #tpu.memory_space<vmem>>, vector<1x48xf32>
    %616 = vector.broadcast %615 : vector<1x48xf32> to vector<8x48xf32>
    %617 = arith.addf %614, %616 : vector<8x48xf32>
    %cst_154 = arith.constant 0.000000e+00 : f32
    %618 = vector.broadcast %cst_154 : f32 to vector<8x48xf32>
    %619 = arith.maximumf %617, %618 : vector<8x48xf32>
    %c0_155 = arith.constant 0 : index
    %c432 = arith.constant 432 : index
    %620 = vector.load %arg1[%c0_155, %c432] : memref<128x512xf32, #tpu.memory_space<vmem>>, vector<48x3xf32>
    %cst_156 = arith.constant dense<0.000000e+00> : vector<8x3xf32>
    %621 = tpu.matmul %619, %620, %cst_156 {dimension_numbers = #tpu.dot_dimension_numbers<[1], [0], [0], [1], [0, 0, 1, 1], [], []>} : vector<8x48xf32>, vector<48x3xf32>, vector<8x3xf32> -> vector<8x3xf32>
    %c0_157 = arith.constant 0 : index
    %c5248 = arith.constant 5248 : index
    %622 = vector.load %arg4[%c0_157, %c5248] : memref<1x5376xf32, #tpu.memory_space<vmem>>, vector<1x3xf32>
    %623 = vector.broadcast %622 : vector<1x3xf32> to vector<8x3xf32>
    %624 = arith.addf %621, %623 : vector<8x3xf32>
    %cst_158 = arith.constant 1.000000e+00 : f32
    %625 = vector.broadcast %cst_158 : f32 to vector<8x1xf32>
    %626 = vector.broadcast %547 : f32 to vector<8x1xf32>
    %627 = arith.mulf %626, %625 : vector<8x1xf32>
    %628 = vector.broadcast %556 : f32 to vector<8x1xf32>
    %629 = arith.mulf %628, %625 : vector<8x1xf32>
    %cst_159 = arith.constant 0.000000e+00 : f32
    %630 = vector.broadcast %cst_159 : f32 to vector<8x122xf32>
    %631 = tpu.concatenate %612, %624, %627, %629, %630 in 1 : vector<8x1xf32>, vector<8x3xf32>, vector<8x1xf32>, vector<8x1xf32>, vector<8x122xf32> -> vector<8x128xf32>
    %632 = tpu.concatenate %584, %586, %370, %381, %631 in 1 : vector<8x64xf32>, vector<8x64xf32>, vector<8x192xf32>, vector<8x192xf32>, vector<8x128xf32> -> vector<8x640xf32>
    %c0_160 = arith.constant 0 : index
    %c0_161 = arith.constant 0 : index
    %633 = vector.load %arg5[%c0_160, %c0_161] : memref<8x640xf32, #tpu.memory_space<vmem>>, vector<8x640xf32>
    tpu.vector_store %arg5[%c0_160, %c0_161], %632 {strides = array<i32>} : memref<8x640xf32, #tpu.memory_space<vmem>>, vector<8x640xf32>,
    return
  }
}

</mosaic_0001>

<llo_original>
// kernel: tmson_forward.1
$region0: #{tmson_forward.1}
  #allocation0 [shape = 'u32[]', space=smem, size = 0x4, offset = 0x4, fixed_abs, tag = 'smem constant byte address 0x4 - core index']
  #allocation1 [shape = 'u32[144,128]{1,0:T(1,128)}', space=vmem, size = 0x12000, scoped, tag = 'internal scratch']
  %s0 = inlined_call_operand.vmem [shape: f32[64,384], index: 0, kind: input, shape index: {}]
  %s1 = inlined_call_operand.hbm [shape: f32[128,512], index: 1, kind: input, shape index: {}]
  %s2 = inlined_call_operand.hbm [shape: bf16[384,1152], index: 2, kind: input, shape index: {}]
  %s3 = inlined_call_operand.vmem [shape: bf16[192,768], index: 3, kind: input, shape index: {}]
  %s4 = inlined_call_operand.vmem [shape: f32[1,5376], index: 4, kind: input, shape index: {}]
  %s5 = inlined_call_operand.vmem [shape: f32[8,640], index: 5, kind: output, shape index: {}]
  %s6 = sld [smem:[#allocation0]]
  $region38: #{tmson_forward.1} parent=0
    _
  %s8 = ssub.s32 1, %s6
  %s9 = scalar_select 0, %s8, %s6
  $region1: #{tmson_forward.1} parent=0
    #allocation2 [shape = 'u8[262144]{0}', space=vmem, size = 0x40000, scoped, tag = 'input window, operand 1, single buffered']
    #allocation3 [shape = 's32[1]{0}', space=sflag, size = 0x4, scoped, tag = 'scoped memory for tmson_forward.1']
    #allocation4 [shape = 'u8[884736]{0}', space=vmem, size = 0xd8000, scoped, tag = 'input window, operand 2, single buffered']
    #allocation5 [shape = 's32[1]{0}', space=sflag, size = 0x4, scoped, tag = 'scoped memory for tmson_forward.1']
    %10 = vsyncpa [#allocation3], 0
    %11 = vsyncpa [#allocation5], 0
    // Predicated region
    $region2: #{tmson_forward.1} parent=1 // pred_check
      _
    $region3: #{tmson_forward.1} parent=1 // pred_check_branch
      %13 = sbr.rel (0) target = $region5
    $region4: #{tmson_forward.1} parent=1 // pred_region
      _
    $region5: #{tmson_forward.1} parent=1 // pred_fallthru
      _
    // Predicated region
    $region6: #{tmson_forward.1} parent=1 // pred_check
      _
    $region7: #{tmson_forward.1} parent=1 // pred_check_branch
      %15 = sbr.rel (0) target = $region9
    $region8: #{tmson_forward.1} parent=1 // pred_region
      %s17 = ssub.s32 8192, 8192
      %18 = vsyncadd [#allocation3], %s17
      %s19 = sshll.u32 [#allocation2], 4
      %s20 = int_to_ptr.vmem [resolvable:$true] %s19
      %25 = dma.hbm_to_vmem [thread:$0]  %s1, 8192, %s20, [#allocation3], 512, 512, 32
    $region9: #{tmson_forward.1} parent=1 // pred_fallthru
      _
    // Predicated region
    $region10: #{tmson_forward.1} parent=1 // pred_check
      _
    $region11: #{tmson_forward.1} parent=1 // pred_check_branch
      %27 = sbr.rel (0) target = $region13
    $region12: #{tmson_forward.1} parent=1 // pred_region
      %s29 = ssub.s32 27648, 27648
      %30 = vsyncadd [#allocation5], %s29
      %s31 = sshll.u32 [#allocation4], 4
      %s32 = int_to_ptr.vmem [resolvable:$true] %s31
      %37 = dma.hbm_to_vmem [thread:$0]  %s2, 27648, %s32, [#allocation5], 576, 576, 36
    $region13: #{tmson_forward.1} parent=1 // pred_fallthru
      _
    // Predicated region
    $region14: #{tmson_forward.1} parent=1 // pred_check
      _
    $region15: #{tmson_forward.1} parent=1 // pred_check_branch
      %39 = sbr.rel (0) target = $region17
    $region16: #{tmson_forward.1} parent=1 // pred_region
      _
    $region17: #{tmson_forward.1} parent=1 // pred_fallthru
      _
    // Predicated region
    $region18: #{tmson_forward.1} parent=1 // pred_check
      _
    $region19: #{tmson_forward.1} parent=1 // pred_check_branch
      %41 = sbr.rel (0) target = $region21
    $region20: #{tmson_forward.1} parent=1 // pred_region
      _
    $region21: #{tmson_forward.1} parent=1 // pred_fallthru
      _
    // Predicated region
    $region22: #{tmson_forward.1} parent=1 // pred_check
      _
    $region23: #{tmson_forward.1} parent=1 // pred_check_branch
      %43 = sbr.rel (0) target = $region25
    $region24: #{tmson_forward.1} parent=1 // pred_region
      %44 = dma.done [#allocation3], 8192
    $region25: #{tmson_forward.1} parent=1 // pred_fallthru
      _
    // Predicated region
    $region26: #{tmson_forward.1} parent=1 // pred_check
      _
    $region27: #{tmson_forward.1} parent=1 // pred_check_branch
      %46 = sbr.rel (0) target = $region29
    $region28: #{tmson_forward.1} parent=1 // pred_region
      %47 = dma.done [#allocation5], 27648
    $region29: #{tmson_forward.1} parent=1 // pred_fallthru
      _
    %v49 = vld [vmem:[%s0] sm:$0xff]
    %v50 = vld [vmem:[%s0 + $0x8] sm:$0xff]
    %v51 = vld [vmem:[%s0 + $0x10] sm:$0xff]
    %v52 = vld [vmem:[%s0 + $0x18] sm:$0xff]
    %v53 = vld [vmem:[%s0 + $0x30] sm:$0xff]
    %v54 = vld [vmem:[%s0 + $0x48] sm:$0xff]
    %v55 = vld [vmem:[%s0 + $0x60] sm:$0xff]
    %v56 = vld [vmem:[%s0 + $0x78] sm:$0xff]
    %v57 = vld [vmem:[%s0 + $0x90] sm:$0xff]
    %v58 = vld [vmem:[%s0 + $0xa8] sm:$0xff]
    %v59 = vld [vmem:[#allocation2] sm:$0xff]
    %v60 = vld [vmem:[#allocation2 + $0x8] sm:$0xff]
    %v61 = vld [vmem:[#allocation2 + $0x20] sm:$0xff]
    %v62 = vld [vmem:[#allocation2 + $0x28] sm:$0xff]
    %v63 = vld [vmem:[#allocation2 + $0x40] sm:$0xff]
    %v64 = vld [vmem:[#allocation2 + $0x48] sm:$0xff]
    %v65 = vld [vmem:[#allocation2 + $0x60] sm:$0xff]
    %v66 = vld [vmem:[#allocation2 + $0x68] sm:$0xff]
    %v67 = vld [vmem:[#allocation2 + $0x80] sm:$0xff]
    %v68 = vld [vmem:[#allocation2 + $0x88] sm:$0xff]
    %v69 = vld [vmem:[#allocation2 + $0xa0] sm:$0xff]
    %v70 = vld [vmem:[#allocation2 + $0xa8] sm:$0xff]
    %v71 = vld [vmem:[#allocation2 + $0xc0] sm:$0xff]
    %v72 = vld [vmem:[#allocation2 + $0xc8] sm:$0xff]
    %v73 = vld [vmem:[#allocation2 + $0xe0] sm:$0xff]
    %v74 = vld [vmem:[#allocation2 + $0xe8] sm:$0xff]
    %v75 = vld [vmem:[#allocation2 + $0x100] sm:$0xff]
    %v76 = vld [vmem:[#allocation2 + $0x108] sm:$0xff]
    %v77 = vld [vmem:[#allocation2 + $0x120] sm:$0xff]
    %v78 = vld [vmem:[#allocation2 + $0x128] sm:$0xff]
    %v79 = vld [vmem:[#allocation2 + $0x140] sm:$0xff]
    %v80 = vld [vmem:[#allocation2 + $0x148] sm:$0xff]
    %v81 = vld [vmem:[#allocation2 + $0x160] sm:$0xff]
    %v82 = vld [vmem:[#allocation2 + $0x168] sm:$0xff]
    %v83 = vld [vmem:[#allocation2 + $0x180] sm:$0xff]
    %v84 = vld [vmem:[#allocation2 + $0x188] sm:$0xff]
    %v85 = vld [vmem:[#allocation2 + $0x1a0] sm:$0xff]
    %v86 = vld [vmem:[#allocation2 + $0x1a8] sm:$0xff]
    %v87 = vld [vmem:[#allocation2 + $0x1c0] sm:$0xff]
    %v88 = vld [vmem:[#allocation2 + $0x1c8] sm:$0xff]
    %v89 = vld [vmem:[#allocation2 + $0x1e0] sm:$0xff]
    %v90 = vld [vmem:[#allocation2 + $0x1e8] sm:$0xff]
    %v91 = vld [vmem:[%s4] sm:$0x3]
    %v93 = vlaneseq
    %v94 = vshrl.u32 %v93, 7
    %v95 = vsub.s32 0, %v94
    %v96 = vrot.slane %v91, %v95
    %v97 = vlaneseq
    %v98 = vshrl.u32 %v97, 7
    %v99 = vsub.s32 1, %v98
    %v100 = vrot.slane %v91, %v99
    %vm103 = vcmask 523264
    %v105 = vsel %vm103, %v49, 0
    %v108 = vsel %vm103, %v52, 0
    %v111 = vsel %vm103, %v53, 0
    %v114 = vsel %vm103, %v54, 0
    %v117 = vsel %vm103, %v55, 0
    %v120 = vsel %vm103, %v56, 0
    %v123 = vsel %vm103, %v57, 0
    %v126 = vsel %vm103, %v58, 0
    %128 = vmatprep.subr.mxu0 %v60
    %129 = vmatpush1.msra.mxu0 %v59
    %130 = vmatprep.subr.mxu0 %v62
    %131 = vmatpush1.msra.mxu0 %v61
    %132 = vmatprep.subr.mxu0 %v64
    %133 = vmatpush1.msra.mxu0 %v63
    %134 = vmatprep.subr.mxu0 %v66
    %135 = vmatpush1.msra.mxu0 %v65
    %136 = vmatprep.subr.mxu0 %v68
    %137 = vmatpush1.msra.mxu0 %v67
    %138 = vmatprep.subr.mxu0 %v70
    %139 = vmatpush1.msra.mxu0 %v69
    %140 = vmatprep.subr.mxu0 %v72
    %141 = vmatpush1.msra.mxu0 %v71
    %142 = vmatprep.subr.mxu0 %v74
    %143 = vmatpush1.msra.mxu0 %v73
    %144 = vmatprep.subr.mxu0 0.0
    %145 = vmatpush1.msra.mxu0 0.0
    %146 = vmatprep.subr.mxu0 0.0
    %147 = vmatpush1.msra.mxu0 0.0
    %148 = vmatprep.subr.mxu0 0.0
    %149 = vmatpush1.msra.mxu0 0.0
    %150 = vmatprep.subr.mxu0 0.0
    %151 = vmatpush1.msra.mxu0 0.0
    %152 = vmatprep.subr.mxu0 0.0
    %153 = vmatpush1.msra.mxu0 0.0
    %154 = vmatprep.subr.mxu0 0.0
    %155 = vmatpush1.msra.mxu0 0.0
    %156 = vmatprep.subr.mxu0 0.0
    %157 = vmatpush1.msra.mxu0 0.0
    %158 = vmatprep.subr.mxu0 0.0
    %159 = vmatpush1.msra.mxu0 0.0
    %160 = vmatprep.subr.mxu0 0.0
    %161 = vmatpush1.msra.mxu0 0.0
    %162 = vmatprep.subr.mxu0 0.0
    %163 = vmatpush1.msra.mxu0 0.0
    %164 = vmatprep.subr.mxu0 0.0
    %165 = vmatpush1.msra.mxu0 0.0
    %166 = vmatprep.subr.mxu0 0.0
    %167 = vmatpush1.msra.mxu0 0.0
    %168 = vmatprep.subr.mxu0 0.0
    %169 = vmatpush1.msra.mxu0 0.0
    %170 = vmatprep.subr.mxu0 0.0
    %171 = vmatpush1.msra.mxu0 0.0
    %172 = vmatprep.subr.mxu0 0.0
    %173 = vmatpush1.msra.mxu0 0.0
    %174 = vmatprep.subr.mxu0 0.0
    %175 = vmatpush1.msra.mxu0 0.0
    %176 = vmatprep.subr.mxu0 0.0
    %177 = vmatpush1.msra.mxu0 0.0
    %178 = vmatprep.subr.mxu0 0.0
    %179 = vmatpush1.msra.mxu0 0.0
    %180 = vmatprep.subr.mxu0 0.0
    %181 = vmatpush1.msra.mxu0 0.0
    %182 = vmatprep.subr.mxu0 0.0
    %183 = vmatpush1.msra.mxu0 0.0
    %184 = vmatprep.subr.mxu0 0.0
    %185 = vmatpush1.msra.mxu0 0.0
    %186 = vmatprep.subr.mxu0 0.0
    %187 = vmatpush1.msra.mxu0 0.0
    %188 = vmatprep.subr.mxu0 0.0
    %189 = vmatpush1.msra.mxu0 0.0
    %190 = vmatprep.subr.mxu0 0.0
    %191 = vmatpush1.msra.mxu0 0.0
    %192 = vmatprep.mubr.f32.mxu0 0.0
    %193 = vmatmul.mubr.f32.gmra.mrb[0].mxu0 %v105
    %v194 = vpop.f32.mrb[0].mxu0
    %v195 = vadd.f32 %v96, %v194
    %v196 = vpop.f32.mrb[0].mxu0
    %v197 = vadd.f32 %v100, %v196
    %198 = vmatprep.mubr.f32.mxu0 0.0
    %199 = vmatmul.mubr.f32.gmra.mrb[0].mxu0 %v108
    %v200 = vpop.f32.mrb[0].mxu0
    %v201 = vadd.f32 %v96, %v200
    %v202 = vpop.f32.mrb[0].mxu0
    %v203 = vadd.f32 %v100, %v202
    %204 = vmatprep.mubr.f32.mxu0 0.0
    %205 = vmatmul.mubr.f32.gmra.mrb[0].mxu0 %v111
    %v206 = vpop.f32.mrb[0].mxu0
    %v207 = vadd.f32 %v96, %v206
    %v208 = vpop.f32.mrb[0].mxu0
    %v209 = vadd.f32 %v100, %v208
    %210 = vmatprep.mubr.f32.mxu0 0.0
    %211 = vmatmul.mubr.f32.gmra.mrb[0].mxu0 %v114
    %v212 = vpop.f32.mrb[0].mxu0
    %v213 = vadd.f32 %v96, %v212
    %v214 = vpop.f32.mrb[0].mxu0
    %v215 = vadd.f32 %v100, %v214
    %216 = vmatprep.mubr.f32.mxu0 0.0
    %217 = vmatmul.mubr.f32.gmra.mrb[0].mxu0 %v117
    %v218 = vpop.f32.mrb[0].mxu0
    %v219 = vadd.f32 %v96, %v218
    %v220 = vpop.f32.mrb[0].mxu0
    %v221 = vadd.f32 %v100, %v220
    %222 = vmatprep.mubr.f32.mxu0 0.0
    %223 = vmatmul.mubr.f32.gmra.mrb[0].mxu0 %v120
    %v224 = vpop.f32.mrb[0].mxu0
    %v225 = vadd.f32 %v96, %v224
    %v226 = vpop.f32.mrb[0].mxu0
    %v227 = vadd.f32 %v100, %v226
    %228 = vmatprep.mubr.f32.mxu0 0.0
    %229 = vmatmul.mubr.f32.gmra.mrb[0].mxu0 %v123
    %v230 = vpop.f32.mrb[0].mxu0
    %v231 = vadd.f32 %v96, %v230
    %v232 = vpop.f32.mrb[0].mxu0
    %v233 = vadd.f32 %v100, %v232
    %234 = vmatprep.mubr.f32.mxu0 0.0
    %235 = vmatmul.mubr.f32.gmra.mrb[0].mxu0 %v126
    %v236 = vpop.f32.mrb[0].mxu0
    %v237 = vadd.f32 %v96, %v236
    %v238 = vpop.f32.mrb[0].mxu0
    %v239 = vadd.f32 %v100, %v238
    %240 = vdwg.mxu0
    %v241 = vlaneseq
    %v242 = vand.u32 %v241, 127
    %vm243 = vcmp.lt.s32.totalorder %v242, 32
    %244 = vset.pattern.permute.xlu0 96
    %245 = vperm.xlu0 %244, %v49
    %v246 = vpop.permute.xlu0 %245
    %248 = vset.pattern.permute.xlu0 97
    %249 = vperm.xlu0 %248, %v49
    %v250 = vpop.permute.xlu0 %249
    %v252 = vsel %vm243, %v246, %v250
    %v254 = vsel %vm103, 0.0, 0
    %256 = vmatprep.subr.mxu0 %v76
    %257 = vmatpush1.msra.mxu0 %v75
    %258 = vmatprep.subr.mxu0 %v78
    %259 = vmatpush1.msra.mxu0 %v77
    %260 = vmatprep.subr.mxu0 %v80
    %261 = vmatpush1.msra.mxu0 %v79
    %262 = vmatprep.subr.mxu0 %v82
    %263 = vmatpush1.msra.mxu0 %v81
    %264 = vmatprep.subr.mxu0 %v84
    %265 = vmatpush1.msra.mxu0 %v83
    %266 = vmatprep.subr.mxu0 %v86
    %267 = vmatpush1.msra.mxu0 %v85
    %268 = vmatprep.subr.mxu0 %v88
    %269 = vmatpush1.msra.mxu0 %v87
    %270 = vmatprep.subr.mxu0 %v90
    %271 = vmatpush1.msra.mxu0 %v89
    %272 = vmatprep.subr.mxu0 0.0
    %273 = vmatpush1.msra.mxu0 0.0
    %274 = vmatprep.subr.mxu0 0.0
    %275 = vmatpush1.msra.mxu0 0.0
    %276 = vmatprep.subr.mxu0 0.0
    %277 = vmatpush1.msra.mxu0 0.0
    %278 = vmatprep.subr.mxu0 0.0
    %279 = vmatpush1.msra.mxu0 0.0
    %280 = vmatprep.subr.mxu0 0.0
    %281 = vmatpush1.msra.mxu0 0.0
    %282 = vmatprep.subr.mxu0 0.0
    %283 = vmatpush1.msra.mxu0 0.0
    %284 = vmatprep.subr.mxu0 0.0
    %285 = vmatpush1.msra.mxu0 0.0
    %286 = vmatprep.subr.mxu0 0.0
    %287 = vmatpush1.msra.mxu0 0.0
    %288 = vmatprep.subr.mxu0 0.0
    %289 = vmatpush1.msra.mxu0 0.0
    %290 = vmatprep.subr.mxu0 0.0
    %291 = vmatpush1.msra.mxu0 0.0
    %292 = vmatprep.subr.mxu0 0.0
    %293 = vmatpush1.msra.mxu0 0.0
    %294 = vmatprep.subr.mxu0 0.0
    %295 = vmatpush1.msra.mxu0 0.0
    %296 = vmatprep.subr.mxu0 0.0
    %297 = vmatpush1.msra.mxu0 0.0
    %298 = vmatprep.subr.mxu0 0.0
    %299 = vmatpush1.msra.mxu0 0.0
    %300 = vmatprep.subr.mxu0 0.0
    %301 = vmatpush1.msra.mxu0 0.0
    %302 = vmatprep.subr.mxu0 0.0
    %303 = vmatpush1.msra.mxu0 0.0
    %304 = vmatprep.subr.mxu0 0.0
    %305 = vmatpush1.msra.mxu0 0.0
    %306 = vmatprep.subr.mxu0 0.0
    %307 = vmatpush1.msra.mxu0 0.0
    %308 = vmatprep.subr.mxu0 0.0
    %309 = vmatpush1.msra.mxu0 0.0
    %310 = vmatprep.subr.mxu0 0.0
    %311 = vmatpush1.msra.mxu0 0.0
    %312 = vmatprep.subr.mxu0 0.0
    %313 = vmatpush1.msra.mxu0 0.0
    %314 = vmatprep.subr.mxu0 0.0
    %315 = vmatpush1.msra.mxu0 0.0
    %316 = vmatprep.subr.mxu0 0.0
    %317 = vmatpush1.msra.mxu0 0.0
    %318 = vmatprep.subr.mxu0 0.0
    %319 = vmatpush1.msra.mxu0 0.0
    %320 = vmatprep.mubr.f32.mxu0 0.0
    %321 = vmatmul.mubr.f32.gmra.mrb[0].mxu0 %v254
    %v322 = vpop.f32.mrb[0].mxu0
    %v323 = vadd.f32 0.0, %v322
    %v324 = vpop.f32.mrb[0].mxu0
    %v325 = vadd.f32 0.0, %v324
    %326 = vdwg.mxu0
    %v327 = vadd.f32 %v195, %v323
    %v328 = vadd.f32 %v197, %v325
    %v329 = vxor.u32 %v327, 2147483648
    %v330 = vmul.f32 %v329, 1.442695
    %v331 = vpow.pop %v330
    %v332 = vadd.f32 %v331, 1.0
    %v333 = vrcp.pop %v332
    %v334 = vmul.f32 1.0, %v333
    %v335 = vtanh.pop %v328
    %v336 = vxor.u32 %v328, 2147483648
    %v337 = vmul.f32 %v336, 1.442695
    %v338 = vpow.pop %v337
    %v339 = vadd.f32 %v338, 1.0
    %v340 = vrcp.pop %v339
    %v341 = vmul.f32 1.0, %v340
    %v342 = vmul.f32 %v334, 0.0
    %v343 = vmul.f32 %v334, %v335
    %345 = vrot.lane.b32.xlu0 %v343, 64
    %v346 = vpop.permute.xlu0 %345
    %v348 = vadd.f32 %v342, %v346
    %v349 = vtanh.pop %v348
    %v350 = vmul.f32 %v341, %v349
    %vm351 = vcmp.gt.f32.partialorder %v252, 0.0
    %353 = vrot.lane.b32.xlu0 %v350, 64
    %v354 = vpop.permute.xlu0 %353
    %v356 = vsel %vm351, %v354, 0.0
    %358 = vrot.lane.b32.xlu0 %v348, 64
    %v359 = vpop.permute.xlu0 %358
    %v361 = vsel %vm351, %v359, 0.0
    %v363 = vsel %vm103, %v356, 0
    %365 = vmatprep.subr.mxu0 %v76
    %366 = vmatpush1.msra.mxu0 %v75
    %367 = vmatprep.subr.mxu0 %v78
    %368 = vmatpush1.msra.mxu0 %v77
    %369 = vmatprep.subr.mxu0 %v80
    %370 = vmatpush1.msra.mxu0 %v79
    %371 = vmatprep.subr.mxu0 %v82
    %372 = vmatpush1.msra.mxu0 %v81
    %373 = vmatprep.subr.mxu0 %v84
    %374 = vmatpush1.msra.mxu0 %v83
    %375 = vmatprep.subr.mxu0 %v86
    %376 = vmatpush1.msra.mxu0 %v85
    %377 = vmatprep.subr.mxu0 %v88
    %378 = vmatpush1.msra.mxu0 %v87
    %379 = vmatprep.subr.mxu0 %v90
    %380 = vmatpush1.msra.mxu0 %v89
    %381 = vmatprep.subr.mxu0 0.0
    %382 = vmatpush1.msra.mxu0 0.0
    %383 = vmatprep.subr.mxu0 0.0
    %384 = vmatpush1.msra.mxu0 0.0
    %385 = vmatprep.subr.mxu0 0.0
    %386 = vmatpush1.msra.mxu0 0.0
    %387 = vmatprep.subr.mxu0 0.0
    %388 = vmatpush1.msra.mxu0 0.0
    %389 = vmatprep.subr.mxu0 0.0
    %390 = vmatpush1.msra.mxu0 0.0
    %391 = vmatprep.subr.mxu0 0.0
    %392 = vmatpush1.msra.mxu0 0.0
    %393 = vmatprep.subr.mxu0 0.0
    %394 = vmatpush1.msra.mxu0 0.0
    %395 = vmatprep.subr.mxu0 0.0
    %396 = vmatpush1.msra.mxu0 0.0
    %397 = vmatprep.subr.mxu0 0.0
    %398 = vmatpush1.msra.mxu0 0.0
    %399 = vmatprep.subr.mxu0 0.0
    %400 = vmatpush1.msra.mxu0 0.0
    %401 = vmatprep.subr.mxu0 0.0
    %402 = vmatpush1.msra.mxu0 0.0
    %403 = vmatprep.subr.mxu0 0.0
    %404 = vmatpush1.msra.mxu0 0.0
    %405 = vmatprep.subr.mxu0 0.0
    %406 = vmatpush1.msra.mxu0 0.0
    %407 = vmatprep.subr.mxu0 0.0
    %408 = vmatpush1.msra.mxu0 0.0
    %409 = vmatprep.subr.mxu0 0.0
    %410 = vmatpush1.msra.mxu0 0.0
    %411 = vmatprep.subr.mxu0 0.0
    %412 = vmatpush1.msra.mxu0 0.0
    %413 = vmatprep.subr.mxu0 0.0
    %414 = vmatpush1.msra.mxu0 0.0
    %415 = vmatprep.subr.mxu0 0.0
    %416 = vmatpush1.msra.mxu0 0.0
    %417 = vmatprep.subr.mxu0 0.0
    %418 = vmatpush1.msra.mxu0 0.0
    %419 = vmatprep.subr.mxu0 0.0
    %420 = vmatpush1.msra.mxu0 0.0
    %421 = vmatprep.subr.mxu0 0.0
    %422 = vmatpush1.msra.mxu0 0.0
    %423 = vmatprep.subr.mxu0 0.0
    %424 = vmatpush1.msra.mxu0 0.0
    %425 = vmatprep.subr.mxu0 0.0
    %426 = vmatpush1.msra.mxu0 0.0
    %427 = vmatprep.subr.mxu0 0.0
    %428 = vmatpush1.msra.mxu0 0.0
    %429 = vmatprep.mubr.f32.mxu0 0.0
    %430 = vmatmul.mubr.f32.gmra.mrb[0].mxu0 %v363
    %v431 = vpop.f32.mrb[0].mxu0
    %v432 = vadd.f32 0.0, %v431
    %v433 = vpop.f32.mrb[0].mxu0
    %v434 = vadd.f32 0.0, %v433
    %435 = vdwg.mxu0
    %v436 = vadd.f32 %v201, %v432
    %v437 = vadd.f32 %v203, %v434
    %v438 = vxor.u32 %v436, 2147483648
    %v439 = vmul.f32 %v438, 1.442695
    %v440 = vpow.pop %v439
    %v441 = vadd.f32 %v440, 1.0
    %v442 = vrcp.pop %v441
    %v443 = vmul.f32 1.0, %v442
    %v444 = vtanh.pop %v437
    %v445 = vxor.u32 %v437, 2147483648
    %v446 = vmul.f32 %v445, 1.442695
    %v447 = vpow.pop %v446
    %v448 = vadd.f32 %v447, 1.0
    %v449 = vrcp.pop %v448
    %v450 = vmul.f32 1.0, %v449
    %452 = vrot.lane.b32.xlu0 %v361, 64
    %v453 = vpop.permute.xlu0 %452
    %v455 = vmul.f32 %v443, %v453
    %v456 = vmul.f32 %v443, %v444
    %458 = vrot.lane.b32.xlu0 %v456, 64
    %v459 = vpop.permute.xlu0 %458
    %v461 = vadd.f32 %v455, %v459
    %v462 = vtanh.pop %v461
    %v463 = vmul.f32 %v450, %v462
    %vm464 = vcmp.gt.f32.partialorder %v252, 1.0
    %466 = vrot.lane.b32.xlu0 %v463, 64
    %v467 = vpop.permute.xlu0 %466
    %v469 = vsel %vm464, %v467, %v356
    %471 = vrot.lane.b32.xlu0 %v461, 64
    %v472 = vpop.permute.xlu0 %471
    %v474 = vsel %vm464, %v472, %v361
    %v476 = vsel %vm103, %v469, 0
    %478 = vmatprep.subr.mxu0 %v76
    %479 = vmatpush1.msra.mxu0 %v75
    %480 = vmatprep.subr.mxu0 %v78
    %481 = vmatpush1.msra.mxu0 %v77
    %482 = vmatprep.subr.mxu0 %v80
    %483 = vmatpush1.msra.mxu0 %v79
    %484 = vmatprep.subr.mxu0 %v82
    %485 = vmatpush1.msra.mxu0 %v81
    %486 = vmatprep.subr.mxu0 %v84
    %487 = vmatpush1.msra.mxu0 %v83
    %488 = vmatprep.subr.mxu0 %v86
    %489 = vmatpush1.msra.mxu0 %v85
    %490 = vmatprep.subr.mxu0 %v88
    %491 = vmatpush1.msra.mxu0 %v87
    %492 = vmatprep.subr.mxu0 %v90
    %493 = vmatpush1.msra.mxu0 %v89
    %494 = vmatprep.subr.mxu0 0.0
    %495 = vmatpush1.msra.mxu0 0.0
    %496 = vmatprep.subr.mxu0 0.0
    %497 = vmatpush1.msra.mxu0 0.0
    %498 = vmatprep.subr.mxu0 0.0
    %499 = vmatpush1.msra.mxu0 0.0
    %500 = vmatprep.subr.mxu0 0.0
    %501 = vmatpush1.msra.mxu0 0.0
    %502 = vmatprep.subr.mxu0 0.0
    %503 = vmatpush1.msra.mxu0 0.0
    %504 = vmatprep.subr.mxu0 0.0
    %505 = vmatpush1.msra.mxu0 0.0
    %506 = vmatprep.subr.mxu0 0.0
    %507 = vmatpush1.msra.mxu0 0.0
    %508 = vmatprep.subr.mxu0 0.0
    %509 = vmatpush1.msra.mxu0 0.0
    %510 = vmatprep.subr.mxu0 0.0
    %511 = vmatpush1.msra.mxu0 0.0
    %512 = vmatprep.subr.mxu0 0.0
    %513 = vmatpush1.msra.mxu0 0.0
    %514 = vmatprep.subr.mxu0 0.0
    %515 = vmatpush1.msra.mxu0 0.0
    %516 = vmatprep.subr.mxu0 0.0
    %517 = vmatpush1.msra.mxu0 0.0
    %518 = vmatprep.subr.mxu0 0.0
    %519 = vmatpush1.msra.mxu0 0.0
    %520 = vmatprep.subr.mxu0 0.0
    %521 = vmatpush1.msra.mxu0 0.0
    %522 = vmatprep.subr.mxu0 0.0
    %523 = vmatpush1.msra.mxu0 0.0
    %524 = vmatprep.subr.mxu0 0.0
    %525 = vmatpush1.msra.mxu0 0.0
    %526 = vmatprep.subr.mxu0 0.0
    %527 = vmatpush1.msra.mxu0 0.0
    %528 = vmatprep.subr.mxu0 0.0
    %529 = vmatpush1.msra.mxu0 0.0
    %530 = vmatprep.subr.mxu0 0.0
    %531 = vmatpush1.msra.mxu0 0.0
    %532 = vmatprep.subr.mxu0 0.0
    %533 = vmatpush1.msra.mxu0 0.0
    %534 = vmatprep.subr.mxu0 0.0
    %535 = vmatpush1.msra.mxu0 0.0
    %536 = vmatprep.subr.mxu0 0.0
    %537 = vmatpush1.msra.mxu0 0.0
    %538 = vmatprep.subr.mxu0 0.0
    %539 = vmatpush1.msra.mxu0 0.0
    %540 = vmatprep.subr.mxu0 0.0
    %541 = vmatpush1.msra.mxu0 0.0
    %542 = vmatprep.mubr.f32.mxu0 0.0
    %543 = vmatmul.mubr.f32.gmra.mrb[0].mxu0 %v476
    %v544 = vpop.f32.mrb[0].mxu0
    %v545 = vadd.f32 0.0, %v544
    %v546 = vpop.f32.mrb[0].mxu0
    %v547 = vadd.f32 0.0, %v546
    %548 = vdwg.mxu0
    %v549 = vadd.f32 %v207, %v545
    %v550 = vadd.f32 %v209, %v547
    %v551 = vxor.u32 %v549, 2147483648
    %v552 = vmul.f32 %v551, 1.442695
    %v553 = vpow.pop %v552
    %v554 = vadd.f32 %v553, 1.0
    %v555 = vrcp.pop %v554
    %v556 = vmul.f32 1.0, %v555
    %v557 = vtanh.pop %v550
    %v558 = vxor.u32 %v550, 2147483648
    %v559 = vmul.f32 %v558, 1.442695
    %v560 = vpow.pop %v559
    %v561 = vadd.f32 %v560, 1.0
    %v562 = vrcp.pop %v561
    %v563 = vmul.f32 1.0, %v562
    %565 = vrot.lane.b32.xlu0 %v474, 64
    %v566 = vpop.permute.xlu0 %565
    %v568 = vmul.f32 %v556, %v566
    %v569 = vmul.f32 %v556, %v557
    %571 = vrot.lane.b32.xlu0 %v569, 64
    %v572 = vpop.permute.xlu0 %571
    %v574 = vadd.f32 %v568, %v572
    %v575 = vtanh.pop %v574
    %v576 = vmul.f32 %v563, %v575
    %vm577 = vcmp.gt.f32.partialorder %v252, 2.0
    %579 = vrot.lane.b32.xlu0 %v576, 64
    %v580 = vpop.permute.xlu0 %579
    %v582 = vsel %vm577, %v580, %v469
    %584 = vrot.lane.b32.xlu0 %v574, 64
    %v585 = vpop.permute.xlu0 %584
    %v587 = vsel %vm577, %v585, %v474
    %v589 = vsel %vm103, %v582, 0
    %591 = vmatprep.subr.mxu0 %v76
    %592 = vmatpush1.msra.mxu0 %v75
    %593 = vmatprep.subr.mxu0 %v78
    %594 = vmatpush1.msra.mxu0 %v77
    %595 = vmatprep.subr.mxu0 %v80
    %596 = vmatpush1.msra.mxu0 %v79
    %597 = vmatprep.subr.mxu0 %v82
    %598 = vmatpush1.msra.mxu0 %v81
    %599 = vmatprep.subr.mxu0 %v84
    %600 = vmatpush1.msra.mxu0 %v83
    %601 = vmatprep.subr.mxu0 %v86
    %602 = vmatpush1.msra.mxu0 %v85
    %603 = vmatprep.subr.mxu0 %v88
    %604 = vmatpush1.msra.mxu0 %v87
    %605 = vmatprep.subr.mxu0 %v90
    %606 = vmatpush1.msra.mxu0 %v89
    %607 = vmatprep.subr.mxu0 0.0
    %608 = vmatpush1.msra.mxu0 0.0
    %609 = vmatprep.subr.mxu0 0.0
    %610 = vmatpush1.msra.mxu0 0.0
    %611 = vmatprep.subr.mxu0 0.0
    %612 = vmatpush1.msra.mxu0 0.0
    %613 = vmatprep.subr.mxu0 0.0
    %614 = vmatpush1.msra.mxu0 0.0
    %615 = vmatprep.subr.mxu0 0.0
    %616 = vmatpush1.msra.mxu0 0.0
    %617 = vmatprep.subr.mxu0 0.0
    %618 = vmatpush1.msra.mxu0 0.0
    %619 = vmatprep.subr.mxu0 0.0
    %620 = vmatpush1.msra.mxu0 0.0
    %621 = vmatprep.subr.mxu0 0.0
    %622 = vmatpush1.msra.mxu0 0.0
    %623 = vmatprep.subr.mxu0 0.0
    %624 = vmatpush1.msra.mxu0 0.0
    %625 = vmatprep.subr.mxu0 0.0
    %626 = vmatpush1.msra.mxu0 0.0
    %627 = vmatprep.subr.mxu0 0.0
    %628 = vmatpush1.msra.mxu0 0.0
    %629 = vmatprep.subr.mxu0 0.0
    %630 = vmatpush1.msra.mxu0 0.0
    %631 = vmatprep.subr.mxu0 0.0
    %632 = vmatpush1.msra.mxu0 0.0
    %633 = vmatprep.subr.mxu0 0.0
    %634 = vmatpush1.msra.mxu0 0.0
    %635 = vmatprep.subr.mxu0 0.0
    %636 = vmatpush1.msra.mxu0 0.0
    %637 = vmatprep.subr.mxu0 0.0
    %638 = vmatpush1.msra.mxu0 0.0
    %639 = vmatprep.subr.mxu0 0.0
    %640 = vmatpush1.msra.mxu0 0.0
    %641 = vmatprep.subr.mxu0 0.0
    %642 = vmatpush1.msra.mxu0 0.0
    %643 = vmatprep.subr.mxu0 0.0
    %644 = vmatpush1.msra.mxu0 0.0
    %645 = vmatprep.subr.mxu0 0.0
    %646 = vmatpush1.msra.mxu0 0.0
    %647 = vmatprep.subr.mxu0 0.0
    %648 = vmatpush1.msra.mxu0 0.0
    %649 = vmatprep.subr.mxu0 0.0
    %650 = vmatpush1.msra.mxu0 0.0
    %651 = vmatprep.subr.mxu0 0.0
    %652 = vmatpush1.msra.mxu0 0.0
    %653 = vmatprep.subr.mxu0 0.0
    %654 = vmatpush1.msra.mxu0 0.0
    %655 = vmatprep.mubr.f32.mxu0 0.0
    %656 = vmatmul.mubr.f32.gmra.mrb[0].mxu0 %v589
    %v657 = vpop.f32.mrb[0].mxu0
    %v658 = vadd.f32 0.0, %v657
    %v659 = vpop.f32.mrb[0].mxu0
    %v660 = vadd.f32 0.0, %v659
    %661 = vdwg.mxu0
    %v662 = vadd.f32 %v213, %v658
    %v663 = vadd.f32 %v215, %v660
    %v664 = vxor.u32 %v662, 2147483648
    %v665 = vmul.f32 %v664, 1.442695
    %v666 = vpow.pop %v665
    %v667 = vadd.f32 %v666, 1.0
    %v668 = vrcp.pop %v667
    %v669 = vmul.f32 1.0, %v668
    %v670 = vtanh.pop %v663
    %v671 = vxor.u32 %v663, 2147483648
    %v672 = vmul.f32 %v671, 1.442695
    %v673 = vpow.pop %v672
    %v674 = vadd.f32 %v673, 1.0
    %v675 = vrcp.pop %v674
    %v676 = vmul.f32 1.0, %v675
    %678 = vrot.lane.b32.xlu0 %v587, 64
    %v679 = vpop.permute.xlu0 %678
    %v681 = vmul.f32 %v669, %v679
    %v682 = vmul.f32 %v669, %v670
    %684 = vrot.lane.b32.xlu0 %v682, 64
    %v685 = vpop.permute.xlu0 %684
    %v687 = vadd.f32 %v681, %v685
    %v688 = vtanh.pop %v687
    %v689 = vmul.f32 %v676, %v688
    %vm690 = vcmp.gt.f32.partialorder %v252, 3.0
    %692 = vrot.lane.b32.xlu0 %v689, 64
    %v693 = vpop.permute.xlu0 %692
    %v695 = vsel %vm690, %v693, %v582
    %697 = vrot.lane.b32.xlu0 %v687, 64
    %v698 = vpop.permute.xlu0 %697
    %v700 = vsel %vm690, %v698, %v587
    %v702 = vsel %vm103, %v695, 0
    %704 = vmatprep.subr.mxu0 %v76
    %705 = vmatpush1.msra.mxu0 %v75
    %706 = vmatprep.subr.mxu0 %v78
    %707 = vmatpush1.msra.mxu0 %v77
    %708 = vmatprep.subr.mxu0 %v80
    %709 = vmatpush1.msra.mxu0 %v79
    %710 = vmatprep.subr.mxu0 %v82
    %711 = vmatpush1.msra.mxu0 %v81
    %712 = vmatprep.subr.mxu0 %v84
    %713 = vmatpush1.msra.mxu0 %v83
    %714 = vmatprep.subr.mxu0 %v86
    %715 = vmatpush1.msra.mxu0 %v85
    %716 = vmatprep.subr.mxu0 %v88
    %717 = vmatpush1.msra.mxu0 %v87
    %718 = vmatprep.subr.mxu0 %v90
    %719 = vmatpush1.msra.mxu0 %v89
    %720 = vmatprep.subr.mxu0 0.0
    %721 = vmatpush1.msra.mxu0 0.0
    %722 = vmatprep.subr.mxu0 0.0
    %723 = vmatpush1.msra.mxu0 0.0
    %724 = vmatprep.subr.mxu0 0.0
    %725 = vmatpush1.msra.mxu0 0.0
    %726 = vmatprep.subr.mxu0 0.0
    %727 = vmatpush1.msra.mxu0 0.0
    %728 = vmatprep.subr.mxu0 0.0
    %729 = vmatpush1.msra.mxu0 0.0
    %730 = vmatprep.subr.mxu0 0.0
    %731 = vmatpush1.msra.mxu0 0.0
    %732 = vmatprep.subr.mxu0 0.0
    %733 = vmatpush1.msra.mxu0 0.0
    %734 = vmatprep.subr.mxu0 0.0
    %735 = vmatpush1.msra.mxu0 0.0
    %736 = vmatprep.subr.mxu0 0.0
    %737 = vmatpush1.msra.mxu0 0.0
    %738 = vmatprep.subr.mxu0 0.0
    %739 = vmatpush1.msra.mxu0 0.0
    %740 = vmatprep.subr.mxu0 0.0
    %741 = vmatpush1.msra.mxu0 0.0
    %742 = vmatprep.subr.mxu0 0.0
    %743 = vmatpush1.msra.mxu0 0.0
    %744 = vmatprep.subr.mxu0 0.0
    %745 = vmatpush1.msra.mxu0 0.0
    %746 = vmatprep.subr.mxu0 0.0
    %747 = vmatpush1.msra.mxu0 0.0
    %748 = vmatprep.subr.mxu0 0.0
    %749 = vmatpush1.msra.mxu0 0.0
    %750 = vmatprep.subr.mxu0 0.0
    %751 = vmatpush1.msra.mxu0 0.0
    %752 = vmatprep.subr.mxu0 0.0
    %753 = vmatpush1.msra.mxu0 0.0
    %754 = vmatprep.subr.mxu0 0.0
    %755 = vmatpush1.msra.mxu0 0.0
    %756 = vmatprep.subr.mxu0 0.0
    %757 = vmatpush1.msra.mxu0 0.0
    %758 = vmatprep.subr.mxu0 0.0
    %759 = vmatpush1.msra.mxu0 0.0
    %760 = vmatprep.subr.mxu0 0.0
    %761 = vmatpush1.msra.mxu0 0.0
    %762 = vmatprep.subr.mxu0 0.0
    %763 = vmatpush1.msra.mxu0 0.0
    %764 = vmatprep.subr.mxu0 0.0
    %765 = vmatpush1.msra.mxu0 0.0
    %766 = vmatprep.subr.mxu0 0.0
    %767 = vmatpush1.msra.mxu0 0.0
    %768 = vmatprep.mubr.f32.mxu0 0.0
    %769 = vmatmul.mubr.f32.gmra.mrb[0].mxu0 %v702
    %v770 = vpop.f32.mrb[0].mxu0
    %v771 = vadd.f32 0.0, %v770
    %v772 = vpop.f32.mrb[0].mxu0
    %v773 = vadd.f32 0.0, %v772
    %774 = vdwg.mxu0
    %v775 = vadd.f32 %v219, %v771
    %v776 = vadd.f32 %v221, %v773
    %v777 = vxor.u32 %v775, 2147483648
    %v778 = vmul.f32 %v777, 1.442695
    %v779 = vpow.pop %v778
    %v780 = vadd.f32 %v779, 1.0
    %v781 = vrcp.pop %v780
    %v782 = vmul.f32 1.0, %v781
    %v783 = vtanh.pop %v776
    %v784 = vxor.u32 %v776, 2147483648
    %v785 = vmul.f32 %v784, 1.442695
    %v786 = vpow.pop %v785
    %v787 = vadd.f32 %v786, 1.0
    %v788 = vrcp.pop %v787
    %v789 = vmul.f32 1.0, %v788
    %791 = vrot.lane.b32.xlu0 %v700, 64
    %v792 = vpop.permute.xlu0 %791
    %v794 = vmul.f32 %v782, %v792
    %v795 = vmul.f32 %v782, %v783
    %797 = vrot.lane.b32.xlu0 %v795, 64
    %v798 = vpop.permute.xlu0 %797
    %v800 = vadd.f32 %v794, %v798
    %v801 = vtanh.pop %v800
    %v802 = vmul.f32 %v789, %v801
    %vm803 = vcmp.gt.f32.partialorder %v252, 4.0
    %805 = vrot.lane.b32.xlu0 %v802, 64
    %v806 = vpop.permute.xlu0 %805
    %v808 = vsel %vm803, %v806, %v695
    %810 = vrot.lane.b32.xlu0 %v800, 64
    %v811 = vpop.permute.xlu0 %810
    %v813 = vsel %vm803, %v811, %v700
    %v815 = vsel %vm103, %v808, 0
    %817 = vmatprep.subr.mxu0 %v76
    %818 = vmatpush1.msra.mxu0 %v75
    %819 = vmatprep.subr.mxu0 %v78
    %820 = vmatpush1.msra.mxu0 %v77
    %821 = vmatprep.subr.mxu0 %v80
    %822 = vmatpush1.msra.mxu0 %v79
    %823 = vmatprep.subr.mxu0 %v82
    %824 = vmatpush1.msra.mxu0 %v81
    %825 = vmatprep.subr.mxu0 %v84
    %826 = vmatpush1.msra.mxu0 %v83
    %827 = vmatprep.subr.mxu0 %v86
    %828 = vmatpush1.msra.mxu0 %v85
    %829 = vmatprep.subr.mxu0 %v88
    %830 = vmatpush1.msra.mxu0 %v87
    %831 = vmatprep.subr.mxu0 %v90
    %832 = vmatpush1.msra.mxu0 %v89
    %833 = vmatprep.subr.mxu0 0.0
    %834 = vmatpush1.msra.mxu0 0.0
    %835 = vmatprep.subr.mxu0 0.0
    %836 = vmatpush1.msra.mxu0 0.0
    %837 = vmatprep.subr.mxu0 0.0
    %838 = vmatpush1.msra.mxu0 0.0
    %839 = vmatprep.subr.mxu0 0.0
    %840 = vmatpush1.msra.mxu0 0.0
    %841 = vmatprep.subr.mxu0 0.0
    %842 = vmatpush1.msra.mxu0 0.0
    %843 = vmatprep.subr.mxu0 0.0
    %844 = vmatpush1.msra.mxu0 0.0
    %845 = vmatprep.subr.mxu0 0.0
    %846 = vmatpush1.msra.mxu0 0.0
    %847 = vmatprep.subr.mxu0 0.0
    %848 = vmatpush1.msra.mxu0 0.0
    %849 = vmatprep.subr.mxu0 0.0
    %850 = vmatpush1.msra.mxu0 0.0
    %851 = vmatprep.subr.mxu0 0.0
    %852 = vmatpush1.msra.mxu0 0.0
    %853 = vmatprep.subr.mxu0 0.0
    %854 = vmatpush1.msra.mxu0 0.0
    %855 = vmatprep.subr.mxu0 0.0
    %856 = vmatpush1.msra.mxu0 0.0
    %857 = vmatprep.subr.mxu0 0.0
    %858 = vmatpush1.msra.mxu0 0.0
    %859 = vmatprep.subr.mxu0 0.0
    %860 = vmatpush1.msra.mxu0 0.0
    %861 = vmatprep.subr.mxu0 0.0
    %862 = vmatpush1.msra.mxu0 0.0
    %863 = vmatprep.subr.mxu0 0.0
    %864 = vmatpush1.msra.mxu0 0.0
    %865 = vmatprep.subr.mxu0 0.0
    %866 = vmatpush1.msra.mxu0 0.0
    %867 = vmatprep.subr.mxu0 0.0
    %868 = vmatpush1.msra.mxu0 0.0
    %869 = vmatprep.subr.mxu0 0.0
    %870 = vmatpush1.msra.mxu0 0.0
    %871 = vmatprep.subr.mxu0 0.0
    %872 = vmatpush1.msra.mxu0 0.0
    %873 = vmatprep.subr.mxu0 0.0
    %874 = vmatpush1.msra.mxu0 0.0
    %875 = vmatprep.subr.mxu0 0.0
    %876 = vmatpush1.msra.mxu0 0.0
    %877 = vmatprep.subr.mxu0 0.0
    %878 = vmatpush1.msra.mxu0 0.0
    %879 = vmatprep.subr.mxu0 0.0
    %880 = vmatpush1.msra.mxu0 0.0
    %881 = vmatprep.mubr.f32.mxu0 0.0
    %882 = vmatmul.mubr.f32.gmra.mrb[0].mxu0 %v815
    %v883 = vpop.f32.mrb[0].mxu0
    %v884 = vadd.f32 0.0, %v883
    %v885 = vpop.f32.mrb[0].mxu0
    %v886 = vadd.f32 0.0, %v885
    %887 = vdwg.mxu0
    %v888 = vadd.f32 %v225, %v884
    %v889 = vadd.f32 %v227, %v886
    %v890 = vxor.u32 %v888, 2147483648
    %v891 = vmul.f32 %v890, 1.442695
    %v892 = vpow.pop %v891
    %v893 = vadd.f32 %v892, 1.0
    %v894 = vrcp.pop %v893
    %v895 = vmul.f32 1.0, %v894
    %v896 = vtanh.pop %v889
    %v897 = vxor.u32 %v889, 2147483648
    %v898 = vmul.f32 %v897, 1.442695
    %v899 = vpow.pop %v898
    %v900 = vadd.f32 %v899, 1.0
    %v901 = vrcp.pop %v900
    %v902 = vmul.f32 1.0, %v901
    %904 = vrot.lane.b32.xlu0 %v813, 64
    %v905 = vpop.permute.xlu0 %904
    %v907 = vmul.f32 %v895, %v905
    %v908 = vmul.f32 %v895, %v896
    %910 = vrot.lane.b32.xlu0 %v908, 64
    %v911 = vpop.permute.xlu0 %910
    %v913 = vadd.f32 %v907, %v911
    %v914 = vtanh.pop %v913
    %v915 = vmul.f32 %v902, %v914
    %vm916 = vcmp.gt.f32.partialorder %v252, 5.0
    %918 = vrot.lane.b32.xlu0 %v915, 64
    %v919 = vpop.permute.xlu0 %918
    %v921 = vsel %vm916, %v919, %v808
    %923 = vrot.lane.b32.xlu0 %v913, 64
    %v924 = vpop.permute.xlu0 %923
    %v926 = vsel %vm916, %v924, %v813
    %v928 = vsel %vm103, %v921, 0
    %930 = vmatprep.subr.mxu0 %v76
    %931 = vmatpush1.msra.mxu0 %v75
    %932 = vmatprep.subr.mxu0 %v78
    %933 = vmatpush1.msra.mxu0 %v77
    %934 = vmatprep.subr.mxu0 %v80
    %935 = vmatpush1.msra.mxu0 %v79
    %936 = vmatprep.subr.mxu0 %v82
    %937 = vmatpush1.msra.mxu0 %v81
    %938 = vmatprep.subr.mxu0 %v84
    %939 = vmatpush1.msra.mxu0 %v83
    %940 = vmatprep.subr.mxu0 %v86
    %941 = vmatpush1.msra.mxu0 %v85
    %942 = vmatprep.subr.mxu0 %v88
    %943 = vmatpush1.msra.mxu0 %v87
    %944 = vmatprep.subr.mxu0 %v90
    %945 = vmatpush1.msra.mxu0 %v89
    %946 = vmatprep.subr.mxu0 0.0
    %947 = vmatpush1.msra.mxu0 0.0
    %948 = vmatprep.subr.mxu0 0.0
    %949 = vmatpush1.msra.mxu0 0.0
    %950 = vmatprep.subr.mxu0 0.0
    %951 = vmatpush1.msra.mxu0 0.0
    %952 = vmatprep.subr.mxu0 0.0
    %953 = vmatpush1.msra.mxu0 0.0
    %954 = vmatprep.subr.mxu0 0.0
    %955 = vmatpush1.msra.mxu0 0.0
    %956 = vmatprep.subr.mxu0 0.0
    %957 = vmatpush1.msra.mxu0 0.0
    %958 = vmatprep.subr.mxu0 0.0
    %959 = vmatpush1.msra.mxu0 0.0
    %960 = vmatprep.subr.mxu0 0.0
    %961 = vmatpush1.msra.mxu0 0.0
    %962 = vmatprep.subr.mxu0 0.0
    %963 = vmatpush1.msra.mxu0 0.0
    %964 = vmatprep.subr.mxu0 0.0
    %965 = vmatpush1.msra.mxu0 0.0
    %966 = vmatprep.subr.mxu0 0.0
    %967 = vmatpush1.msra.mxu0 0.0
    %968 = vmatprep.subr.mxu0 0.0
    %969 = vmatpush1.msra.mxu0 0.0
    %970 = vmatprep.subr.mxu0 0.0
    %971 = vmatpush1.msra.mxu0 0.0
    %972 = vmatprep.subr.mxu0 0.0
    %973 = vmatpush1.msra.mxu0 0.0
    %974 = vmatprep.subr.mxu0 0.0
    %975 = vmatpush1.msra.mxu0 0.0
    %976 = vmatprep.subr.mxu0 0.0
    %977 = vmatpush1.msra.mxu0 0.0
    %978 = vmatprep.subr.mxu0 0.0
    %979 = vmatpush1.msra.mxu0 0.0
    %980 = vmatprep.subr.mxu0 0.0
    %981 = vmatpush1.msra.mxu0 0.0
    %982 = vmatprep.subr.mxu0 0.0
    %983 = vmatpush1.msra.mxu0 0.0
    %984 = vmatprep.subr.mxu0 0.0
    %985 = vmatpush1.msra.mxu0 0.0
    %986 = vmatprep.subr.mxu0 0.0
    %987 = vmatpush1.msra.mxu0 0.0
    %988 = vmatprep.subr.mxu0 0.0
    %989 = vmatpush1.msra.mxu0 0.0
    %990 = vmatprep.subr.mxu0 0.0
    %991 = vmatpush1.msra.mxu0 0.0
    %992 = vmatprep.subr.mxu0 0.0
    %993 = vmatpush1.msra.mxu0 0.0
    %994 = vmatprep.mubr.f32.mxu0 0.0
    %995 = vmatmul.mubr.f32.gmra.mrb[0].mxu0 %v928
    %v996 = vpop.f32.mrb[0].mxu0
    %v997 = vadd.f32 0.0, %v996
    %v998 = vpop.f32.mrb[0].mxu0
    %v999 = vadd.f32 0.0, %v998
    %1000 = vdwg.mxu0
    %v1001 = vadd.f32 %v231, %v997
    %v1002 = vadd.f32 %v233, %v999
    %v1003 = vxor.u32 %v1001, 2147483648
    %v1004 = vmul.f32 %v1003, 1.442695
    %v1005 = vpow.pop %v1004
    %v1006 = vadd.f32 %v1005, 1.0
    %v1007 = vrcp.pop %v1006
    %v1008 = vmul.f32 1.0, %v1007
    %v1009 = vtanh.pop %v1002
    %v1010 = vxor.u32 %v1002, 2147483648
    %v1011 = vmul.f32 %v1010, 1.442695
    %v1012 = vpow.pop %v1011
    %v1013 = vadd.f32 %v1012, 1.0
    %v1014 = vrcp.pop %v1013
    %v1015 = vmul.f32 1.0, %v1014
    %1017 = vrot.lane.b32.xlu0 %v926, 64
    %v1018 = vpop.permute.xlu0 %1017
    %v1020 = vmul.f32 %v1008, %v1018
    %v1021 = vmul.f32 %v1008, %v1009
    %1023 = vrot.lane.b32.xlu0 %v1021, 64
    %v1024 = vpop.permute.xlu0 %1023
    %v1026 = vadd.f32 %v1020, %v1024
    %v1027 = vtanh.pop %v1026
    %v1028 = vmul.f32 %v1015, %v1027
    %vm1029 = vcmp.gt.f32.partialorder %v252, 6.0
    %1031 = vrot.lane.b32.xlu0 %v1028, 64
    %v1032 = vpop.permute.xlu0 %1031
    %v1034 = vsel %vm1029, %v1032, %v921
    %1036 = vrot.lane.b32.xlu0 %v1026, 64
    %v1037 = vpop.permute.xlu0 %1036
    %v1039 = vsel %vm1029, %v1037, %v926
    %v1041 = vsel %vm103, %v1034, 0
    %1043 = vmatprep.subr.mxu0 %v76
    %1044 = vmatpush1.msra.mxu0 %v75
    %1045 = vmatprep.subr.mxu0 %v78
    %1046 = vmatpush1.msra.mxu0 %v77
    %1047 = vmatprep.subr.mxu0 %v80
    %1048 = vmatpush1.msra.mxu0 %v79
    %1049 = vmatprep.subr.mxu0 %v82
    %1050 = vmatpush1.msra.mxu0 %v81
    %1051 = vmatprep.subr.mxu0 %v84
    %1052 = vmatpush1.msra.mxu0 %v83
    %1053 = vmatprep.subr.mxu0 %v86
    %1054 = vmatpush1.msra.mxu0 %v85
    %1055 = vmatprep.subr.mxu0 %v88
    %1056 = vmatpush1.msra.mxu0 %v87
    %1057 = vmatprep.subr.mxu0 %v90
    %1058 = vmatpush1.msra.mxu0 %v89
    %1059 = vmatprep.subr.mxu0 0.0
    %1060 = vmatpush1.msra.mxu0 0.0
    %1061 = vmatprep.subr.mxu0 0.0
    %1062 = vmatpush1.msra.mxu0 0.0
    %1063 = vmatprep.subr.mxu0 0.0
    %1064 = vmatpush1.msra.mxu0 0.0
    %1065 = vmatprep.subr.mxu0 0.0
    %1066 = vmatpush1.msra.mxu0 0.0
    %1067 = vmatprep.subr.mxu0 0.0
    %1068 = vmatpush1.msra.mxu0 0.0
    %1069 = vmatprep.subr.mxu0 0.0
    %1070 = vmatpush1.msra.mxu0 0.0
    %1071 = vmatprep.subr.mxu0 0.0
    %1072 = vmatpush1.msra.mxu0 0.0
    %1073 = vmatprep.subr.mxu0 0.0
    %1074 = vmatpush1.msra.mxu0 0.0
    %1075 = vmatprep.subr.mxu0 0.0
    %1076 = vmatpush1.msra.mxu0 0.0
    %1077 = vmatprep.subr.mxu0 0.0
    %1078 = vmatpush1.msra.mxu0 0.0
    %1079 = vmatprep.subr.mxu0 0.0
    %1080 = vmatpush1.msra.mxu0 0.0
    %1081 = vmatprep.subr.mxu0 0.0
    %1082 = vmatpush1.msra.mxu0 0.0
    %1083 = vmatprep.subr.mxu0 0.0
    %1084 = vmatpush1.msra.mxu0 0.0
    %1085 = vmatprep.subr.mxu0 0.0
    %1086 = vmatpush1.msra.mxu0 0.0
    %1087 = vmatprep.subr.mxu0 0.0
    %1088 = vmatpush1.msra.mxu0 0.0
    %1089 = vmatprep.subr.mxu0 0.0
    %1090 = vmatpush1.msra.mxu0 0.0
    %1091 = vmatprep.subr.mxu0 0.0
    %1092 = vmatpush1.msra.mxu0 0.0
    %1093 = vmatprep.subr.mxu0 0.0
    %1094 = vmatpush1.msra.mxu0 0.0
    %1095 = vmatprep.subr.mxu0 0.0
    %1096 = vmatpush1.msra.mxu0 0.0
    %1097 = vmatprep.subr.mxu0 0.0
    %1098 = vmatpush1.msra.mxu0 0.0
    %1099 = vmatprep.subr.mxu0 0.0
    %1100 = vmatpush1.msra.mxu0 0.0
    %1101 = vmatprep.subr.mxu0 0.0
    %1102 = vmatpush1.msra.mxu0 0.0
    %1103 = vmatprep.subr.mxu0 0.0
    %1104 = vmatpush1.msra.mxu0 0.0
    %1105 = vmatprep.subr.mxu0 0.0
    %1106 = vmatpush1.msra.mxu0 0.0
    %1107 = vmatprep.mubr.f32.mxu0 0.0
    %1108 = vmatmul.mubr.f32.gmra.mrb[0].mxu0 %v1041
    %v1109 = vpop.f32.mrb[0].mxu0
    %v1110 = vadd.f32 0.0, %v1109
    %v1111 = vpop.f32.mrb[0].mxu0
    %v1112 = vadd.f32 0.0, %v1111
    %1113 = vdwg.mxu0
    %v1114 = vadd.f32 %v237, %v1110
    %v1115 = vadd.f32 %v239, %v1112
    %v1116 = vxor.u32 %v1114, 2147483648
    %v1117 = vmul.f32 %v1116, 1.442695
    %v1118 = vpow.pop %v1117
    %v1119 = vadd.f32 %v1118, 1.0
    %v1120 = vrcp.pop %v1119
    %v1121 = vmul.f32 1.0, %v1120
    %v1122 = vtanh.pop %v1115
    %v1123 = vxor.u32 %v1115, 2147483648
    %v1124 = vmul.f32 %v1123, 1.442695
    %v1125 = vpow.pop %v1124
    %v1126 = vadd.f32 %v1125, 1.0
    %v1127 = vrcp.pop %v1126
    %v1128 = vmul.f32 1.0, %v1127
    %1130 = vrot.lane.b32.xlu0 %v1039, 64
    %v1131 = vpop.permute.xlu0 %1130
    %v1133 = vmul.f32 %v1121, %v1131
    %v1134 = vmul.f32 %v1121, %v1122
    %1136 = vrot.lane.b32.xlu0 %v1134, 64
    %v1137 = vpop.permute.xlu0 %1136
    %v1139 = vadd.f32 %v1133, %v1137
    %v1140 = vtanh.pop %v1139
    %v1141 = vmul.f32 %v1128, %v1140
    %vm1142 = vcmp.gt.f32.partialorder %v252, 7.0
    %1144 = vrot.lane.b32.xlu0 %v1141, 64
    %v1145 = vpop.permute.xlu0 %1144
    %v1147 = vsel %vm1142, %v1145, %v1034
    %v1148 = vld [vmem:[#allocation2 + $0x10] sm:$0xff]
    %v1149 = vld [vmem:[#allocation2 + $0x30] sm:$0xff]
    %v1150 = vld [vmem:[#allocation2 + $0x50] sm:$0xff]
    %v1151 = vld [vmem:[#allocation2 + $0x70] sm:$0xff]
    %v1152 = vld [vmem:[#allocation2 + $0x90] sm:$0xff]
    %v1153 = vld [vmem:[#allocation2 + $0xb0] sm:$0xff]
    %v1154 = vld [vmem:[#allocation2 + $0xd0] sm:$0xff]
    %v1155 = vld [vmem:[#allocation2 + $0xf0] sm:$0xff]
    %v1156 = vld [vmem:[%s4 + $0x2] sm:$0x1]
    %v1158 = vlaneseq
    %v1159 = vshrl.u32 %v1158, 7
    %v1160 = vsub.s32 0, %v1159
    %v1161 = vrot.slane %v1156, %v1160
    %v1164 = vsel %vm103, %v1147, 0
    %1166 = vmatprep.subr.mxu0 0.0
    %1167 = vmatpush1.msra.mxu0 %v1148
    %1168 = vmatprep.subr.mxu0 0.0
    %1169 = vmatpush1.msra.mxu0 %v1149
    %1170 = vmatprep.subr.mxu0 0.0
    %1171 = vmatpush1.msra.mxu0 %v1150
    %1172 = vmatprep.subr.mxu0 0.0
    %1173 = vmatpush1.msra.mxu0 %v1151
    %1174 = vmatprep.subr.mxu0 0.0
    %1175 = vmatpush1.msra.mxu0 %v1152
    %1176 = vmatprep.subr.mxu0 0.0
    %1177 = vmatpush1.msra.mxu0 %v1153
    %1178 = vmatprep.subr.mxu0 0.0
    %1179 = vmatpush1.msra.mxu0 %v1154
    %1180 = vmatprep.subr.mxu0 0.0
    %1181 = vmatpush1.msra.mxu0 %v1155
    %1182 = vmatprep.subr.mxu0 0.0
    %1183 = vmatpush1.msra.mxu0 0.0
    %1184 = vmatprep.subr.mxu0 0.0
    %1185 = vmatpush1.msra.mxu0 0.0
    %1186 = vmatprep.subr.mxu0 0.0
    %1187 = vmatpush1.msra.mxu0 0.0
    %1188 = vmatprep.subr.mxu0 0.0
    %1189 = vmatpush1.msra.mxu0 0.0
    %1190 = vmatprep.subr.mxu0 0.0
    %1191 = vmatpush1.msra.mxu0 0.0
    %1192 = vmatprep.subr.mxu0 0.0
    %1193 = vmatpush1.msra.mxu0 0.0
    %1194 = vmatprep.subr.mxu0 0.0
    %1195 = vmatpush1.msra.mxu0 0.0
    %1196 = vmatprep.subr.mxu0 0.0
    %1197 = vmatpush1.msra.mxu0 0.0
    %1198 = vmatprep.subr.mxu0 0.0
    %1199 = vmatpush1.msra.mxu0 0.0
    %1200 = vmatprep.subr.mxu0 0.0
    %1201 = vmatpush1.msra.mxu0 0.0
    %1202 = vmatprep.subr.mxu0 0.0
    %1203 = vmatpush1.msra.mxu0 0.0
    %1204 = vmatprep.subr.mxu0 0.0
    %1205 = vmatpush1.msra.mxu0 0.0
    %1206 = vmatprep.subr.mxu0 0.0
    %1207 = vmatpush1.msra.mxu0 0.0
    %1208 = vmatprep.subr.mxu0 0.0
    %1209 = vmatpush1.msra.mxu0 0.0
    %1210 = vmatprep.subr.mxu0 0.0
    %1211 = vmatpush1.msra.mxu0 0.0
    %1212 = vmatprep.subr.mxu0 0.0
    %1213 = vmatpush1.msra.mxu0 0.0
    %1214 = vmatprep.subr.mxu0 0.0
    %1215 = vmatpush1.msra.mxu0 0.0
    %1216 = vmatprep.subr.mxu0 0.0
    %1217 = vmatpush1.msra.mxu0 0.0
    %1218 = vmatprep.subr.mxu0 0.0
    %1219 = vmatpush1.msra.mxu0 0.0
    %1220 = vmatprep.subr.mxu0 0.0
    %1221 = vmatpush1.msra.mxu0 0.0
    %1222 = vmatprep.subr.mxu0 0.0
    %1223 = vmatpush1.msra.mxu0 0.0
    %1224 = vmatprep.subr.mxu0 0.0
    %1225 = vmatpush1.msra.mxu0 0.0
    %1226 = vmatprep.subr.mxu0 0.0
    %1227 = vmatpush1.msra.mxu0 0.0
    %1228 = vmatprep.subr.mxu0 0.0
    %1229 = vmatpush1.msra.mxu0 0.0
    %1230 = vmatprep.mubr.f32.mxu0 0.0
    %1231 = vmatmul.mubr.f32.gmra.mrb[0].mxu0 %v1164
    %v1232 = vpop.f32.mrb[0].mxu0
    %v1233 = vadd.f32 %v1161, %v1232
    %v1234 = vpop.f32.mrb[0].mxu0
    %1235 = vdwg.mxu0
    %1236 = vrot.lane.b32.xlu0 %v49, 64
    %v1237 = vpop.permute.xlu0 %1236
    %1240 = vrot.lane.b32.xlu0 %v1233, 32
    %v1241 = vpop.permute.xlu0 %1240
    %vm1243 = vcmask 261120
    %v1244 = vsel %vm1243, %v1237, %v1241
    %v1245 = vld [vmem:[%s3 + $0xc] sm:$0xff]
    %v1246 = vld [vmem:[%s3 + $0x14] sm:$0xf]
    %v1247 = vld [vmem:[%s3 + $0x24] sm:$0xff]
    %v1248 = vld [vmem:[%s3 + $0x2c] sm:$0xf]
    %v1249 = vld [vmem:[%s3 + $0x3c] sm:$0xff]
    %v1250 = vld [vmem:[%s3 + $0x44] sm:$0xf]
    %v1251 = vld [vmem:[%s3 + $0x54] sm:$0xff]
    %v1252 = vld [vmem:[%s3 + $0x5c] sm:$0xf]
    %v1253 = vld [vmem:[%s3 + $0x6c] sm:$0xff]
    %v1254 = vld [vmem:[%s3 + $0x74] sm:$0xf]
    %v1255 = vld [vmem:[%s3 + $0x84] sm:$0xff]
    %v1256 = vld [vmem:[%s3 + $0x8c] sm:$0xf]
    %v1257 = vld [vmem:[%s3 + $0x9c] sm:$0xff]
    %v1258 = vld [vmem:[%s3 + $0xa4] sm:$0xf]
    %v1259 = vld [vmem:[%s3 + $0xb4] sm:$0xff]
    %v1260 = vld [vmem:[%s3 + $0xbc] sm:$0xf]
    %v1261 = vpack.c.bf16 %v1244, %v1244
    %v1262 = vld [vmem:[%s4 + $0x3] sm:$0x7]
    %v1264 = vlaneseq
    %v1265 = vshrl.u32 %v1264, 7
    %v1266 = vsub.s32 0, %v1265
    %v1267 = vrot.slane %v1262, %v1266
    %v1268 = vlaneseq
    %v1269 = vshrl.u32 %v1268, 7
    %v1270 = vsub.s32 1, %v1269
    %v1271 = vrot.slane %v1262, %v1270
    %v1272 = vlaneseq
    %v1273 = vshrl.u32 %v1272, 7
    %v1274 = vsub.s32 2, %v1273
    %v1275 = vrot.slane %v1262, %v1274
    %v1295 = vunpack.c.l.b16 %v1245
    %v1296 = vunpack.c.h.b16 %v1245
    %v1297 = vunpack.c.l.b16 %v1246
    %v1298 = vunpack.c.l.b16 %v1247
    %v1299 = vunpack.c.h.b16 %v1247
    %v1300 = vunpack.c.l.b16 %v1248
    %v1301 = vunpack.c.l.b16 %v1249
    %v1302 = vunpack.c.h.b16 %v1249
    %v1303 = vunpack.c.l.b16 %v1250
    %v1304 = vunpack.c.l.b16 %v1251
    %v1305 = vunpack.c.h.b16 %v1251
    %v1306 = vunpack.c.l.b16 %v1252
    %v1307 = vunpack.c.l.b16 %v1253
    %v1308 = vunpack.c.h.b16 %v1253
    %v1309 = vunpack.c.l.b16 %v1254
    %v1310 = vunpack.c.l.b16 %v1255
    %v1311 = vunpack.c.h.b16 %v1255
    %v1312 = vunpack.c.l.b16 %v1256
    %v1313 = vunpack.c.l.b16 %v1257
    %v1314 = vunpack.c.h.b16 %v1257
    %v1315 = vunpack.c.l.b16 %v1258
    %v1316 = vunpack.c.l.b16 %v1259
    %v1317 = vunpack.c.h.b16 %v1259
    %v1318 = vunpack.c.l.b16 %v1260
    %v1319 = vpack.c.b16 %v1298, %v1295
    %v1320 = vpack.c.b16 %v1299, %v1296
    %v1321 = vpack.c.b16 %v1300, %v1297
    %v1322 = vpack.c.b16 %v1304, %v1301
    %v1323 = vpack.c.b16 %v1305, %v1302
    %v1324 = vpack.c.b16 %v1306, %v1303
    %v1325 = vpack.c.b16 %v1310, %v1307
    %v1326 = vpack.c.b16 %v1311, %v1308
    %v1327 = vpack.c.b16 %v1312, %v1309
    %v1328 = vpack.c.b16 %v1316, %v1313
    %v1329 = vpack.c.b16 %v1317, %v1314
    %v1330 = vpack.c.b16 %v1318, %v1315
    %v1344 = vsel %vm103, %v1261, 0
    %1346 = vmatprep.subr.bf16.mxu0 %v1320
    %1347 = vmatpush1.bf16.msra.mxu0 %v1319
    %1348 = vmatprep.subr.bf16.mxu0 %v1323
    %1349 = vmatpush1.bf16.msra.mxu0 %v1322
    %1350 = vmatprep.subr.bf16.mxu0 %v1326
    %1351 = vmatpush1.bf16.msra.mxu0 %v1325
    %1352 = vmatprep.subr.bf16.mxu0 %v1329
    %1353 = vmatpush1.bf16.msra.mxu0 %v1328
    %1354 = vmatprep.subr.bf16.mxu0 0
    %1355 = vmatpush1.bf16.msra.mxu0 0
    %1356 = vmatprep.subr.bf16.mxu0 0
    %1357 = vmatpush1.bf16.msra.mxu0 0
    %1358 = vmatprep.subr.bf16.mxu0 0
    %1359 = vmatpush1.bf16.msra.mxu0 0
    %1360 = vmatprep.subr.bf16.mxu0 0
    %1361 = vmatpush1.bf16.msra.mxu0 0
    %1362 = vmatprep.subr.bf16.mxu0 0
    %1363 = vmatpush1.bf16.msra.mxu0 0
    %1364 = vmatprep.subr.bf16.mxu0 0
    %1365 = vmatpush1.bf16.msra.mxu0 0
    %1366 = vmatprep.subr.bf16.mxu0 0
    %1367 = vmatpush1.bf16.msra.mxu0 0
    %1368 = vmatprep.subr.bf16.mxu0 0
    %1369 = vmatpush1.bf16.msra.mxu0 0
    %1370 = vmatprep.subr.bf16.mxu0 0
    %1371 = vmatpush1.bf16.msra.mxu0 0
    %1372 = vmatprep.subr.bf16.mxu0 0
    %1373 = vmatpush1.bf16.msra.mxu0 0
    %1374 = vmatprep.subr.bf16.mxu0 0
    %1375 = vmatpush1.bf16.msra.mxu0 0
    %1376 = vmatprep.subr.bf16.mxu0 0
    %1377 = vmatpush1.bf16.msra.mxu0 0
    %1378 = vmatprep.mubr.bf16.mxu0 0
    %1379 = vmatmul.mubr.bf16.gmra.mrb[0].mxu0 %v1344
    %v1380 = vpop.f32.mrb[0].mxu0
    %v1381 = vadd.f32 %v1267, %v1380
    %v1382 = vpop.f32.mrb[0].mxu0
    %v1383 = vadd.f32 %v1271, %v1382
    %v1384 = vpop.f32.mrb[0].mxu0
    %v1385 = vpop.f32.mrb[0].mxu0
    %1386 = vdwg.mxu0
    %1387 = vmatprep.subr.bf16.mxu0 0
    %1388 = vmatpush1.bf16.msra.mxu0 %v1321
    %1389 = vmatprep.subr.bf16.mxu0 0
    %1390 = vmatpush1.bf16.msra.mxu0 %v1324
    %1391 = vmatprep.subr.bf16.mxu0 0
    %1392 = vmatpush1.bf16.msra.mxu0 %v1327
    %1393 = vmatprep.subr.bf16.mxu0 0
    %1394 = vmatpush1.bf16.msra.mxu0 %v1330
    %1395 = vmatprep.subr.bf16.mxu0 0
    %1396 = vmatpush1.bf16.msra.mxu0 0
    %1397 = vmatprep.subr.bf16.mxu0 0
    %1398 = vmatpush1.bf16.msra.mxu0 0
    %1399 = vmatprep.subr.bf16.mxu0 0
    %1400 = vmatpush1.bf16.msra.mxu0 0
    %1401 = vmatprep.subr.bf16.mxu0 0
    %1402 = vmatpush1.bf16.msra.mxu0 0
    %1403 = vmatprep.subr.bf16.mxu0 0
    %1404 = vmatpush1.bf16.msra.mxu0 0
    %1405 = vmatprep.subr.bf16.mxu0 0
    %1406 = vmatpush1.bf16.msra.mxu0 0
    %1407 = vmatprep.subr.bf16.mxu0 0
    %1408 = vmatpush1.bf16.msra.mxu0 0
    %1409 = vmatprep.subr.bf16.mxu0 0
    %1410 = vmatpush1.bf16.msra.mxu0 0
    %1411 = vmatprep.subr.bf16.mxu0 0
    %1412 = vmatpush1.bf16.msra.mxu0 0
    %1413 = vmatprep.subr.bf16.mxu0 0
    %1414 = vmatpush1.bf16.msra.mxu0 0
    %1415 = vmatprep.subr.bf16.mxu0 0
    %1416 = vmatpush1.bf16.msra.mxu0 0
    %1417 = vmatprep.subr.bf16.mxu0 0
    %1418 = vmatpush1.bf16.msra.mxu0 0
    %1419 = vmatprep.mubr.bf16.mxu0 0
    %1420 = vmatmul.mubr.bf16.gmra.mrb[0].mxu0 %v1344
    %v1421 = vpop.f32.mrb[0].mxu0
    %v1422 = vadd.f32 %v1275, %v1421
    %v1423 = vpop.f32.mrb[0].mxu0
    %v1424 = vpop.f32.mrb[0].mxu0
    %v1425 = vpop.f32.mrb[0].mxu0
    %1426 = vdwg.mxu0
    %v1427 = vtanh.pop %v1381
    %v1428 = vtanh.pop %v1383
    %v1429 = vtanh.pop %v1422
    %v1430 = vld [vmem:[#allocation4] sm:$0xff]
    %v1431 = vld [vmem:[#allocation4 + $0x8] sm:$0xf]
    %v1432 = vld [vmem:[#allocation4 + $0x24] sm:$0xff]
    %v1433 = vld [vmem:[#allocation4 + $0x2c] sm:$0xf]
    %v1434 = vld [vmem:[#allocation4 + $0x48] sm:$0xff]
    %v1435 = vld [vmem:[#allocation4 + $0x50] sm:$0xf]
    %v1436 = vld [vmem:[#allocation4 + $0x6c] sm:$0xff]
    %v1437 = vld [vmem:[#allocation4 + $0x74] sm:$0xf]
    %v1438 = vld [vmem:[#allocation4 + $0x90] sm:$0xff]
    %v1439 = vld [vmem:[#allocation4 + $0x98] sm:$0xf]
    %v1440 = vld [vmem:[#allocation4 + $0xb4] sm:$0xff]
    %v1441 = vld [vmem:[#allocation4 + $0xbc] sm:$0xf]
    %v1442 = vld [vmem:[#allocation4 + $0xd8] sm:$0xff]
    %v1443 = vld [vmem:[#allocation4 + $0xe0] sm:$0xf]
    %v1444 = vld [vmem:[#allocation4 + $0xfc] sm:$0xff]
    %v1445 = vld [vmem:[#allocation4 + $0x104] sm:$0xf]
    %v1446 = vld [vmem:[#allocation4 + $0x120] sm:$0xff]
    %v1447 = vld [vmem:[#allocation4 + $0x128] sm:$0xf]
    %v1448 = vld [vmem:[#allocation4 + $0x144] sm:$0xff]
    %v1449 = vld [vmem:[#allocation4 + $0x14c] sm:$0xf]
    %v1450 = vld [vmem:[#allocation4 + $0x168] sm:$0xff]
    %v1451 = vld [vmem:[#allocation4 + $0x170] sm:$0xf]
    %v1452 = vld [vmem:[#allocation4 + $0x18c] sm:$0xff]
    %v1453 = vld [vmem:[#allocation4 + $0x194] sm:$0xf]
    %v1454 = vld [vmem:[#allocation4 + $0x1b0] sm:$0xff]
    %v1455 = vld [vmem:[#allocation4 + $0x1b8] sm:$0xf]
    %v1456 = vld [vmem:[#allocation4 + $0x1d4] sm:$0xff]
    %v1457 = vld [vmem:[#allocation4 + $0x1dc] sm:$0xf]
    %v1458 = vld [vmem:[#allocation4 + $0x1f8] sm:$0xff]
    %v1459 = vld [vmem:[#allocation4 + $0x200] sm:$0xf]
    %v1460 = vld [vmem:[#allocation4 + $0x21c] sm:$0xff]
    %v1461 = vld [vmem:[#allocation4 + $0x224] sm:$0xf]
    %v1462 = vld [vmem:[#allocation4 + $0x240] sm:$0xff]
    %v1463 = vld [vmem:[#allocation4 + $0x248] sm:$0xf]
    %v1464 = vld [vmem:[#allocation4 + $0x264] sm:$0xff]
    %v1465 = vld [vmem:[#allocation4 + $0x26c] sm:$0xf]
    %v1466 = vld [vmem:[#allocation4 + $0x288] sm:$0xff]
    %v1467 = vld [vmem:[#allocation4 + $0x290] sm:$0xf]
    %v1468 = vld [vmem:[#allocation4 + $0x2ac] sm:$0xff]
    %v1469 = vld [vmem:[#allocation4 + $0x2b4] sm:$0xf]
    %v1470 = vld [vmem:[#allocation4 + $0x2d0] sm:$0xff]
    %v1471 = vld [vmem:[#allocation4 + $0x2d8] sm:$0xf]
    %v1472 = vld [vmem:[#allocation4 + $0x2f4] sm:$0xff]
    %v1473 = vld [vmem:[#allocation4 + $0x2fc] sm:$0xf]
    %v1474 = vld [vmem:[#allocation4 + $0x318] sm:$0xff]
    %v1475 = vld [vmem:[#allocation4 + $0x320] sm:$0xf]
    %v1476 = vld [vmem:[#allocation4 + $0x33c] sm:$0xff]
    %v1477 = vld [vmem:[#allocation4 + $0x344] sm:$0xf]
    %v1478 = vld [vmem:[#allocation4 + $0x360] sm:$0xff]
    %v1479 = vld [vmem:[#allocation4 + $0x368] sm:$0xf]
    %v1480 = vld [vmem:[#allocation4 + $0x384] sm:$0xff]
    %v1481 = vld [vmem:[#allocation4 + $0x38c] sm:$0xf]
    %v1482 = vld [vmem:[#allocation4 + $0x3a8] sm:$0xff]
    %v1483 = vld [vmem:[#allocation4 + $0x3b0] sm:$0xf]
    %v1484 = vld [vmem:[#allocation4 + $0x3cc] sm:$0xff]
    %v1485 = vld [vmem:[#allocation4 + $0x3d4] sm:$0xf]
    %v1486 = vld [vmem:[#allocation4 + $0x3f0] sm:$0xff]
    %v1487 = vld [vmem:[#allocation4 + $0x3f8] sm:$0xf]
    %v1488 = vld [vmem:[#allocation4 + $0x414] sm:$0xff]
    %v1489 = vld [vmem:[#allocation4 + $0x41c] sm:$0xf]
    %v1490 = vld [vmem:[#allocation4 + $0x438] sm:$0xff]
    %v1491 = vld [vmem:[#allocation4 + $0x440] sm:$0xf]
    %v1492 = vld [vmem:[#allocation4 + $0x45c] sm:$0xff]
    %v1493 = vld [vmem:[#allocation4 + $0x464] sm:$0xf]
    %v1494 = vld [vmem:[#allocation4 + $0x480] sm:$0xff]
    %v1495 = vld [vmem:[#allocation4 + $0x488] sm:$0xf]
    %v1496 = vld [vmem:[#allocation4 + $0x4a4] sm:$0xff]
    %v1497 = vld [vmem:[#allocation4 + $0x4ac] sm:$0xf]
    %v1498 = vld [vmem:[#allocation4 + $0x4c8] sm:$0xff]
    %v1499 = vld [vmem:[#allocation4 + $0x4d0] sm:$0xf]
    %v1500 = vld [vmem:[#allocation4 + $0x4ec] sm:$0xff]
    %v1501 = vld [vmem:[#allocation4 + $0x4f4] sm:$0xf]
    %v1502 = vld [vmem:[#allocation4 + $0x510] sm:$0xff]
    %v1503 = vld [vmem:[#allocation4 + $0x518] sm:$0xf]
    %v1504 = vld [vmem:[#allocation4 + $0x534] sm:$0xff]
    %v1505 = vld [vmem:[#allocation4 + $0x53c] sm:$0xf]
    %v1506 = vld [vmem:[#allocation4 + $0x558] sm:$0xff]
    %v1507 = vld [vmem:[#allocation4 + $0x560] sm:$0xf]
    %v1508 = vld [vmem:[#allocation4 + $0x57c] sm:$0xff]
    %v1509 = vld [vmem:[#allocation4 + $0x584] sm:$0xf]
    %v1510 = vld [vmem:[#allocation4 + $0x5a0] sm:$0xff]
    %v1511 = vld [vmem:[#allocation4 + $0x5a8] sm:$0xf]
    %v1512 = vld [vmem:[#allocation4 + $0x5c4] sm:$0xff]
    %v1513 = vld [vmem:[#allocation4 + $0x5cc] sm:$0xf]
    %v1514 = vld [vmem:[#allocation4 + $0x5e8] sm:$0xff]
    %v1515 = vld [vmem:[#allocation4 + $0x5f0] sm:$0xf]
    %v1516 = vld [vmem:[#allocation4 + $0x60c] sm:$0xff]
    %v1517 = vld [vmem:[#allocation4 + $0x614] sm:$0xf]
    %v1518 = vld [vmem:[#allocation4 + $0x630] sm:$0xff]
    %v1519 = vld [vmem:[#allocation4 + $0x638] sm:$0xf]
    %v1520 = vld [vmem:[#allocation4 + $0x654] sm:$0xff]
    %v1521 = vld [vmem:[#allocation4 + $0x65c] sm:$0xf]
    %v1522 = vld [vmem:[#allocation4 + $0x678] sm:$0xff]
    %v1523 = vld [vmem:[#allocation4 + $0x680] sm:$0xf]
    %v1524 = vld [vmem:[#allocation4 + $0x69c] sm:$0xff]
    %v1525 = vld [vmem:[#allocation4 + $0x6a4] sm:$0xf]
    %v1526 = vpack.c.bf16 %v1427, %v1427
    %v1527 = vpack.c.bf16 %v1428, %v1428
    %v1528 = vpack.c.bf16 %v1429, %v1429
    %v1529 = vld [vmem:[%s4 + $0x6] sm:$0x7]
    %v1531 = vlaneseq
    %v1532 = vshrl.u32 %v1531, 7
    %v1533 = vsub.s32 0, %v1532
    %v1534 = vrot.slane %v1529, %v1533
    %v1535 = vlaneseq
    %v1536 = vshrl.u32 %v1535, 7
    %v1537 = vsub.s32 1, %v1536
    %v1538 = vrot.slane %v1529, %v1537
    %v1539 = vlaneseq
    %v1540 = vshrl.u32 %v1539, 7
    %v1541 = vsub.s32 2, %v1540
    %v1542 = vrot.slane %v1529, %v1541
    %v1642 = vunpack.c.l.b16 %v1430
    %v1643 = vunpack.c.h.b16 %v1430
    %v1644 = vunpack.c.l.b16 %v1431
    %v1645 = vunpack.c.l.b16 %v1432
    %v1646 = vunpack.c.h.b16 %v1432
    %v1647 = vunpack.c.l.b16 %v1433
    %v1648 = vunpack.c.l.b16 %v1434
    %v1649 = vunpack.c.h.b16 %v1434
    %v1650 = vunpack.c.l.b16 %v1435
    %v1651 = vunpack.c.l.b16 %v1436
    %v1652 = vunpack.c.h.b16 %v1436
    %v1653 = vunpack.c.l.b16 %v1437
    %v1654 = vunpack.c.l.b16 %v1438
    %v1655 = vunpack.c.h.b16 %v1438
    %v1656 = vunpack.c.l.b16 %v1439
    %v1657 = vunpack.c.l.b16 %v1440
    %v1658 = vunpack.c.h.b16 %v1440
    %v1659 = vunpack.c.l.b16 %v1441
    %v1660 = vunpack.c.l.b16 %v1442
    %v1661 = vunpack.c.h.b16 %v1442
    %v1662 = vunpack.c.l.b16 %v1443
    %v1663 = vunpack.c.l.b16 %v1444
    %v1664 = vunpack.c.h.b16 %v1444
    %v1665 = vunpack.c.l.b16 %v1445
    %v1666 = vunpack.c.l.b16 %v1446
    %v1667 = vunpack.c.h.b16 %v1446
    %v1668 = vunpack.c.l.b16 %v1447
    %v1669 = vunpack.c.l.b16 %v1448
    %v1670 = vunpack.c.h.b16 %v1448
    %v1671 = vunpack.c.l.b16 %v1449
    %v1672 = vunpack.c.l.b16 %v1450
    %v1673 = vunpack.c.h.b16 %v1450
    %v1674 = vunpack.c.l.b16 %v1451
    %v1675 = vunpack.c.l.b16 %v1452
    %v1676 = vunpack.c.h.b16 %v1452
    %v1677 = vunpack.c.l.b16 %v1453
    %v1678 = vunpack.c.l.b16 %v1454
    %v1679 = vunpack.c.h.b16 %v1454
    %v1680 = vunpack.c.l.b16 %v1455
    %v1681 = vunpack.c.l.b16 %v1456
    %v1682 = vunpack.c.h.b16 %v1456
    %v1683 = vunpack.c.l.b16 %v1457
    %v1684 = vunpack.c.l.b16 %v1458
    %v1685 = vunpack.c.h.b16 %v1458
    %v1686 = vunpack.c.l.b16 %v1459
    %v1687 = vunpack.c.l.b16 %v1460
    %v1688 = vunpack.c.h.b16 %v1460
    %v1689 = vunpack.c.l.b16 %v1461
    %v1690 = vunpack.c.l.b16 %v1462
    %v1691 = vunpack.c.h.b16 %v1462
    %v1692 = vunpack.c.l.b16 %v1463
    %v1693 = vunpack.c.l.b16 %v1464
    %v1694 = vunpack.c.h.b16 %v1464
    %v1695 = vunpack.c.l.b16 %v1465
    %v1696 = vunpack.c.l.b16 %v1466
    %v1697 = vunpack.c.h.b16 %v1466
    %v1698 = vunpack.c.l.b16 %v1467
    %v1699 = vunpack.c.l.b16 %v1468
    %v1700 = vunpack.c.h.b16 %v1468
    %v1701 = vunpack.c.l.b16 %v1469
    %v1702 = vunpack.c.l.b16 %v1470
    %v1703 = vunpack.c.h.b16 %v1470
    %v1704 = vunpack.c.l.b16 %v1471
    %v1705 = vunpack.c.l.b16 %v1472
    %v1706 = vunpack.c.h.b16 %v1472
    %v1707 = vunpack.c.l.b16 %v1473
    %v1708 = vunpack.c.l.b16 %v1474
    %v1709 = vunpack.c.h.b16 %v1474
    %v1710 = vunpack.c.l.b16 %v1475
    %v1711 = vunpack.c.l.b16 %v1476
    %v1712 = vunpack.c.h.b16 %v1476
    %v1713 = vunpack.c.l.b16 %v1477
    %v1714 = vunpack.c.l.b16 %v1478
    %v1715 = vunpack.c.h.b16 %v1478
    %v1716 = vunpack.c.l.b16 %v1479
    %v1717 = vunpack.c.l.b16 %v1480
    %v1718 = vunpack.c.h.b16 %v1480
    %v1719 = vunpack.c.l.b16 %v1481
    %v1720 = vunpack.c.l.b16 %v1482
    %v1721 = vunpack.c.h.b16 %v1482
    %v1722 = vunpack.c.l.b16 %v1483
    %v1723 = vunpack.c.l.b16 %v1484
    %v1724 = vunpack.c.h.b16 %v1484
    %v1725 = vunpack.c.l.b16 %v1485
    %v1726 = vunpack.c.l.b16 %v1486
    %v1727 = vunpack.c.h.b16 %v1486
    %v1728 = vunpack.c.l.b16 %v1487
    %v1729 = vunpack.c.l.b16 %v1488
    %v1730 = vunpack.c.h.b16 %v1488
    %v1731 = vunpack.c.l.b16 %v1489
    %v1732 = vunpack.c.l.b16 %v1490
    %v1733 = vunpack.c.h.b16 %v1490
    %v1734 = vunpack.c.l.b16 %v1491
    %v1735 = vunpack.c.l.b16 %v1492
    %v1736 = vunpack.c.h.b16 %v1492
    %v1737 = vunpack.c.l.b16 %v1493
    %v1738 = vunpack.c.l.b16 %v1494
    %v1739 = vunpack.c.h.b16 %v1494
    %v1740 = vunpack.c.l.b16 %v1495
    %v1741 = vunpack.c.l.b16 %v1496
    %v1742 = vunpack.c.h.b16 %v1496
    %v1743 = vunpack.c.l.b16 %v1497
    %v1744 = vunpack.c.l.b16 %v1498
    %v1745 = vunpack.c.h.b16 %v1498
    %v1746 = vunpack.c.l.b16 %v1499
    %v1747 = vunpack.c.l.b16 %v1500
    %v1748 = vunpack.c.h.b16 %v1500
    %v1749 = vunpack.c.l.b16 %v1501
    %v1750 = vunpack.c.l.b16 %v1502
    %v1751 = vunpack.c.h.b16 %v1502
    %v1752 = vunpack.c.l.b16 %v1503
    %v1753 = vunpack.c.l.b16 %v1504
    %v1754 = vunpack.c.h.b16 %v1504
    %v1755 = vunpack.c.l.b16 %v1505
    %v1756 = vunpack.c.l.b16 %v1506
    %v1757 = vunpack.c.h.b16 %v1506
    %v1758 = vunpack.c.l.b16 %v1507
    %v1759 = vunpack.c.l.b16 %v1508
    %v1760 = vunpack.c.h.b16 %v1508
    %v1761 = vunpack.c.l.b16 %v1509
    %v1762 = vunpack.c.l.b16 %v1510
    %v1763 = vunpack.c.h.b16 %v1510
    %v1764 = vunpack.c.l.b16 %v1511
    %v1765 = vunpack.c.l.b16 %v1512
    %v1766 = vunpack.c.h.b16 %v1512
    %v1767 = vunpack.c.l.b16 %v1513
    %v1768 = vunpack.c.l.b16 %v1514
    %v1769 = vunpack.c.h.b16 %v1514
    %v1770 = vunpack.c.l.b16 %v1515
    %v1771 = vunpack.c.l.b16 %v1516
    %v1772 = vunpack.c.h.b16 %v1516
    %v1773 = vunpack.c.l.b16 %v1517
    %v1774 = vunpack.c.l.b16 %v1518
    %v1775 = vunpack.c.h.b16 %v1518
    %v1776 = vunpack.c.l.b16 %v1519
    %v1777 = vunpack.c.l.b16 %v1520
    %v1778 = vunpack.c.h.b16 %v1520
    %v1779 = vunpack.c.l.b16 %v1521
    %v1780 = vunpack.c.l.b16 %v1522
    %v1781 = vunpack.c.h.b16 %v1522
    %v1782 = vunpack.c.l.b16 %v1523
    %v1783 = vunpack.c.l.b16 %v1524
    %v1784 = vunpack.c.h.b16 %v1524
    %v1785 = vunpack.c.l.b16 %v1525
    %v1786 = vpack.c.b16 %v1645, %v1642
    %v1787 = vpack.c.b16 %v1646, %v1643
    %v1788 = vpack.c.b16 %v1647, %v1644
    %v1789 = vpack.c.b16 %v1651, %v1648
    %v1790 = vpack.c.b16 %v1652, %v1649
    %v1791 = vpack.c.b16 %v1653, %v1650
    %v1792 = vpack.c.b16 %v1657, %v1654
    %v1793 = vpack.c.b16 %v1658, %v1655
    %v1794 = vpack.c.b16 %v1659, %v1656
    %v1795 = vpack.c.b16 %v1663, %v1660
    %v1796 = vpack.c.b16 %v1664, %v1661
    %v1797 = vpack.c.b16 %v1665, %v1662
    %v1798 = vpack.c.b16 %v1669, %v1666
    %v1799 = vpack.c.b16 %v1670, %v1667
    %v1800 = vpack.c.b16 %v1671, %v1668
    %v1801 = vpack.c.b16 %v1675, %v1672
    %v1802 = vpack.c.b16 %v1676, %v1673
    %v1803 = vpack.c.b16 %v1677, %v1674
    %v1804 = vpack.c.b16 %v1681, %v1678
    %v1805 = vpack.c.b16 %v1682, %v1679
    %v1806 = vpack.c.b16 %v1683, %v1680
    %v1807 = vpack.c.b16 %v1687, %v1684
    %v1808 = vpack.c.b16 %v1688, %v1685
    %v1809 = vpack.c.b16 %v1689, %v1686
    %v1810 = vpack.c.b16 %v1693, %v1690
    %v1811 = vpack.c.b16 %v1694, %v1691
    %v1812 = vpack.c.b16 %v1695, %v1692
    %v1813 = vpack.c.b16 %v1699, %v1696
    %v1814 = vpack.c.b16 %v1700, %v1697
    %v1815 = vpack.c.b16 %v1701, %v1698
    %v1816 = vpack.c.b16 %v1705, %v1702
    %v1817 = vpack.c.b16 %v1706, %v1703
    %v1818 = vpack.c.b16 %v1707, %v1704
    %v1819 = vpack.c.b16 %v1711, %v1708
    %v1820 = vpack.c.b16 %v1712, %v1709
    %v1821 = vpack.c.b16 %v1713, %v1710
    %v1822 = vpack.c.b16 %v1717, %v1714
    %v1823 = vpack.c.b16 %v1718, %v1715
    %v1824 = vpack.c.b16 %v1719, %v1716
    %v1825 = vpack.c.b16 %v1723, %v1720
    %v1826 = vpack.c.b16 %v1724, %v1721
    %v1827 = vpack.c.b16 %v1725, %v1722
    %v1828 = vpack.c.b16 %v1729, %v1726
    %v1829 = vpack.c.b16 %v1730, %v1727
    %v1830 = vpack.c.b16 %v1731, %v1728
    %v1831 = vpack.c.b16 %v1735, %v1732
    %v1832 = vpack.c.b16 %v1736, %v1733
    %v1833 = vpack.c.b16 %v1737, %v1734
    %v1834 = vpack.c.b16 %v1741, %v1738
    %v1835 = vpack.c.b16 %v1742, %v1739
    %v1836 = vpack.c.b16 %v1743, %v1740
    %v1837 = vpack.c.b16 %v1747, %v1744
    %v1838 = vpack.c.b16 %v1748, %v1745
    %v1839 = vpack.c.b16 %v1749, %v1746
    %v1840 = vpack.c.b16 %v1753, %v1750
    %v1841 = vpack.c.b16 %v1754, %v1751
    %v1842 = vpack.c.b16 %v1755, %v1752
    %v1843 = vpack.c.b16 %v1759, %v1756
    %v1844 = vpack.c.b16 %v1760, %v1757
    %v1845 = vpack.c.b16 %v1761, %v1758
    %v1846 = vpack.c.b16 %v1765, %v1762
    %v1847 = vpack.c.b16 %v1766, %v1763
    %v1848 = vpack.c.b16 %v1767, %v1764
    %v1849 = vpack.c.b16 %v1771, %v1768
    %v1850 = vpack.c.b16 %v1772, %v1769
    %v1851 = vpack.c.b16 %v1773, %v1770
    %v1852 = vpack.c.b16 %v1777, %v1774
    %v1853 = vpack.c.b16 %v1778, %v1775
    %v1854 = vpack.c.b16 %v1779, %v1776
    %v1855 = vpack.c.b16 %v1783, %v1780
    %v1856 = vpack.c.b16 %v1784, %v1781
    %v1857 = vpack.c.b16 %v1785, %v1782
    %1930 = vmatprep.subr.bf16.mxu0 %v1787
    %1931 = vmatpush1.bf16.msra.mxu0 %v1786
    %1932 = vmatprep.subr.bf16.mxu0 %v1790
    %1933 = vmatpush1.bf16.msra.mxu0 %v1789
    %1934 = vmatprep.subr.bf16.mxu0 %v1793
    %1935 = vmatpush1.bf16.msra.mxu0 %v1792
    %1936 = vmatprep.subr.bf16.mxu0 %v1796
    %1937 = vmatpush1.bf16.msra.mxu0 %v1795
    %1938 = vmatprep.subr.bf16.mxu0 %v1799
    %1939 = vmatpush1.bf16.msra.mxu0 %v1798
    %1940 = vmatprep.subr.bf16.mxu0 %v1802
    %1941 = vmatpush1.bf16.msra.mxu0 %v1801
    %1942 = vmatprep.subr.bf16.mxu0 %v1805
    %1943 = vmatpush1.bf16.msra.mxu0 %v1804
    %1944 = vmatprep.subr.bf16.mxu0 %v1808
    %1945 = vmatpush1.bf16.msra.mxu0 %v1807
    %1946 = vmatprep.subr.bf16.mxu0 %v1811
    %1947 = vmatpush1.bf16.msra.mxu0 %v1810
    %1948 = vmatprep.subr.bf16.mxu0 %v1814
    %1949 = vmatpush1.bf16.msra.mxu0 %v1813
    %1950 = vmatprep.subr.bf16.mxu0 %v1817
    %1951 = vmatpush1.bf16.msra.mxu0 %v1816
    %1952 = vmatprep.subr.bf16.mxu0 %v1820
    %1953 = vmatpush1.bf16.msra.mxu0 %v1819
    %1954 = vmatprep.subr.bf16.mxu0 %v1823
    %1955 = vmatpush1.bf16.msra.mxu0 %v1822
    %1956 = vmatprep.subr.bf16.mxu0 %v1826
    %1957 = vmatpush1.bf16.msra.mxu0 %v1825
    %1958 = vmatprep.subr.bf16.mxu0 %v1829
    %1959 = vmatpush1.bf16.msra.mxu0 %v1828
    %1960 = vmatprep.subr.bf16.mxu0 %v1832
    %1961 = vmatpush1.bf16.msra.mxu0 %v1831
    %1962 = vmatprep.mubr.bf16.mxu0 %v1527
    %1963 = vmatmul.mubr.bf16.gmra.mrb[0].mxu0 %v1526
    %v1964 = vpop.f32.mrb[0].mxu0
    %v1965 = vadd.f32 %v1534, %v1964
    %v1966 = vpop.f32.mrb[0].mxu0
    %v1967 = vadd.f32 %v1538, %v1966
    %v1968 = vpop.f32.mrb[0].mxu0
    %v1969 = vpop.f32.mrb[0].mxu0
    %1970 = vdwg.mxu0
    %1971 = vmatprep.subr.bf16.mxu0 %v1835
    %1972 = vmatpush1.bf16.msra.mxu0 %v1834
    %1973 = vmatprep.subr.bf16.mxu0 %v1838
    %1974 = vmatpush1.bf16.msra.mxu0 %v1837
    %1975 = vmatprep.subr.bf16.mxu0 %v1841
    %1976 = vmatpush1.bf16.msra.mxu0 %v1840
    %1977 = vmatprep.subr.bf16.mxu0 %v1844
    %1978 = vmatpush1.bf16.msra.mxu0 %v1843
    %1979 = vmatprep.subr.bf16.mxu0 %v1847
    %1980 = vmatpush1.bf16.msra.mxu0 %v1846
    %1981 = vmatprep.subr.bf16.mxu0 %v1850
    %1982 = vmatpush1.bf16.msra.mxu0 %v1849
    %1983 = vmatprep.subr.bf16.mxu0 %v1853
    %1984 = vmatpush1.bf16.msra.mxu0 %v1852
    %1985 = vmatprep.subr.bf16.mxu0 %v1856
    %1986 = vmatpush1.bf16.msra.mxu0 %v1855
    %1987 = vmatprep.subr.bf16.mxu0 0
    %1988 = vmatpush1.bf16.msra.mxu0 0
    %1989 = vmatprep.subr.bf16.mxu0 0
    %1990 = vmatpush1.bf16.msra.mxu0 0
    %1991 = vmatprep.subr.bf16.mxu0 0
    %1992 = vmatpush1.bf16.msra.mxu0 0
    %1993 = vmatprep.subr.bf16.mxu0 0
    %1994 = vmatpush1.bf16.msra.mxu0 0
    %1995 = vmatprep.subr.bf16.mxu0 0
    %1996 = vmatpush1.bf16.msra.mxu0 0
    %1997 = vmatprep.subr.bf16.mxu0 0
    %1998 = vmatpush1.bf16.msra.mxu0 0
    %1999 = vmatprep.subr.bf16.mxu0 0
    %2000 = vmatpush1.bf16.msra.mxu0 0
    %2001 = vmatprep.subr.bf16.mxu0 0
    %2002 = vmatpush1.bf16.msra.mxu0 0
    %2003 = vmatprep.mubr.bf16.mxu0 0
    %2004 = vmatmul.mubr.bf16.gmra.mrb[0].mxu0 %v1528
    %v2005 = vpop.f32.mrb[0].mxu0
    %v2006 = vadd.f32 %v1965, %v2005
    %v2007 = vpop.f32.mrb[0].mxu0
    %v2008 = vadd.f32 %v1967, %v2007
    %v2009 = vpop.f32.mrb[0].mxu0
    %v2010 = vpop.f32.mrb[0].mxu0
    %2011 = vdwg.mxu0
    %2012 = vmatprep.subr.bf16.mxu0 0
    %2013 = vmatpush1.bf16.msra.mxu0 %v1788
    %2014 = vmatprep.subr.bf16.mxu0 0
    %2015 = vmatpush1.bf16.msra.mxu0 %v1791
    %2016 = vmatprep.subr.bf16.mxu0 0
    %2017 = vmatpush1.bf16.msra.mxu0 %v1794
    %2018 = vmatprep.subr.bf16.mxu0 0
    %2019 = vmatpush1.bf16.msra.mxu0 %v1797
    %2020 = vmatprep.subr.bf16.mxu0 0
    %2021 = vmatpush1.bf16.msra.mxu0 %v1800
    %2022 = vmatprep.subr.bf16.mxu0 0
    %2023 = vmatpush1.bf16.msra.mxu0 %v1803
    %2024 = vmatprep.subr.bf16.mxu0 0
    %2025 = vmatpush1.bf16.msra.mxu0 %v1806
    %2026 = vmatprep.subr.bf16.mxu0 0
    %2027 = vmatpush1.bf16.msra.mxu0 %v1809
    %2028 = vmatprep.subr.bf16.mxu0 0
    %2029 = vmatpush1.bf16.msra.mxu0 %v1812
    %2030 = vmatprep.subr.bf16.mxu0 0
    %2031 = vmatpush1.bf16.msra.mxu0 %v1815
    %2032 = vmatprep.subr.bf16.mxu0 0
    %2033 = vmatpush1.bf16.msra.mxu0 %v1818
    %2034 = vmatprep.subr.bf16.mxu0 0
    %2035 = vmatpush1.bf16.msra.mxu0 %v1821
    %2036 = vmatprep.subr.bf16.mxu0 0
    %2037 = vmatpush1.bf16.msra.mxu0 %v1824
    %2038 = vmatprep.subr.bf16.mxu0 0
    %2039 = vmatpush1.bf16.msra.mxu0 %v1827
    %2040 = vmatprep.subr.bf16.mxu0 0
    %2041 = vmatpush1.bf16.msra.mxu0 %v1830
    %2042 = vmatprep.subr.bf16.mxu0 0
    %2043 = vmatpush1.bf16.msra.mxu0 %v1833
    %2044 = vmatprep.mubr.bf16.mxu0 %v1527
    %2045 = vmatmul.mubr.bf16.gmra.mrb[0].mxu0 %v1526
    %v2046 = vpop.f32.mrb[0].mxu0
    %v2047 = vadd.f32 %v1542, %v2046
    %v2048 = vpop.f32.mrb[0].mxu0
    %v2049 = vpop.f32.mrb[0].mxu0
    %v2050 = vpop.f32.mrb[0].mxu0
    %2051 = vdwg.mxu0
    %2052 = vmatprep.subr.bf16.mxu0 0
    %2053 = vmatpush1.bf16.msra.mxu0 %v1836
    %2054 = vmatprep.subr.bf16.mxu0 0
    %2055 = vmatpush1.bf16.msra.mxu0 %v1839
    %2056 = vmatprep.subr.bf16.mxu0 0
    %2057 = vmatpush1.bf16.msra.mxu0 %v1842
    %2058 = vmatprep.subr.bf16.mxu0 0
    %2059 = vmatpush1.bf16.msra.mxu0 %v1845
    %2060 = vmatprep.subr.bf16.mxu0 0
    %2061 = vmatpush1.bf16.msra.mxu0 %v1848
    %2062 = vmatprep.subr.bf16.mxu0 0
    %2063 = vmatpush1.bf16.msra.mxu0 %v1851
    %2064 = vmatprep.subr.bf16.mxu0 0
    %2065 = vmatpush1.bf16.msra.mxu0 %v1854
    %2066 = vmatprep.subr.bf16.mxu0 0
    %2067 = vmatpush1.bf16.msra.mxu0 %v1857
    %2068 = vmatprep.subr.bf16.mxu0 0
    %2069 = vmatpush1.bf16.msra.mxu0 0
    %2070 = vmatprep.subr.bf16.mxu0 0
    %2071 = vmatpush1.bf16.msra.mxu0 0
    %2072 = vmatprep.subr.bf16.mxu0 0
    %2073 = vmatpush1.bf16.msra.mxu0 0
    %2074 = vmatprep.subr.bf16.mxu0 0
    %2075 = vmatpush1.bf16.msra.mxu0 0
    %2076 = vmatprep.subr.bf16.mxu0 0
    %2077 = vmatpush1.bf16.msra.mxu0 0
    %2078 = vmatprep.subr.bf16.mxu0 0
    %2079 = vmatpush1.bf16.msra.mxu0 0
    %2080 = vmatprep.subr.bf16.mxu0 0
    %2081 = vmatpush1.bf16.msra.mxu0 0
    %2082 = vmatprep.subr.bf16.mxu0 0
    %2083 = vmatpush1.bf16.msra.mxu0 0
    %2084 = vmatprep.mubr.bf16.mxu0 0
    %2085 = vmatmul.mubr.bf16.gmra.mrb[0].mxu0 %v1528
    %v2086 = vpop.f32.mrb[0].mxu0
    %v2087 = vadd.f32 %v2047, %v2086
    %v2088 = vpop.f32.mrb[0].mxu0
    %v2089 = vpop.f32.mrb[0].mxu0
    %v2090 = vpop.f32.mrb[0].mxu0
    %2091 = vdwg.mxu0
    %2092 = vadd.xlane.f32.xlu0 %v2006
    %v2093 = vpop.xlane.xlu0 %2092
    %v2094 = vrcp.pop 128.0
    %v2095 = vmul.f32 %v2093, %v2094
    %v2096 = vsub.f32 %v2006, %v2095
    %v2097 = vmul.f32 %v2096, %v2096
    %2098 = vadd.xlane.f32.xlu0 %v2097
    %v2099 = vpop.xlane.xlu0 %2098
    %v2100 = vmul.f32 %v2099, %v2094
    %v2101 = vadd.f32 %v2100, 1e-05
    %v2102 = vrsqrt.pop %v2101
    %v2103 = vmul.f32 %v2096, %v2102
    %2104 = vadd.xlane.f32.xlu0 %v2008
    %v2105 = vpop.xlane.xlu0 %2104
    %v2106 = vmul.f32 %v2105, %v2094
    %v2107 = vsub.f32 %v2008, %v2106
    %v2108 = vmul.f32 %v2107, %v2107
    %2109 = vadd.xlane.f32.xlu0 %v2108
    %v2110 = vpop.xlane.xlu0 %2109
    %v2111 = vmul.f32 %v2110, %v2094
    %v2112 = vadd.f32 %v2111, 1e-05
    %v2113 = vrsqrt.pop %v2112
    %v2114 = vmul.f32 %v2107, %v2113
    %2115 = vadd.xlane.f32.xlu0 %v2087
    %v2116 = vpop.xlane.xlu0 %2115
    %v2117 = vmul.f32 %v2116, %v2094
    %v2118 = vsub.f32 %v2087, %v2117
    %v2119 = vmul.f32 %v2118, %v2118
    %2120 = vadd.xlane.f32.xlu0 %v2119
    %v2121 = vpop.xlane.xlu0 %2120
    %v2122 = vmul.f32 %v2121, %v2094
    %v2123 = vadd.f32 %v2122, 1e-05
    %v2124 = vrsqrt.pop %v2123
    %v2125 = vmul.f32 %v2118, %v2124
    %v2126 = vld [vmem:[%s4 + $0x9] sm:$0x7]
    %v2128 = vlaneseq
    %v2129 = vshrl.u32 %v2128, 7
    %v2130 = vsub.s32 0, %v2129
    %v2131 = vrot.slane %v2126, %v2130
    %v2132 = vlaneseq
    %v2133 = vshrl.u32 %v2132, 7
    %v2134 = vsub.s32 1, %v2133
    %v2135 = vrot.slane %v2126, %v2134
    %v2136 = vlaneseq
    %v2137 = vshrl.u32 %v2136, 7
    %v2138 = vsub.s32 2, %v2137
    %v2139 = vrot.slane %v2126, %v2138
    %v2143 = vmul.f32 %v2103, %v2131
    %v2144 = vmul.f32 %v2114, %v2135
    %v2145 = vmul.f32 %v2125, %v2139
    %v2146 = vld [vmem:[%s4 + $0xc] sm:$0x7]
    %v2148 = vlaneseq
    %v2149 = vshrl.u32 %v2148, 7
    %v2150 = vsub.s32 0, %v2149
    %v2151 = vrot.slane %v2146, %v2150
    %v2152 = vlaneseq
    %v2153 = vshrl.u32 %v2152, 7
    %v2154 = vsub.s32 1, %v2153
    %v2155 = vrot.slane %v2146, %v2154
    %v2156 = vlaneseq
    %v2157 = vshrl.u32 %v2156, 7
    %v2158 = vsub.s32 2, %v2157
    %v2159 = vrot.slane %v2146, %v2158
    %v2163 = vadd.f32 %v2143, %v2151
    %v2164 = vadd.f32 %v2144, %v2155
    %v2165 = vadd.f32 %v2145, %v2159
    %v2166 = vtanh.pop %v2163
    %v2167 = vtanh.pop %v2164
    %v2168 = vtanh.pop %v2165
    %v2169 = vld [vmem:[#allocation4 + $0x18] sm:$0xff]
    %v2170 = vld [vmem:[#allocation4 + $0x3c] sm:$0xff]
    %v2171 = vld [vmem:[#allocation4 + $0x60] sm:$0xff]
    %v2172 = vld [vmem:[#allocation4 + $0x84] sm:$0xff]
    %v2173 = vld [vmem:[#allocation4 + $0xa8] sm:$0xff]
    %v2174 = vld [vmem:[#allocation4 + $0xcc] sm:$0xff]
    %v2175 = vld [vmem:[#allocation4 + $0xf0] sm:$0xff]
    %v2176 = vld [vmem:[#allocation4 + $0x114] sm:$0xff]
    %v2177 = vld [vmem:[#allocation4 + $0x138] sm:$0xff]
    %v2178 = vld [vmem:[#allocation4 + $0x15c] sm:$0xff]
    %v2179 = vld [vmem:[#allocation4 + $0x180] sm:$0xff]
    %v2180 = vld [vmem:[#allocation4 + $0x1a4] sm:$0xff]
    %v2181 = vld [vmem:[#allocation4 + $0x1c8] sm:$0xff]
    %v2182 = vld [vmem:[#allocation4 + $0x1ec] sm:$0xff]
    %v2183 = vld [vmem:[#allocation4 + $0x210] sm:$0xff]
    %v2184 = vld [vmem:[#allocation4 + $0x234] sm:$0xff]
    %v2185 = vld [vmem:[#allocation4 + $0x258] sm:$0xff]
    %v2186 = vld [vmem:[#allocation4 + $0x27c] sm:$0xff]
    %v2187 = vld [vmem:[#allocation4 + $0x2a0] sm:$0xff]
    %v2188 = vld [vmem:[#allocation4 + $0x2c4] sm:$0xff]
    %v2189 = vld [vmem:[#allocation4 + $0x2e8] sm:$0xff]
    %v2190 = vld [vmem:[#allocation4 + $0x30c] sm:$0xff]
    %v2191 = vld [vmem:[#allocation4 + $0x330] sm:$0xff]
    %v2192 = vld [vmem:[#allocation4 + $0x354] sm:$0xff]
    %v2193 = vld [vmem:[#allocation4 + $0x378] sm:$0xff]
    %v2194 = vld [vmem:[#allocation4 + $0x39c] sm:$0xff]
    %v2195 = vld [vmem:[#allocation4 + $0x3c0] sm:$0xff]
    %v2196 = vld [vmem:[#allocation4 + $0x3e4] sm:$0xff]
    %v2197 = vld [vmem:[#allocation4 + $0x408] sm:$0xff]
    %v2198 = vld [vmem:[#allocation4 + $0x42c] sm:$0xff]
    %v2199 = vld [vmem:[#allocation4 + $0x450] sm:$0xff]
    %v2200 = vld [vmem:[#allocation4 + $0x474] sm:$0xff]
    %v2201 = vld [vmem:[#allocation4 + $0x498] sm:$0xff]
    %v2202 = vld [vmem:[#allocation4 + $0x4bc] sm:$0xff]
    %v2203 = vld [vmem:[#allocation4 + $0x4e0] sm:$0xff]
    %v2204 = vld [vmem:[#allocation4 + $0x504] sm:$0xff]
    %v2205 = vld [vmem:[#allocation4 + $0x528] sm:$0xff]
    %v2206 = vld [vmem:[#allocation4 + $0x54c] sm:$0xff]
    %v2207 = vld [vmem:[#allocation4 + $0x570] sm:$0xff]
    %v2208 = vld [vmem:[#allocation4 + $0x594] sm:$0xff]
    %v2209 = vld [vmem:[#allocation4 + $0x5b8] sm:$0xff]
    %v2210 = vld [vmem:[#allocation4 + $0x5dc] sm:$0xff]
    %v2211 = vld [vmem:[#allocation4 + $0x600] sm:$0xff]
    %v2212 = vld [vmem:[#allocation4 + $0x624] sm:$0xff]
    %v2213 = vld [vmem:[#allocation4 + $0x648] sm:$0xff]
    %v2214 = vld [vmem:[#allocation4 + $0x66c] sm:$0xff]
    %v2215 = vld [vmem:[#allocation4 + $0x690] sm:$0xff]
    %v2216 = vld [vmem:[#allocation4 + $0x6b4] sm:$0xff]
    %v2217 = vpack.c.bf16 %v2166, %v2166
    %v2218 = vpack.c.bf16 %v2167, %v2167
    %v2219 = vpack.c.bf16 %v2168, %v2168
    %v2220 = vld [vmem:[%s4 + $0xf] sm:$0x3]
    %v2222 = vlaneseq
    %v2223 = vshrl.u32 %v2222, 7
    %v2224 = vsub.s32 0, %v2223
    %v2225 = vrot.slane %v2220, %v2224
    %v2226 = vlaneseq
    %v2227 = vshrl.u32 %v2226, 7
    %v2228 = vsub.s32 1, %v2227
    %v2229 = vrot.slane %v2220, %v2228
    %v2280 = vunpack.c.l.b16 %v2169
    %v2281 = vunpack.c.h.b16 %v2169
    %v2282 = vunpack.c.l.b16 %v2170
    %v2283 = vunpack.c.h.b16 %v2170
    %v2284 = vunpack.c.l.b16 %v2171
    %v2285 = vunpack.c.h.b16 %v2171
    %v2286 = vunpack.c.l.b16 %v2172
    %v2287 = vunpack.c.h.b16 %v2172
    %v2288 = vunpack.c.l.b16 %v2173
    %v2289 = vunpack.c.h.b16 %v2173
    %v2290 = vunpack.c.l.b16 %v2174
    %v2291 = vunpack.c.h.b16 %v2174
    %v2292 = vunpack.c.l.b16 %v2175
    %v2293 = vunpack.c.h.b16 %v2175
    %v2294 = vunpack.c.l.b16 %v2176
    %v2295 = vunpack.c.h.b16 %v2176
    %v2296 = vunpack.c.l.b16 %v2177
    %v2297 = vunpack.c.h.b16 %v2177
    %v2298 = vunpack.c.l.b16 %v2178
    %v2299 = vunpack.c.h.b16 %v2178
    %v2300 = vunpack.c.l.b16 %v2179
    %v2301 = vunpack.c.h.b16 %v2179
    %v2302 = vunpack.c.l.b16 %v2180
    %v2303 = vunpack.c.h.b16 %v2180
    %v2304 = vunpack.c.l.b16 %v2181
    %v2305 = vunpack.c.h.b16 %v2181
    %v2306 = vunpack.c.l.b16 %v2182
    %v2307 = vunpack.c.h.b16 %v2182
    %v2308 = vunpack.c.l.b16 %v2183
    %v2309 = vunpack.c.h.b16 %v2183
    %v2310 = vunpack.c.l.b16 %v2184
    %v2311 = vunpack.c.h.b16 %v2184
    %v2312 = vunpack.c.l.b16 %v2185
    %v2313 = vunpack.c.h.b16 %v2185
    %v2314 = vunpack.c.l.b16 %v2186
    %v2315 = vunpack.c.h.b16 %v2186
    %v2316 = vunpack.c.l.b16 %v2187
    %v2317 = vunpack.c.h.b16 %v2187
    %v2318 = vunpack.c.l.b16 %v2188
    %v2319 = vunpack.c.h.b16 %v2188
    %v2320 = vunpack.c.l.b16 %v2189
    %v2321 = vunpack.c.h.b16 %v2189
    %v2322 = vunpack.c.l.b16 %v2190
    %v2323 = vunpack.c.h.b16 %v2190
    %v2324 = vunpack.c.l.b16 %v2191
    %v2325 = vunpack.c.h.b16 %v2191
    %v2326 = vunpack.c.l.b16 %v2192
    %v2327 = vunpack.c.h.b16 %v2192
    %v2328 = vunpack.c.l.b16 %v2193
    %v2329 = vunpack.c.h.b16 %v2193
    %v2330 = vunpack.c.l.b16 %v2194
    %v2331 = vunpack.c.h.b16 %v2194
    %v2332 = vunpack.c.l.b16 %v2195
    %v2333 = vunpack.c.h.b16 %v2195
    %v2334 = vunpack.c.l.b16 %v2196
    %v2335 = vunpack.c.h.b16 %v2196
    %v2336 = vunpack.c.l.b16 %v2197
    %v2337 = vunpack.c.h.b16 %v2197
    %v2338 = vunpack.c.l.b16 %v2198
    %v2339 = vunpack.c.h.b16 %v2198
    %v2340 = vunpack.c.l.b16 %v2199
    %v2341 = vunpack.c.h.b16 %v2199
    %v2342 = vunpack.c.l.b16 %v2200
    %v2343 = vunpack.c.h.b16 %v2200
    %v2344 = vunpack.c.l.b16 %v2201
    %v2345 = vunpack.c.h.b16 %v2201
    %v2346 = vunpack.c.l.b16 %v2202
    %v2347 = vunpack.c.h.b16 %v2202
    %v2348 = vunpack.c.l.b16 %v2203
    %v2349 = vunpack.c.h.b16 %v2203
    %v2350 = vunpack.c.l.b16 %v2204
    %v2351 = vunpack.c.h.b16 %v2204
    %v2352 = vunpack.c.l.b16 %v2205
    %v2353 = vunpack.c.h.b16 %v2205
    %v2354 = vunpack.c.l.b16 %v2206
    %v2355 = vunpack.c.h.b16 %v2206
    %v2356 = vunpack.c.l.b16 %v2207
    %v2357 = vunpack.c.h.b16 %v2207
    %v2358 = vunpack.c.l.b16 %v2208
    %v2359 = vunpack.c.h.b16 %v2208
    %v2360 = vunpack.c.l.b16 %v2209
    %v2361 = vunpack.c.h.b16 %v2209
    %v2362 = vunpack.c.l.b16 %v2210
    %v2363 = vunpack.c.h.b16 %v2210
    %v2364 = vunpack.c.l.b16 %v2211
    %v2365 = vunpack.c.h.b16 %v2211
    %v2366 = vunpack.c.l.b16 %v2212
    %v2367 = vunpack.c.h.b16 %v2212
    %v2368 = vunpack.c.l.b16 %v2213
    %v2369 = vunpack.c.h.b16 %v2213
    %v2370 = vunpack.c.l.b16 %v2214
    %v2371 = vunpack.c.h.b16 %v2214
    %v2372 = vunpack.c.l.b16 %v2215
    %v2373 = vunpack.c.h.b16 %v2215
    %v2374 = vunpack.c.l.b16 %v2216
    %v2375 = vunpack.c.h.b16 %v2216
    %v2376 = vpack.c.b16 %v2282, %v2280
    %v2377 = vpack.c.b16 %v2283, %v2281
    %v2378 = vpack.c.b16 %v2286, %v2284
    %v2379 = vpack.c.b16 %v2287, %v2285
    %v2380 = vpack.c.b16 %v2290, %v2288
    %v2381 = vpack.c.b16 %v2291, %v2289
    %v2382 = vpack.c.b16 %v2294, %v2292
    %v2383 = vpack.c.b16 %v2295, %v2293
    %v2384 = vpack.c.b16 %v2298, %v2296
    %v2385 = vpack.c.b16 %v2299, %v2297
    %v2386 = vpack.c.b16 %v2302, %v2300
    %v2387 = vpack.c.b16 %v2303, %v2301
    %v2388 = vpack.c.b16 %v2306, %v2304
    %v2389 = vpack.c.b16 %v2307, %v2305
    %v2390 = vpack.c.b16 %v2310, %v2308
    %v2391 = vpack.c.b16 %v2311, %v2309
    %v2392 = vpack.c.b16 %v2314, %v2312
    %v2393 = vpack.c.b16 %v2315, %v2313
    %v2394 = vpack.c.b16 %v2318, %v2316
    %v2395 = vpack.c.b16 %v2319, %v2317
    %v2396 = vpack.c.b16 %v2322, %v2320
    %v2397 = vpack.c.b16 %v2323, %v2321
    %v2398 = vpack.c.b16 %v2326, %v2324
    %v2399 = vpack.c.b16 %v2327, %v2325
    %v2400 = vpack.c.b16 %v2330, %v2328
    %v2401 = vpack.c.b16 %v2331, %v2329
    %v2402 = vpack.c.b16 %v2334, %v2332
    %v2403 = vpack.c.b16 %v2335, %v2333
    %v2404 = vpack.c.b16 %v2338, %v2336
    %v2405 = vpack.c.b16 %v2339, %v2337
    %v2406 = vpack.c.b16 %v2342, %v2340
    %v2407 = vpack.c.b16 %v2343, %v2341
    %v2408 = vpack.c.b16 %v2346, %v2344
    %v2409 = vpack.c.b16 %v2347, %v2345
    %v2410 = vpack.c.b16 %v2350, %v2348
    %v2411 = vpack.c.b16 %v2351, %v2349
    %v2412 = vpack.c.b16 %v2354, %v2352
    %v2413 = vpack.c.b16 %v2355, %v2353
    %v2414 = vpack.c.b16 %v2358, %v2356
    %v2415 = vpack.c.b16 %v2359, %v2357
    %v2416 = vpack.c.b16 %v2362, %v2360
    %v2417 = vpack.c.b16 %v2363, %v2361
    %v2418 = vpack.c.b16 %v2366, %v2364
    %v2419 = vpack.c.b16 %v2367, %v2365
    %v2420 = vpack.c.b16 %v2370, %v2368
    %v2421 = vpack.c.b16 %v2371, %v2369
    %v2422 = vpack.c.b16 %v2374, %v2372
    %v2423 = vpack.c.b16 %v2375, %v2373
    %2472 = vmatprep.subr.bf16.mxu0 %v2377
    %2473 = vmatpush1.bf16.msra.mxu0 %v2376
    %2474 = vmatprep.subr.bf16.mxu0 %v2379
    %2475 = vmatpush1.bf16.msra.mxu0 %v2378
    %2476 = vmatprep.subr.bf16.mxu0 %v2381
    %2477 = vmatpush1.bf16.msra.mxu0 %v2380
    %2478 = vmatprep.subr.bf16.mxu0 %v2383
    %2479 = vmatpush1.bf16.msra.mxu0 %v2382
    %2480 = vmatprep.subr.bf16.mxu0 %v2385
    %2481 = vmatpush1.bf16.msra.mxu0 %v2384
    %2482 = vmatprep.subr.bf16.mxu0 %v2387
    %2483 = vmatpush1.bf16.msra.mxu0 %v2386
    %2484 = vmatprep.subr.bf16.mxu0 %v2389
    %2485 = vmatpush1.bf16.msra.mxu0 %v2388
    %2486 = vmatprep.subr.bf16.mxu0 %v2391
    %2487 = vmatpush1.bf16.msra.mxu0 %v2390
    %2488 = vmatprep.subr.bf16.mxu0 %v2393
    %2489 = vmatpush1.bf16.msra.mxu0 %v2392
    %2490 = vmatprep.subr.bf16.mxu0 %v2395
    %2491 = vmatpush1.bf16.msra.mxu0 %v2394
    %2492 = vmatprep.subr.bf16.mxu0 %v2397
    %2493 = vmatpush1.bf16.msra.mxu0 %v2396
    %2494 = vmatprep.subr.bf16.mxu0 %v2399
    %2495 = vmatpush1.bf16.msra.mxu0 %v2398
    %2496 = vmatprep.subr.bf16.mxu0 %v2401
    %2497 = vmatpush1.bf16.msra.mxu0 %v2400
    %2498 = vmatprep.subr.bf16.mxu0 %v2403
    %2499 = vmatpush1.bf16.msra.mxu0 %v2402
    %2500 = vmatprep.subr.bf16.mxu0 %v2405
    %2501 = vmatpush1.bf16.msra.mxu0 %v2404
    %2502 = vmatprep.subr.bf16.mxu0 %v2407
    %2503 = vmatpush1.bf16.msra.mxu0 %v2406
    %2504 = vmatprep.mubr.bf16.mxu0 %v2218
    %2505 = vmatmul.mubr.bf16.gmra.mrb[0].mxu0 %v2217
    %v2506 = vpop.f32.mrb[0].mxu0
    %v2507 = vadd.f32 %v2225, %v2506
    %v2508 = vpop.f32.mrb[0].mxu0
    %v2509 = vadd.f32 %v2229, %v2508
    %v2510 = vpop.f32.mrb[0].mxu0
    %v2511 = vpop.f32.mrb[0].mxu0
    %2512 = vdwg.mxu0
    %2513 = vmatprep.subr.bf16.mxu0 %v2409
    %2514 = vmatpush1.bf16.msra.mxu0 %v2408
    %2515 = vmatprep.subr.bf16.mxu0 %v2411
    %2516 = vmatpush1.bf16.msra.mxu0 %v2410
    %2517 = vmatprep.subr.bf16.mxu0 %v2413
    %2518 = vmatpush1.bf16.msra.mxu0 %v2412
    %2519 = vmatprep.subr.bf16.mxu0 %v2415
    %2520 = vmatpush1.bf16.msra.mxu0 %v2414
    %2521 = vmatprep.subr.bf16.mxu0 %v2417
    %2522 = vmatpush1.bf16.msra.mxu0 %v2416
    %2523 = vmatprep.subr.bf16.mxu0 %v2419
    %2524 = vmatpush1.bf16.msra.mxu0 %v2418
    %2525 = vmatprep.subr.bf16.mxu0 %v2421
    %2526 = vmatpush1.bf16.msra.mxu0 %v2420
    %2527 = vmatprep.subr.bf16.mxu0 %v2423
    %2528 = vmatpush1.bf16.msra.mxu0 %v2422
    %2529 = vmatprep.subr.bf16.mxu0 0
    %2530 = vmatpush1.bf16.msra.mxu0 0
    %2531 = vmatprep.subr.bf16.mxu0 0
    %2532 = vmatpush1.bf16.msra.mxu0 0
    %2533 = vmatprep.subr.bf16.mxu0 0
    %2534 = vmatpush1.bf16.msra.mxu0 0
    %2535 = vmatprep.subr.bf16.mxu0 0
    %2536 = vmatpush1.bf16.msra.mxu0 0
    %2537 = vmatprep.subr.bf16.mxu0 0
    %2538 = vmatpush1.bf16.msra.mxu0 0
    %2539 = vmatprep.subr.bf16.mxu0 0
    %2540 = vmatpush1.bf16.msra.mxu0 0
    %2541 = vmatprep.subr.bf16.mxu0 0
    %2542 = vmatpush1.bf16.msra.mxu0 0
    %2543 = vmatprep.subr.bf16.mxu0 0
    %2544 = vmatpush1.bf16.msra.mxu0 0
    %2545 = vmatprep.mubr.bf16.mxu0 0
    %2546 = vmatmul.mubr.bf16.gmra.mrb[0].mxu0 %v2219
    %v2547 = vpop.f32.mrb[0].mxu0
    %v2548 = vadd.f32 %v2507, %v2547
    %v2549 = vpop.f32.mrb[0].mxu0
    %v2550 = vadd.f32 %v2509, %v2549
    %v2551 = vpop.f32.mrb[0].mxu0
    %v2552 = vpop.f32.mrb[0].mxu0
    %2553 = vdwg.mxu0
    %v2554 = vxor.u32 %v2548, 2147483648
    %v2555 = vxor.u32 %v2550, 2147483648
    %v2556 = vmul.f32 %v2554, 1.442695
    %v2557 = vpow.pop %v2556
    %v2558 = vmul.f32 %v2555, 1.442695
    %v2559 = vpow.pop %v2558
    %v2560 = vadd.f32 %v2557, 1.0
    %v2561 = vadd.f32 %v2559, 1.0
    %v2562 = vrcp.pop %v2560
    %v2563 = vmul.f32 1.0, %v2562
    %v2564 = vrcp.pop %v2561
    %v2565 = vmul.f32 1.0, %v2564
    %v2566 = vld [vmem:[#allocation4 + $0x1c] sm:$0xff]
    %v2567 = vld [vmem:[#allocation4 + $0x40] sm:$0xff]
    %v2568 = vld [vmem:[#allocation4 + $0x64] sm:$0xff]
    %v2569 = vld [vmem:[#allocation4 + $0x88] sm:$0xff]
    %v2570 = vld [vmem:[#allocation4 + $0xac] sm:$0xff]
    %v2571 = vld [vmem:[#allocation4 + $0xd0] sm:$0xff]
    %v2572 = vld [vmem:[#allocation4 + $0xf4] sm:$0xff]
    %v2573 = vld [vmem:[#allocation4 + $0x118] sm:$0xff]
    %v2574 = vld [vmem:[#allocation4 + $0x13c] sm:$0xff]
    %v2575 = vld [vmem:[#allocation4 + $0x160] sm:$0xff]
    %v2576 = vld [vmem:[#allocation4 + $0x184] sm:$0xff]
    %v2577 = vld [vmem:[#allocation4 + $0x1a8] sm:$0xff]
    %v2578 = vld [vmem:[#allocation4 + $0x1cc] sm:$0xff]
    %v2579 = vld [vmem:[#allocation4 + $0x1f0] sm:$0xff]
    %v2580 = vld [vmem:[#allocation4 + $0x214] sm:$0xff]
    %v2581 = vld [vmem:[#allocation4 + $0x238] sm:$0xff]
    %v2582 = vld [vmem:[#allocation4 + $0x25c] sm:$0xff]
    %v2583 = vld [vmem:[#allocation4 + $0x280] sm:$0xff]
    %v2584 = vld [vmem:[#allocation4 + $0x2a4] sm:$0xff]
    %v2585 = vld [vmem:[#allocation4 + $0x2c8] sm:$0xff]
    %v2586 = vld [vmem:[#allocation4 + $0x2ec] sm:$0xff]
    %v2587 = vld [vmem:[#allocation4 + $0x310] sm:$0xff]
    %v2588 = vld [vmem:[#allocation4 + $0x334] sm:$0xff]
    %v2589 = vld [vmem:[#allocation4 + $0x358] sm:$0xff]
    %v2590 = vld [vmem:[#allocation4 + $0x37c] sm:$0xff]
    %v2591 = vld [vmem:[#allocation4 + $0x3a0] sm:$0xff]
    %v2592 = vld [vmem:[#allocation4 + $0x3c4] sm:$0xff]
    %v2593 = vld [vmem:[#allocation4 + $0x3e8] sm:$0xff]
    %v2594 = vld [vmem:[#allocation4 + $0x40c] sm:$0xff]
    %v2595 = vld [vmem:[#allocation4 + $0x430] sm:$0xff]
    %v2596 = vld [vmem:[#allocation4 + $0x454] sm:$0xff]
    %v2597 = vld [vmem:[#allocation4 + $0x478] sm:$0xff]
    %v2598 = vld [vmem:[#allocation4 + $0x49c] sm:$0xff]
    %v2599 = vld [vmem:[#allocation4 + $0x4c0] sm:$0xff]
    %v2600 = vld [vmem:[#allocation4 + $0x4e4] sm:$0xff]
    %v2601 = vld [vmem:[#allocation4 + $0x508] sm:$0xff]
    %v2602 = vld [vmem:[#allocation4 + $0x52c] sm:$0xff]
    %v2603 = vld [vmem:[#allocation4 + $0x550] sm:$0xff]
    %v2604 = vld [vmem:[#allocation4 + $0x574] sm:$0xff]
    %v2605 = vld [vmem:[#allocation4 + $0x598] sm:$0xff]
    %v2606 = vld [vmem:[#allocation4 + $0x5bc] sm:$0xff]
    %v2607 = vld [vmem:[#allocation4 + $0x5e0] sm:$0xff]
    %v2608 = vld [vmem:[#allocation4 + $0x604] sm:$0xff]
    %v2609 = vld [vmem:[#allocation4 + $0x628] sm:$0xff]
    %v2610 = vld [vmem:[#allocation4 + $0x64c] sm:$0xff]
    %v2611 = vld [vmem:[#allocation4 + $0x670] sm:$0xff]
    %v2612 = vld [vmem:[#allocation4 + $0x694] sm:$0xff]
    %v2613 = vld [vmem:[#allocation4 + $0x6b8] sm:$0xff]
    %v2614 = vld [vmem:[%s4 + $0x11] sm:$0x3]
    %v2616 = vlaneseq
    %v2617 = vshrl.u32 %v2616, 7
    %v2618 = vsub.s32 0, %v2617
    %v2619 = vrot.slane %v2614, %v2618
    %v2620 = vlaneseq
    %v2621 = vshrl.u32 %v2620, 7
    %v2622 = vsub.s32 1, %v2621
    %v2623 = vrot.slane %v2614, %v2622
    %v2674 = vunpack.c.l.b16 %v2566
    %v2675 = vunpack.c.h.b16 %v2566
    %v2676 = vunpack.c.l.b16 %v2567
    %v2677 = vunpack.c.h.b16 %v2567
    %v2678 = vunpack.c.l.b16 %v2568
    %v2679 = vunpack.c.h.b16 %v2568
    %v2680 = vunpack.c.l.b16 %v2569
    %v2681 = vunpack.c.h.b16 %v2569
    %v2682 = vunpack.c.l.b16 %v2570
    %v2683 = vunpack.c.h.b16 %v2570
    %v2684 = vunpack.c.l.b16 %v2571
    %v2685 = vunpack.c.h.b16 %v2571
    %v2686 = vunpack.c.l.b16 %v2572
    %v2687 = vunpack.c.h.b16 %v2572
    %v2688 = vunpack.c.l.b16 %v2573
    %v2689 = vunpack.c.h.b16 %v2573
    %v2690 = vunpack.c.l.b16 %v2574
    %v2691 = vunpack.c.h.b16 %v2574
    %v2692 = vunpack.c.l.b16 %v2575
    %v2693 = vunpack.c.h.b16 %v2575
    %v2694 = vunpack.c.l.b16 %v2576
    %v2695 = vunpack.c.h.b16 %v2576
    %v2696 = vunpack.c.l.b16 %v2577
    %v2697 = vunpack.c.h.b16 %v2577
    %v2698 = vunpack.c.l.b16 %v2578
    %v2699 = vunpack.c.h.b16 %v2578
    %v2700 = vunpack.c.l.b16 %v2579
    %v2701 = vunpack.c.h.b16 %v2579
    %v2702 = vunpack.c.l.b16 %v2580
    %v2703 = vunpack.c.h.b16 %v2580
    %v2704 = vunpack.c.l.b16 %v2581
    %v2705 = vunpack.c.h.b16 %v2581
    %v2706 = vunpack.c.l.b16 %v2582
    %v2707 = vunpack.c.h.b16 %v2582
    %v2708 = vunpack.c.l.b16 %v2583
    %v2709 = vunpack.c.h.b16 %v2583
    %v2710 = vunpack.c.l.b16 %v2584
    %v2711 = vunpack.c.h.b16 %v2584
    %v2712 = vunpack.c.l.b16 %v2585
    %v2713 = vunpack.c.h.b16 %v2585
    %v2714 = vunpack.c.l.b16 %v2586
    %v2715 = vunpack.c.h.b16 %v2586
    %v2716 = vunpack.c.l.b16 %v2587
    %v2717 = vunpack.c.h.b16 %v2587
    %v2718 = vunpack.c.l.b16 %v2588
    %v2719 = vunpack.c.h.b16 %v2588
    %v2720 = vunpack.c.l.b16 %v2589
    %v2721 = vunpack.c.h.b16 %v2589
    %v2722 = vunpack.c.l.b16 %v2590
    %v2723 = vunpack.c.h.b16 %v2590
    %v2724 = vunpack.c.l.b16 %v2591
    %v2725 = vunpack.c.h.b16 %v2591
    %v2726 = vunpack.c.l.b16 %v2592
    %v2727 = vunpack.c.h.b16 %v2592
    %v2728 = vunpack.c.l.b16 %v2593
    %v2729 = vunpack.c.h.b16 %v2593
    %v2730 = vunpack.c.l.b16 %v2594
    %v2731 = vunpack.c.h.b16 %v2594
    %v2732 = vunpack.c.l.b16 %v2595
    %v2733 = vunpack.c.h.b16 %v2595
    %v2734 = vunpack.c.l.b16 %v2596
    %v2735 = vunpack.c.h.b16 %v2596
    %v2736 = vunpack.c.l.b16 %v2597
    %v2737 = vunpack.c.h.b16 %v2597
    %v2738 = vunpack.c.l.b16 %v2598
    %v2739 = vunpack.c.h.b16 %v2598
    %v2740 = vunpack.c.l.b16 %v2599
    %v2741 = vunpack.c.h.b16 %v2599
    %v2742 = vunpack.c.l.b16 %v2600
    %v2743 = vunpack.c.h.b16 %v2600
    %v2744 = vunpack.c.l.b16 %v2601
    %v2745 = vunpack.c.h.b16 %v2601
    %v2746 = vunpack.c.l.b16 %v2602
    %v2747 = vunpack.c.h.b16 %v2602
    %v2748 = vunpack.c.l.b16 %v2603
    %v2749 = vunpack.c.h.b16 %v2603
    %v2750 = vunpack.c.l.b16 %v2604
    %v2751 = vunpack.c.h.b16 %v2604
    %v2752 = vunpack.c.l.b16 %v2605
    %v2753 = vunpack.c.h.b16 %v2605
    %v2754 = vunpack.c.l.b16 %v2606
    %v2755 = vunpack.c.h.b16 %v2606
    %v2756 = vunpack.c.l.b16 %v2607
    %v2757 = vunpack.c.h.b16 %v2607
    %v2758 = vunpack.c.l.b16 %v2608
    %v2759 = vunpack.c.h.b16 %v2608
    %v2760 = vunpack.c.l.b16 %v2609
    %v2761 = vunpack.c.h.b16 %v2609
    %v2762 = vunpack.c.l.b16 %v2610
    %v2763 = vunpack.c.h.b16 %v2610
    %v2764 = vunpack.c.l.b16 %v2611
    %v2765 = vunpack.c.h.b16 %v2611
    %v2766 = vunpack.c.l.b16 %v2612
    %v2767 = vunpack.c.h.b16 %v2612
    %v2768 = vunpack.c.l.b16 %v2613
    %v2769 = vunpack.c.h.b16 %v2613
    %v2770 = vpack.c.b16 %v2676, %v2674
    %v2771 = vpack.c.b16 %v2677, %v2675
    %v2772 = vpack.c.b16 %v2680, %v2678
    %v2773 = vpack.c.b16 %v2681, %v2679
    %v2774 = vpack.c.b16 %v2684, %v2682
    %v2775 = vpack.c.b16 %v2685, %v2683
    %v2776 = vpack.c.b16 %v2688, %v2686
    %v2777 = vpack.c.b16 %v2689, %v2687
    %v2778 = vpack.c.b16 %v2692, %v2690
    %v2779 = vpack.c.b16 %v2693, %v2691
    %v2780 = vpack.c.b16 %v2696, %v2694
    %v2781 = vpack.c.b16 %v2697, %v2695
    %v2782 = vpack.c.b16 %v2700, %v2698
    %v2783 = vpack.c.b16 %v2701, %v2699
    %v2784 = vpack.c.b16 %v2704, %v2702
    %v2785 = vpack.c.b16 %v2705, %v2703
    %v2786 = vpack.c.b16 %v2708, %v2706
    %v2787 = vpack.c.b16 %v2709, %v2707
    %v2788 = vpack.c.b16 %v2712, %v2710
    %v2789 = vpack.c.b16 %v2713, %v2711
    %v2790 = vpack.c.b16 %v2716, %v2714
    %v2791 = vpack.c.b16 %v2717, %v2715
    %v2792 = vpack.c.b16 %v2720, %v2718
    %v2793 = vpack.c.b16 %v2721, %v2719
    %v2794 = vpack.c.b16 %v2724, %v2722
    %v2795 = vpack.c.b16 %v2725, %v2723
    %v2796 = vpack.c.b16 %v2728, %v2726
    %v2797 = vpack.c.b16 %v2729, %v2727
    %v2798 = vpack.c.b16 %v2732, %v2730
    %v2799 = vpack.c.b16 %v2733, %v2731
    %v2800 = vpack.c.b16 %v2736, %v2734
    %v2801 = vpack.c.b16 %v2737, %v2735
    %v2802 = vpack.c.b16 %v2740, %v2738
    %v2803 = vpack.c.b16 %v2741, %v2739
    %v2804 = vpack.c.b16 %v2744, %v2742
    %v2805 = vpack.c.b16 %v2745, %v2743
    %v2806 = vpack.c.b16 %v2748, %v2746
    %v2807 = vpack.c.b16 %v2749, %v2747
    %v2808 = vpack.c.b16 %v2752, %v2750
    %v2809 = vpack.c.b16 %v2753, %v2751
    %v2810 = vpack.c.b16 %v2756, %v2754
    %v2811 = vpack.c.b16 %v2757, %v2755
    %v2812 = vpack.c.b16 %v2760, %v2758
    %v2813 = vpack.c.b16 %v2761, %v2759
    %v2814 = vpack.c.b16 %v2764, %v2762
    %v2815 = vpack.c.b16 %v2765, %v2763
    %v2816 = vpack.c.b16 %v2768, %v2766
    %v2817 = vpack.c.b16 %v2769, %v2767
    %2818 = vrot.lane.b32.xlu0 %v2770, 64
    %v2819 = vpop.permute.xlu0 %2818
    %2820 = vrot.lane.b32.xlu0 %v2771, 64
    %v2821 = vpop.permute.xlu0 %2820
    %2822 = vrot.lane.b32.xlu0 %v2772, 64
    %v2823 = vpop.permute.xlu0 %2822
    %2824 = vrot.lane.b32.xlu0 %v2773, 64
    %v2825 = vpop.permute.xlu0 %2824
    %2826 = vrot.lane.b32.xlu0 %v2774, 64
    %v2827 = vpop.permute.xlu0 %2826
    %2828 = vrot.lane.b32.xlu0 %v2775, 64
    %v2829 = vpop.permute.xlu0 %2828
    %2830 = vrot.lane.b32.xlu0 %v2776, 64
    %v2831 = vpop.permute.xlu0 %2830
    %2832 = vrot.lane.b32.xlu0 %v2777, 64
    %v2833 = vpop.permute.xlu0 %2832
    %2834 = vrot.lane.b32.xlu0 %v2778, 64
    %v2835 = vpop.permute.xlu0 %2834
    %2836 = vrot.lane.b32.xlu0 %v2779, 64
    %v2837 = vpop.permute.xlu0 %2836
    %2838 = vrot.lane.b32.xlu0 %v2780, 64
    %v2839 = vpop.permute.xlu0 %2838
    %2840 = vrot.lane.b32.xlu0 %v2781, 64
    %v2841 = vpop.permute.xlu0 %2840
    %2842 = vrot.lane.b32.xlu0 %v2782, 64
    %v2843 = vpop.permute.xlu0 %2842
    %2844 = vrot.lane.b32.xlu0 %v2783, 64
    %v2845 = vpop.permute.xlu0 %2844
    %2846 = vrot.lane.b32.xlu0 %v2784, 64
    %v2847 = vpop.permute.xlu0 %2846
    %2848 = vrot.lane.b32.xlu0 %v2785, 64
    %v2849 = vpop.permute.xlu0 %2848
    %2850 = vrot.lane.b32.xlu0 %v2786, 64
    %v2851 = vpop.permute.xlu0 %2850
    %2852 = vrot.lane.b32.xlu0 %v2787, 64
    %v2853 = vpop.permute.xlu0 %2852
    %2854 = vrot.lane.b32.xlu0 %v2788, 64
    %v2855 = vpop.permute.xlu0 %2854
    %2856 = vrot.lane.b32.xlu0 %v2789, 64
    %v2857 = vpop.permute.xlu0 %2856
    %2858 = vrot.lane.b32.xlu0 %v2790, 64
    %v2859 = vpop.permute.xlu0 %2858
    %2860 = vrot.lane.b32.xlu0 %v2791, 64
    %v2861 = vpop.permute.xlu0 %2860
    %2862 = vrot.lane.b32.xlu0 %v2792, 64
    %v2863 = vpop.permute.xlu0 %2862
    %2864 = vrot.lane.b32.xlu0 %v2793, 64
    %v2865 = vpop.permute.xlu0 %2864
    %2866 = vrot.lane.b32.xlu0 %v2794, 64
    %v2867 = vpop.permute.xlu0 %2866
    %2868 = vrot.lane.b32.xlu0 %v2795, 64
    %v2869 = vpop.permute.xlu0 %2868
    %2870 = vrot.lane.b32.xlu0 %v2796, 64
    %v2871 = vpop.permute.xlu0 %2870
    %2872 = vrot.lane.b32.xlu0 %v2797, 64
    %v2873 = vpop.permute.xlu0 %2872
    %2874 = vrot.lane.b32.xlu0 %v2798, 64
    %v2875 = vpop.permute.xlu0 %2874
    %2876 = vrot.lane.b32.xlu0 %v2799, 64
    %v2877 = vpop.permute.xlu0 %2876
    %2878 = vrot.lane.b32.xlu0 %v2800, 64
    %v2879 = vpop.permute.xlu0 %2878
    %2880 = vrot.lane.b32.xlu0 %v2801, 64
    %v2881 = vpop.permute.xlu0 %2880
    %2882 = vrot.lane.b32.xlu0 %v2802, 64
    %v2883 = vpop.permute.xlu0 %2882
    %2884 = vrot.lane.b32.xlu0 %v2803, 64
    %v2885 = vpop.permute.xlu0 %2884
    %2886 = vrot.lane.b32.xlu0 %v2804, 64
    %v2887 = vpop.permute.xlu0 %2886
    %2888 = vrot.lane.b32.xlu0 %v2805, 64
    %v2889 = vpop.permute.xlu0 %2888
    %2890 = vrot.lane.b32.xlu0 %v2806, 64
    %v2891 = vpop.permute.xlu0 %2890
    %2892 = vrot.lane.b32.xlu0 %v2807, 64
    %v2893 = vpop.permute.xlu0 %2892
    %2894 = vrot.lane.b32.xlu0 %v2808, 64
    %v2895 = vpop.permute.xlu0 %2894
    %2896 = vrot.lane.b32.xlu0 %v2809, 64
    %v2897 = vpop.permute.xlu0 %2896
    %2898 = vrot.lane.b32.xlu0 %v2810, 64
    %v2899 = vpop.permute.xlu0 %2898
    %2900 = vrot.lane.b32.xlu0 %v2811, 64
    %v2901 = vpop.permute.xlu0 %2900
    %2902 = vrot.lane.b32.xlu0 %v2812, 64
    %v2903 = vpop.permute.xlu0 %2902
    %2904 = vrot.lane.b32.xlu0 %v2813, 64
    %v2905 = vpop.permute.xlu0 %2904
    %2906 = vrot.lane.b32.xlu0 %v2814, 64
    %v2907 = vpop.permute.xlu0 %2906
    %2908 = vrot.lane.b32.xlu0 %v2815, 64
    %v2909 = vpop.permute.xlu0 %2908
    %2910 = vrot.lane.b32.xlu0 %v2816, 64
    %v2911 = vpop.permute.xlu0 %2910
    %2912 = vrot.lane.b32.xlu0 %v2817, 64
    %v2913 = vpop.permute.xlu0 %2912
    %vm2914 = vcmask 523264
    %v2915 = vsel %vm2914, %v2819, %v2821
    %v2916 = vsel %vm2914, %v2823, %v2825
    %v2917 = vsel %vm2914, %v2827, %v2829
    %v2918 = vsel %vm2914, %v2831, %v2833
    %v2919 = vsel %vm2914, %v2835, %v2837
    %v2920 = vsel %vm2914, %v2839, %v2841
    %v2921 = vsel %vm2914, %v2843, %v2845
    %v2922 = vsel %vm2914, %v2847, %v2849
    %v2923 = vsel %vm2914, %v2851, %v2853
    %v2924 = vsel %vm2914, %v2855, %v2857
    %v2925 = vsel %vm2914, %v2859, %v2861
    %v2926 = vsel %vm2914, %v2863, %v2865
    %v2927 = vsel %vm2914, %v2867, %v2869
    %v2928 = vsel %vm2914, %v2871, %v2873
    %v2929 = vsel %vm2914, %v2875, %v2877
    %v2930 = vsel %vm2914, %v2879, %v2881
    %v2931 = vsel %vm2914, %v2883, %v2885
    %v2932 = vsel %vm2914, %v2887, %v2889
    %v2933 = vsel %vm2914, %v2891, %v2893
    %v2934 = vsel %vm2914, %v2895, %v2897
    %v2935 = vsel %vm2914, %v2899, %v2901
    %v2936 = vsel %vm2914, %v2903, %v2905
    %v2937 = vsel %vm2914, %v2907, %v2909
    %v2938 = vsel %vm2914, %v2911, %v2913
    %2987 = vmatprep.subr.bf16.mxu0 %v2821
    %2988 = vmatpush1.bf16.msra.mxu0 %v2915
    %2989 = vmatprep.subr.bf16.mxu0 %v2825
    %2990 = vmatpush1.bf16.msra.mxu0 %v2916
    %2991 = vmatprep.subr.bf16.mxu0 %v2829
    %2992 = vmatpush1.bf16.msra.mxu0 %v2917
    %2993 = vmatprep.subr.bf16.mxu0 %v2833
    %2994 = vmatpush1.bf16.msra.mxu0 %v2918
    %2995 = vmatprep.subr.bf16.mxu0 %v2837
    %2996 = vmatpush1.bf16.msra.mxu0 %v2919
    %2997 = vmatprep.subr.bf16.mxu0 %v2841
    %2998 = vmatpush1.bf16.msra.mxu0 %v2920
    %2999 = vmatprep.subr.bf16.mxu0 %v2845
    %3000 = vmatpush1.bf16.msra.mxu0 %v2921
    %3001 = vmatprep.subr.bf16.mxu0 %v2849
    %3002 = vmatpush1.bf16.msra.mxu0 %v2922
    %3003 = vmatprep.subr.bf16.mxu0 %v2853
    %3004 = vmatpush1.bf16.msra.mxu0 %v2923
    %3005 = vmatprep.subr.bf16.mxu0 %v2857
    %3006 = vmatpush1.bf16.msra.mxu0 %v2924
    %3007 = vmatprep.subr.bf16.mxu0 %v2861
    %3008 = vmatpush1.bf16.msra.mxu0 %v2925
    %3009 = vmatprep.subr.bf16.mxu0 %v2865
    %3010 = vmatpush1.bf16.msra.mxu0 %v2926
    %3011 = vmatprep.subr.bf16.mxu0 %v2869
    %3012 = vmatpush1.bf16.msra.mxu0 %v2927
    %3013 = vmatprep.subr.bf16.mxu0 %v2873
    %3014 = vmatpush1.bf16.msra.mxu0 %v2928
    %3015 = vmatprep.subr.bf16.mxu0 %v2877
    %3016 = vmatpush1.bf16.msra.mxu0 %v2929
    %3017 = vmatprep.subr.bf16.mxu0 %v2881
    %3018 = vmatpush1.bf16.msra.mxu0 %v2930
    %3019 = vmatprep.mubr.bf16.mxu0 %v2218
    %3020 = vmatmul.mubr.bf16.gmra.mrb[0].mxu0 %v2217
    %v3021 = vpop.f32.mrb[0].mxu0
    %v3022 = vadd.f32 %v2619, %v3021
    %v3023 = vpop.f32.mrb[0].mxu0
    %v3024 = vadd.f32 %v2623, %v3023
    %v3025 = vpop.f32.mrb[0].mxu0
    %v3026 = vpop.f32.mrb[0].mxu0
    %3027 = vdwg.mxu0
    %3028 = vmatprep.subr.bf16.mxu0 %v2885
    %3029 = vmatpush1.bf16.msra.mxu0 %v2931
    %3030 = vmatprep.subr.bf16.mxu0 %v2889
    %3031 = vmatpush1.bf16.msra.mxu0 %v2932
    %3032 = vmatprep.subr.bf16.mxu0 %v2893
    %3033 = vmatpush1.bf16.msra.mxu0 %v2933
    %3034 = vmatprep.subr.bf16.mxu0 %v2897
    %3035 = vmatpush1.bf16.msra.mxu0 %v2934
    %3036 = vmatprep.subr.bf16.mxu0 %v2901
    %3037 = vmatpush1.bf16.msra.mxu0 %v2935
    %3038 = vmatprep.subr.bf16.mxu0 %v2905
    %3039 = vmatpush1.bf16.msra.mxu0 %v2936
    %3040 = vmatprep.subr.bf16.mxu0 %v2909
    %3041 = vmatpush1.bf16.msra.mxu0 %v2937
    %3042 = vmatprep.subr.bf16.mxu0 %v2913
    %3043 = vmatpush1.bf16.msra.mxu0 %v2938
    %3044 = vmatprep.subr.bf16.mxu0 0
    %3045 = vmatpush1.bf16.msra.mxu0 0
    %3046 = vmatprep.subr.bf16.mxu0 0
    %3047 = vmatpush1.bf16.msra.mxu0 0
    %3048 = vmatprep.subr.bf16.mxu0 0
    %3049 = vmatpush1.bf16.msra.mxu0 0
    %3050 = vmatprep.subr.bf16.mxu0 0
    %3051 = vmatpush1.bf16.msra.mxu0 0
    %3052 = vmatprep.subr.bf16.mxu0 0
    %3053 = vmatpush1.bf16.msra.mxu0 0
    %3054 = vmatprep.subr.bf16.mxu0 0
    %3055 = vmatpush1.bf16.msra.mxu0 0
    %3056 = vmatprep.subr.bf16.mxu0 0
    %3057 = vmatpush1.bf16.msra.mxu0 0
    %3058 = vmatprep.subr.bf16.mxu0 0
    %3059 = vmatpush1.bf16.msra.mxu0 0
    %3060 = vmatprep.mubr.bf16.mxu0 0
    %3061 = vmatmul.mubr.bf16.gmra.mrb[0].mxu0 %v2219
    %v3062 = vpop.f32.mrb[0].mxu0
    %v3063 = vadd.f32 %v3022, %v3062
    %v3064 = vpop.f32.mrb[0].mxu0
    %v3065 = vadd.f32 %v3024, %v3064
    %v3066 = vpop.f32.mrb[0].mxu0
    %v3067 = vpop.f32.mrb[0].mxu0
    %3068 = vdwg.mxu0
    %v3069 = vxor.u32 %v3063, 2147483648
    %v3070 = vxor.u32 %v3065, 2147483648
    %v3071 = vmul.f32 %v3069, 1.442695
    %v3072 = vpow.pop %v3071
    %v3073 = vmul.f32 %v3070, 1.442695
    %v3074 = vpow.pop %v3073
    %v3075 = vadd.f32 %v3072, 1.0
    %v3076 = vadd.f32 %v3074, 1.0
    %v3077 = vrcp.pop %v3075
    %v3078 = vmul.f32 1.0, %v3077
    %v3079 = vrcp.pop %v3076
    %v3080 = vmul.f32 1.0, %v3079
    %v3081 = vmul.f32 %v3078, 0.5
    %v3082 = vmul.f32 %v3080, 0.5
    %v3083 = vmul.f32 %v3081, 1.442695
    %v3084 = vpow.pop %v3083
    %v3085 = vmul.f32 %v3082, 1.442695
    %v3086 = vpow.pop %v3085
    %v3087 = vmul.f32 %v3084, %v50
    %v3088 = vmul.f32 %v3086, %v51
    %v3089 = vadd.f32 %v3087, %v2563
    %v3090 = vadd.f32 %v3088, %v2565
    %v3091 = vld [vmem:[%s3] sm:$0xff]
    %v3092 = vld [vmem:[%s3 + $0x8] sm:$0xf]
    %v3093 = vld [vmem:[%s3 + $0x18] sm:$0xff]
    %v3094 = vld [vmem:[%s3 + $0x20] sm:$0xf]
    %v3095 = vld [vmem:[%s3 + $0x30] sm:$0xff]
    %v3096 = vld [vmem:[%s3 + $0x38] sm:$0xf]
    %v3097 = vld [vmem:[%s3 + $0x48] sm:$0xff]
    %v3098 = vld [vmem:[%s3 + $0x50] sm:$0xf]
    %v3099 = vld [vmem:[%s3 + $0x60] sm:$0xff]
    %v3100 = vld [vmem:[%s3 + $0x68] sm:$0xf]
    %v3101 = vld [vmem:[%s3 + $0x78] sm:$0xff]
    %v3102 = vld [vmem:[%s3 + $0x80] sm:$0xf]
    %v3103 = vld [vmem:[%s3 + $0x90] sm:$0xff]
    %v3104 = vld [vmem:[%s3 + $0x98] sm:$0xf]
    %v3105 = vld [vmem:[%s3 + $0xa8] sm:$0xff]
    %v3106 = vld [vmem:[%s3 + $0xb0] sm:$0xf]
    %v3107 = vld [vmem:[%s3 + $0xc0] sm:$0xff]
    %v3108 = vld [vmem:[%s3 + $0xc8] sm:$0xf]
    %v3109 = vld [vmem:[%s3 + $0xd8] sm:$0xff]
    %v3110 = vld [vmem:[%s3 + $0xe0] sm:$0xf]
    %v3111 = vld [vmem:[%s3 + $0xf0] sm:$0xff]
    %v3112 = vld [vmem:[%s3 + $0xf8] sm:$0xf]
    %v3113 = vld [vmem:[%s3 + $0x108] sm:$0xff]
    %v3114 = vld [vmem:[%s3 + $0x110] sm:$0xf]
    %v3115 = vld [vmem:[%s3 + $0x120] sm:$0xff]
    %v3116 = vld [vmem:[%s3 + $0x128] sm:$0xf]
    %v3117 = vld [vmem:[%s3 + $0x138] sm:$0xff]
    %v3118 = vld [vmem:[%s3 + $0x140] sm:$0xf]
    %v3119 = vld [vmem:[%s3 + $0x150] sm:$0xff]
    %v3120 = vld [vmem:[%s3 + $0x158] sm:$0xf]
    %v3121 = vld [vmem:[%s3 + $0x168] sm:$0xff]
    %v3122 = vld [vmem:[%s3 + $0x170] sm:$0xf]
    %v3123 = vld [vmem:[%s3 + $0x180] sm:$0xff]
    %v3124 = vld [vmem:[%s3 + $0x188] sm:$0xf]
    %v3125 = vld [vmem:[%s3 + $0x198] sm:$0xff]
    %v3126 = vld [vmem:[%s3 + $0x1a0] sm:$0xf]
    %v3127 = vld [vmem:[%s3 + $0x1b0] sm:$0xff]
    %v3128 = vld [vmem:[%s3 + $0x1b8] sm:$0xf]
    %v3129 = vld [vmem:[%s3 + $0x1c8] sm:$0xff]
    %v3130 = vld [vmem:[%s3 + $0x1d0] sm:$0xf]
    %v3131 = vld [vmem:[%s3 + $0x1e0] sm:$0xff]
    %v3132 = vld [vmem:[%s3 + $0x1e8] sm:$0xf]
    %v3133 = vld [vmem:[%s3 + $0x1f8] sm:$0xff]
    %v3134 = vld [vmem:[%s3 + $0x200] sm:$0xf]
    %v3135 = vld [vmem:[%s3 + $0x210] sm:$0xff]
    %v3136 = vld [vmem:[%s3 + $0x218] sm:$0xf]
    %v3137 = vld [vmem:[%s3 + $0x228] sm:$0xff]
    %v3138 = vld [vmem:[%s3 + $0x230] sm:$0xf]
    %v3139 = vpack.c.bf16 %v3089, %v3089
    %v3140 = vpack.c.bf16 %v3090, %v3090
    %v3141 = vld [vmem:[%s4 + $0x13] sm:$0x7]
    %v3143 = vlaneseq
    %v3144 = vshrl.u32 %v3143, 7
    %v3145 = vsub.s32 0, %v3144
    %v3146 = vrot.slane %v3141, %v3145
    %v3147 = vlaneseq
    %v3148 = vshrl.u32 %v3147, 7
    %v3149 = vsub.s32 1, %v3148
    %v3150 = vrot.slane %v3141, %v3149
    %v3151 = vlaneseq
    %v3152 = vshrl.u32 %v3151, 7
    %v3153 = vsub.s32 2, %v3152
    %v3154 = vrot.slane %v3141, %v3153
    %v3206 = vunpack.c.l.b16 %v3091
    %v3207 = vunpack.c.h.b16 %v3091
    %v3208 = vunpack.c.l.b16 %v3092
    %v3209 = vunpack.c.l.b16 %v3093
    %v3210 = vunpack.c.h.b16 %v3093
    %v3211 = vunpack.c.l.b16 %v3094
    %v3212 = vunpack.c.l.b16 %v3095
    %v3213 = vunpack.c.h.b16 %v3095
    %v3214 = vunpack.c.l.b16 %v3096
    %v3215 = vunpack.c.l.b16 %v3097
    %v3216 = vunpack.c.h.b16 %v3097
    %v3217 = vunpack.c.l.b16 %v3098
    %v3218 = vunpack.c.l.b16 %v3099
    %v3219 = vunpack.c.h.b16 %v3099
    %v3220 = vunpack.c.l.b16 %v3100
    %v3221 = vunpack.c.l.b16 %v3101
    %v3222 = vunpack.c.h.b16 %v3101
    %v3223 = vunpack.c.l.b16 %v3102
    %v3224 = vunpack.c.l.b16 %v3103
    %v3225 = vunpack.c.h.b16 %v3103
    %v3226 = vunpack.c.l.b16 %v3104
    %v3227 = vunpack.c.l.b16 %v3105
    %v3228 = vunpack.c.h.b16 %v3105
    %v3229 = vunpack.c.l.b16 %v3106
    %v3230 = vunpack.c.l.b16 %v3107
    %v3231 = vunpack.c.h.b16 %v3107
    %v3232 = vunpack.c.l.b16 %v3108
    %v3233 = vunpack.c.l.b16 %v3109
    %v3234 = vunpack.c.h.b16 %v3109
    %v3235 = vunpack.c.l.b16 %v3110
    %v3236 = vunpack.c.l.b16 %v3111
    %v3237 = vunpack.c.h.b16 %v3111
    %v3238 = vunpack.c.l.b16 %v3112
    %v3239 = vunpack.c.l.b16 %v3113
    %v3240 = vunpack.c.h.b16 %v3113
    %v3241 = vunpack.c.l.b16 %v3114
    %v3242 = vunpack.c.l.b16 %v3115
    %v3243 = vunpack.c.h.b16 %v3115
    %v3244 = vunpack.c.l.b16 %v3116
    %v3245 = vunpack.c.l.b16 %v3117
    %v3246 = vunpack.c.h.b16 %v3117
    %v3247 = vunpack.c.l.b16 %v3118
    %v3248 = vunpack.c.l.b16 %v3119
    %v3249 = vunpack.c.h.b16 %v3119
    %v3250 = vunpack.c.l.b16 %v3120
    %v3251 = vunpack.c.l.b16 %v3121
    %v3252 = vunpack.c.h.b16 %v3121
    %v3253 = vunpack.c.l.b16 %v3122
    %v3254 = vunpack.c.l.b16 %v3123
    %v3255 = vunpack.c.h.b16 %v3123
    %v3256 = vunpack.c.l.b16 %v3124
    %v3257 = vunpack.c.l.b16 %v3125
    %v3258 = vunpack.c.h.b16 %v3125
    %v3259 = vunpack.c.l.b16 %v3126
    %v3260 = vunpack.c.l.b16 %v3127
    %v3261 = vunpack.c.h.b16 %v3127
    %v3262 = vunpack.c.l.b16 %v3128
    %v3263 = vunpack.c.l.b16 %v3129
    %v3264 = vunpack.c.h.b16 %v3129
    %v3265 = vunpack.c.l.b16 %v3130
    %v3266 = vunpack.c.l.b16 %v3131
    %v3267 = vunpack.c.h.b16 %v3131
    %v3268 = vunpack.c.l.b16 %v3132
    %v3269 = vunpack.c.l.b16 %v3133
    %v3270 = vunpack.c.h.b16 %v3133
    %v3271 = vunpack.c.l.b16 %v3134
    %v3272 = vunpack.c.l.b16 %v3135
    %v3273 = vunpack.c.h.b16 %v3135
    %v3274 = vunpack.c.l.b16 %v3136
    %v3275 = vunpack.c.l.b16 %v3137
    %v3276 = vunpack.c.h.b16 %v3137
    %v3277 = vunpack.c.l.b16 %v3138
    %v3278 = vpack.c.b16 %v3209, %v3206
    %v3279 = vpack.c.b16 %v3210, %v3207
    %v3280 = vpack.c.b16 %v3211, %v3208
    %v3281 = vpack.c.b16 %v3215, %v3212
    %v3282 = vpack.c.b16 %v3216, %v3213
    %v3283 = vpack.c.b16 %v3217, %v3214
    %v3284 = vpack.c.b16 %v3221, %v3218
    %v3285 = vpack.c.b16 %v3222, %v3219
    %v3286 = vpack.c.b16 %v3223, %v3220
    %v3287 = vpack.c.b16 %v3227, %v3224
    %v3288 = vpack.c.b16 %v3228, %v3225
    %v3289 = vpack.c.b16 %v3229, %v3226
    %v3290 = vpack.c.b16 %v3233, %v3230
    %v3291 = vpack.c.b16 %v3234, %v3231
    %v3292 = vpack.c.b16 %v3235, %v3232
    %v3293 = vpack.c.b16 %v3239, %v3236
    %v3294 = vpack.c.b16 %v3240, %v3237
    %v3295 = vpack.c.b16 %v3241, %v3238
    %v3296 = vpack.c.b16 %v3245, %v3242
    %v3297 = vpack.c.b16 %v3246, %v3243
    %v3298 = vpack.c.b16 %v3247, %v3244
    %v3299 = vpack.c.b16 %v3251, %v3248
    %v3300 = vpack.c.b16 %v3252, %v3249
    %v3301 = vpack.c.b16 %v3253, %v3250
    %v3302 = vpack.c.b16 %v3257, %v3254
    %v3303 = vpack.c.b16 %v3258, %v3255
    %v3304 = vpack.c.b16 %v3259, %v3256
    %v3305 = vpack.c.b16 %v3263, %v3260
    %v3306 = vpack.c.b16 %v3264, %v3261
    %v3307 = vpack.c.b16 %v3265, %v3262
    %v3308 = vpack.c.b16 %v3269, %v3266
    %v3309 = vpack.c.b16 %v3270, %v3267
    %v3310 = vpack.c.b16 %v3271, %v3268
    %v3311 = vpack.c.b16 %v3275, %v3272
    %v3312 = vpack.c.b16 %v3276, %v3273
    %v3313 = vpack.c.b16 %v3277, %v3274
    %v3351 = vsel %vm103, %v3140, 0
    %3353 = vmatprep.subr.bf16.mxu0 %v3279
    %3354 = vmatpush1.bf16.msra.mxu0 %v3278
    %3355 = vmatprep.subr.bf16.mxu0 %v3282
    %3356 = vmatpush1.bf16.msra.mxu0 %v3281
    %3357 = vmatprep.subr.bf16.mxu0 %v3285
    %3358 = vmatpush1.bf16.msra.mxu0 %v3284
    %3359 = vmatprep.subr.bf16.mxu0 %v3288
    %3360 = vmatpush1.bf16.msra.mxu0 %v3287
    %3361 = vmatprep.subr.bf16.mxu0 %v3291
    %3362 = vmatpush1.bf16.msra.mxu0 %v3290
    %3363 = vmatprep.subr.bf16.mxu0 %v3294
    %3364 = vmatpush1.bf16.msra.mxu0 %v3293
    %3365 = vmatprep.subr.bf16.mxu0 %v3297
    %3366 = vmatpush1.bf16.msra.mxu0 %v3296
    %3367 = vmatprep.subr.bf16.mxu0 %v3300
    %3368 = vmatpush1.bf16.msra.mxu0 %v3299
    %3369 = vmatprep.subr.bf16.mxu0 %v3303
    %3370 = vmatpush1.bf16.msra.mxu0 %v3302
    %3371 = vmatprep.subr.bf16.mxu0 %v3306
    %3372 = vmatpush1.bf16.msra.mxu0 %v3305
    %3373 = vmatprep.subr.bf16.mxu0 %v3309
    %3374 = vmatpush1.bf16.msra.mxu0 %v3308
    %3375 = vmatprep.subr.bf16.mxu0 %v3312
    %3376 = vmatpush1.bf16.msra.mxu0 %v3311
    %3377 = vmatprep.subr.bf16.mxu0 0
    %3378 = vmatpush1.bf16.msra.mxu0 0
    %3379 = vmatprep.subr.bf16.mxu0 0
    %3380 = vmatpush1.bf16.msra.mxu0 0
    %3381 = vmatprep.subr.bf16.mxu0 0
    %3382 = vmatpush1.bf16.msra.mxu0 0
    %3383 = vmatprep.subr.bf16.mxu0 0
    %3384 = vmatpush1.bf16.msra.mxu0 0
    %3385 = vmatprep.mubr.bf16.mxu0 %v3351
    %3386 = vmatmul.mubr.bf16.gmra.mrb[0].mxu0 %v3139
    %v3387 = vpop.f32.mrb[0].mxu0
    %v3388 = vadd.f32 %v3146, %v3387
    %v3389 = vpop.f32.mrb[0].mxu0
    %v3390 = vadd.f32 %v3150, %v3389
    %v3391 = vpop.f32.mrb[0].mxu0
    %v3392 = vpop.f32.mrb[0].mxu0
    %3393 = vdwg.mxu0
    %3394 = vmatprep.subr.bf16.mxu0 0
    %3395 = vmatpush1.bf16.msra.mxu0 %v3280
    %3396 = vmatprep.subr.bf16.mxu0 0
    %3397 = vmatpush1.bf16.msra.mxu0 %v3283
    %3398 = vmatprep.subr.bf16.mxu0 0
    %3399 = vmatpush1.bf16.msra.mxu0 %v3286
    %3400 = vmatprep.subr.bf16.mxu0 0
    %3401 = vmatpush1.bf16.msra.mxu0 %v3289
    %3402 = vmatprep.subr.bf16.mxu0 0
    %3403 = vmatpush1.bf16.msra.mxu0 %v3292
    %3404 = vmatprep.subr.bf16.mxu0 0
    %3405 = vmatpush1.bf16.msra.mxu0 %v3295
    %3406 = vmatprep.subr.bf16.mxu0 0
    %3407 = vmatpush1.bf16.msra.mxu0 %v3298
    %3408 = vmatprep.subr.bf16.mxu0 0
    %3409 = vmatpush1.bf16.msra.mxu0 %v3301
    %3410 = vmatprep.subr.bf16.mxu0 0
    %3411 = vmatpush1.bf16.msra.mxu0 %v3304
    %3412 = vmatprep.subr.bf16.mxu0 0
    %3413 = vmatpush1.bf16.msra.mxu0 %v3307
    %3414 = vmatprep.subr.bf16.mxu0 0
    %3415 = vmatpush1.bf16.msra.mxu0 %v3310
    %3416 = vmatprep.subr.bf16.mxu0 0
    %3417 = vmatpush1.bf16.msra.mxu0 %v3313
    %3418 = vmatprep.subr.bf16.mxu0 0
    %3419 = vmatpush1.bf16.msra.mxu0 0
    %3420 = vmatprep.subr.bf16.mxu0 0
    %3421 = vmatpush1.bf16.msra.mxu0 0
    %3422 = vmatprep.subr.bf16.mxu0 0
    %3423 = vmatpush1.bf16.msra.mxu0 0
    %3424 = vmatprep.subr.bf16.mxu0 0
    %3425 = vmatpush1.bf16.msra.mxu0 0
    %3426 = vmatprep.mubr.bf16.mxu0 %v3351
    %3427 = vmatmul.mubr.bf16.gmra.mrb[0].mxu0 %v3139
    %v3428 = vpop.f32.mrb[0].mxu0
    %v3429 = vadd.f32 %v3154, %v3428
    %v3430 = vpop.f32.mrb[0].mxu0
    %v3431 = vpop.f32.mrb[0].mxu0
    %v3432 = vpop.f32.mrb[0].mxu0
    %3433 = vdwg.mxu0
    %3434 = vadd.xlane.f32.xlu0 %v3388
    %v3435 = vpop.xlane.xlu0 %3434
    %v3436 = vmul.f32 %v3435, %v2094
    %v3437 = vsub.f32 %v3388, %v3436
    %v3438 = vmul.f32 %v3437, %v3437
    %3439 = vadd.xlane.f32.xlu0 %v3438
    %v3440 = vpop.xlane.xlu0 %3439
    %v3441 = vmul.f32 %v3440, %v2094
    %v3442 = vadd.f32 %v3441, 1e-05
    %v3443 = vrsqrt.pop %v3442
    %v3444 = vmul.f32 %v3437, %v3443
    %3445 = vadd.xlane.f32.xlu0 %v3390
    %v3446 = vpop.xlane.xlu0 %3445
    %v3447 = vmul.f32 %v3446, %v2094
    %v3448 = vsub.f32 %v3390, %v3447
    %v3449 = vmul.f32 %v3448, %v3448
    %3450 = vadd.xlane.f32.xlu0 %v3449
    %v3451 = vpop.xlane.xlu0 %3450
    %v3452 = vmul.f32 %v3451, %v2094
    %v3453 = vadd.f32 %v3452, 1e-05
    %v3454 = vrsqrt.pop %v3453
    %v3455 = vmul.f32 %v3448, %v3454
    %3456 = vadd.xlane.f32.xlu0 %v3429
    %v3457 = vpop.xlane.xlu0 %3456
    %v3458 = vmul.f32 %v3457, %v2094
    %v3459 = vsub.f32 %v3429, %v3458
    %v3460 = vmul.f32 %v3459, %v3459
    %3461 = vadd.xlane.f32.xlu0 %v3460
    %v3462 = vpop.xlane.xlu0 %3461
    %v3463 = vmul.f32 %v3462, %v2094
    %v3464 = vadd.f32 %v3463, 1e-05
    %v3465 = vrsqrt.pop %v3464
    %v3466 = vmul.f32 %v3459, %v3465
    %v3467 = vld [vmem:[%s4 + $0x16] sm:$0x7]
    %v3469 = vlaneseq
    %v3470 = vshrl.u32 %v3469, 7
    %v3471 = vsub.s32 0, %v3470
    %v3472 = vrot.slane %v3467, %v3471
    %v3473 = vlaneseq
    %v3474 = vshrl.u32 %v3473, 7
    %v3475 = vsub.s32 1, %v3474
    %v3476 = vrot.slane %v3467, %v3475
    %v3477 = vlaneseq
    %v3478 = vshrl.u32 %v3477, 7
    %v3479 = vsub.s32 2, %v3478
    %v3480 = vrot.slane %v3467, %v3479
    %v3484 = vmul.f32 %v3444, %v3472
    %v3485 = vmul.f32 %v3455, %v3476
    %v3486 = vmul.f32 %v3466, %v3480
    %v3487 = vld [vmem:[%s4 + $0x19] sm:$0x7]
    %v3489 = vlaneseq
    %v3490 = vshrl.u32 %v3489, 7
    %v3491 = vsub.s32 0, %v3490
    %v3492 = vrot.slane %v3487, %v3491
    %v3493 = vlaneseq
    %v3494 = vshrl.u32 %v3493, 7
    %v3495 = vsub.s32 1, %v3494
    %v3496 = vrot.slane %v3487, %v3495
    %v3497 = vlaneseq
    %v3498 = vshrl.u32 %v3497, 7
    %v3499 = vsub.s32 2, %v3498
    %v3500 = vrot.slane %v3487, %v3499
    %v3504 = vadd.f32 %v3484, %v3492
    %v3505 = vadd.f32 %v3485, %v3496
    %v3506 = vadd.f32 %v3486, %v3500
    %v3507 = vtanh.pop %v3504
    %v3508 = vtanh.pop %v3505
    %v3509 = vtanh.pop %v3506
    %v3510 = vld [vmem:[#allocation4 + $0xc] sm:$0xff]
    %v3511 = vld [vmem:[#allocation4 + $0x14] sm:$0xf]
    %v3512 = vld [vmem:[#allocation4 + $0x30] sm:$0xff]
    %v3513 = vld [vmem:[#allocation4 + $0x38] sm:$0xf]
    %v3514 = vld [vmem:[#allocation4 + $0x54] sm:$0xff]
    %v3515 = vld [vmem:[#allocation4 + $0x5c] sm:$0xf]
    %v3516 = vld [vmem:[#allocation4 + $0x78] sm:$0xff]
    %v3517 = vld [vmem:[#allocation4 + $0x80] sm:$0xf]
    %v3518 = vld [vmem:[#allocation4 + $0x9c] sm:$0xff]
    %v3519 = vld [vmem:[#allocation4 + $0xa4] sm:$0xf]
    %v3520 = vld [vmem:[#allocation4 + $0xc0] sm:$0xff]
    %v3521 = vld [vmem:[#allocation4 + $0xc8] sm:$0xf]
    %v3522 = vld [vmem:[#allocation4 + $0xe4] sm:$0xff]
    %v3523 = vld [vmem:[#allocation4 + $0xec] sm:$0xf]
    %v3524 = vld [vmem:[#allocation4 + $0x108] sm:$0xff]
    %v3525 = vld [vmem:[#allocation4 + $0x110] sm:$0xf]
    %v3526 = vld [vmem:[#allocation4 + $0x12c] sm:$0xff]
    %v3527 = vld [vmem:[#allocation4 + $0x134] sm:$0xf]
    %v3528 = vld [vmem:[#allocation4 + $0x150] sm:$0xff]
    %v3529 = vld [vmem:[#allocation4 + $0x158] sm:$0xf]
    %v3530 = vld [vmem:[#allocation4 + $0x174] sm:$0xff]
    %v3531 = vld [vmem:[#allocation4 + $0x17c] sm:$0xf]
    %v3532 = vld [vmem:[#allocation4 + $0x198] sm:$0xff]
    %v3533 = vld [vmem:[#allocation4 + $0x1a0] sm:$0xf]
    %v3534 = vld [vmem:[#allocation4 + $0x1bc] sm:$0xff]
    %v3535 = vld [vmem:[#allocation4 + $0x1c4] sm:$0xf]
    %v3536 = vld [vmem:[#allocation4 + $0x1e0] sm:$0xff]
    %v3537 = vld [vmem:[#allocation4 + $0x1e8] sm:$0xf]
    %v3538 = vld [vmem:[#allocation4 + $0x204] sm:$0xff]
    %v3539 = vld [vmem:[#allocation4 + $0x20c] sm:$0xf]
    %v3540 = vld [vmem:[#allocation4 + $0x228] sm:$0xff]
    %v3541 = vld [vmem:[#allocation4 + $0x230] sm:$0xf]
    %v3542 = vld [vmem:[#allocation4 + $0x24c] sm:$0xff]
    %v3543 = vld [vmem:[#allocation4 + $0x254] sm:$0xf]
    %v3544 = vld [vmem:[#allocation4 + $0x270] sm:$0xff]
    %v3545 = vld [vmem:[#allocation4 + $0x278] sm:$0xf]
    %v3546 = vld [vmem:[#allocation4 + $0x294] sm:$0xff]
    %v3547 = vld [vmem:[#allocation4 + $0x29c] sm:$0xf]
    %v3548 = vld [vmem:[#allocation4 + $0x2b8] sm:$0xff]
    %v3549 = vld [vmem:[#allocation4 + $0x2c0] sm:$0xf]
    %v3550 = vld [vmem:[#allocation4 + $0x2dc] sm:$0xff]
    %v3551 = vld [vmem:[#allocation4 + $0x2e4] sm:$0xf]
    %v3552 = vld [vmem:[#allocation4 + $0x300] sm:$0xff]
    %v3553 = vld [vmem:[#allocation4 + $0x308] sm:$0xf]
    %v3554 = vld [vmem:[#allocation4 + $0x324] sm:$0xff]
    %v3555 = vld [vmem:[#allocation4 + $0x32c] sm:$0xf]
    %v3556 = vld [vmem:[#allocation4 + $0x348] sm:$0xff]
    %v3557 = vld [vmem:[#allocation4 + $0x350] sm:$0xf]
    %v3558 = vld [vmem:[#allocation4 + $0x36c] sm:$0xff]
    %v3559 = vld [vmem:[#allocation4 + $0x374] sm:$0xf]
    %v3560 = vld [vmem:[#allocation4 + $0x390] sm:$0xff]
    %v3561 = vld [vmem:[#allocation4 + $0x398] sm:$0xf]
    %v3562 = vld [vmem:[#allocation4 + $0x3b4] sm:$0xff]
    %v3563 = vld [vmem:[#allocation4 + $0x3bc] sm:$0xf]
    %v3564 = vld [vmem:[#allocation4 + $0x3d8] sm:$0xff]
    %v3565 = vld [vmem:[#allocation4 + $0x3e0] sm:$0xf]
    %v3566 = vld [vmem:[#allocation4 + $0x3fc] sm:$0xff]
    %v3567 = vld [vmem:[#allocation4 + $0x404] sm:$0xf]
    %v3568 = vld [vmem:[#allocation4 + $0x420] sm:$0xff]
    %v3569 = vld [vmem:[#allocation4 + $0x428] sm:$0xf]
    %v3570 = vld [vmem:[#allocation4 + $0x444] sm:$0xff]
    %v3571 = vld [vmem:[#allocation4 + $0x44c] sm:$0xf]
    %v3572 = vld [vmem:[#allocation4 + $0x468] sm:$0xff]
    %v3573 = vld [vmem:[#allocation4 + $0x470] sm:$0xf]
    %v3574 = vld [vmem:[#allocation4 + $0x48c] sm:$0xff]
    %v3575 = vld [vmem:[#allocation4 + $0x494] sm:$0xf]
    %v3576 = vld [vmem:[#allocation4 + $0x4b0] sm:$0xff]
    %v3577 = vld [vmem:[#allocation4 + $0x4b8] sm:$0xf]
    %v3578 = vld [vmem:[#allocation4 + $0x4d4] sm:$0xff]
    %v3579 = vld [vmem:[#allocation4 + $0x4dc] sm:$0xf]
    %v3580 = vld [vmem:[#allocation4 + $0x4f8] sm:$0xff]
    %v3581 = vld [vmem:[#allocation4 + $0x500] sm:$0xf]
    %v3582 = vld [vmem:[#allocation4 + $0x51c] sm:$0xff]
    %v3583 = vld [vmem:[#allocation4 + $0x524] sm:$0xf]
    %v3584 = vld [vmem:[#allocation4 + $0x540] sm:$0xff]
    %v3585 = vld [vmem:[#allocation4 + $0x548] sm:$0xf]
    %v3586 = vld [vmem:[#allocation4 + $0x564] sm:$0xff]
    %v3587 = vld [vmem:[#allocation4 + $0x56c] sm:$0xf]
    %v3588 = vld [vmem:[#allocation4 + $0x588] sm:$0xff]
    %v3589 = vld [vmem:[#allocation4 + $0x590] sm:$0xf]
    %v3590 = vld [vmem:[#allocation4 + $0x5ac] sm:$0xff]
    %v3591 = vld [vmem:[#allocation4 + $0x5b4] sm:$0xf]
    %v3592 = vld [vmem:[#allocation4 + $0x5d0] sm:$0xff]
    %v3593 = vld [vmem:[#allocation4 + $0x5d8] sm:$0xf]
    %v3594 = vld [vmem:[#allocation4 + $0x5f4] sm:$0xff]
    %v3595 = vld [vmem:[#allocation4 + $0x5fc] sm:$0xf]
    %v3596 = vld [vmem:[#allocation4 + $0x618] sm:$0xff]
    %v3597 = vld [vmem:[#allocation4 + $0x620] sm:$0xf]
    %v3598 = vld [vmem:[#allocation4 + $0x63c] sm:$0xff]
    %v3599 = vld [vmem:[#allocation4 + $0x644] sm:$0xf]
    %v3600 = vld [vmem:[#allocation4 + $0x660] sm:$0xff]
    %v3601 = vld [vmem:[#allocation4 + $0x668] sm:$0xf]
    %v3602 = vld [vmem:[#allocation4 + $0x684] sm:$0xff]
    %v3603 = vld [vmem:[#allocation4 + $0x68c] sm:$0xf]
    %v3604 = vld [vmem:[#allocation4 + $0x6a8] sm:$0xff]
    %v3605 = vld [vmem:[#allocation4 + $0x6b0] sm:$0xf]
    %v3606 = vpack.c.bf16 %v3507, %v3507
    %v3607 = vpack.c.bf16 %v3508, %v3508
    %v3608 = vpack.c.bf16 %v3509, %v3509
    %v3609 = vld [vmem:[%s4 + $0x1c] sm:$0x7]
    %v3611 = vlaneseq
    %v3612 = vshrl.u32 %v3611, 7
    %v3613 = vsub.s32 0, %v3612
    %v3614 = vrot.slane %v3609, %v3613
    %v3615 = vlaneseq
    %v3616 = vshrl.u32 %v3615, 7
    %v3617 = vsub.s32 1, %v3616
    %v3618 = vrot.slane %v3609, %v3617
    %v3619 = vlaneseq
    %v3620 = vshrl.u32 %v3619, 7
    %v3621 = vsub.s32 2, %v3620
    %v3622 = vrot.slane %v3609, %v3621
    %v3722 = vunpack.c.l.b16 %v3510
    %v3723 = vunpack.c.h.b16 %v3510
    %v3724 = vunpack.c.l.b16 %v3511
    %v3725 = vunpack.c.l.b16 %v3512
    %v3726 = vunpack.c.h.b16 %v3512
    %v3727 = vunpack.c.l.b16 %v3513
    %v3728 = vunpack.c.l.b16 %v3514
    %v3729 = vunpack.c.h.b16 %v3514
    %v3730 = vunpack.c.l.b16 %v3515
    %v3731 = vunpack.c.l.b16 %v3516
    %v3732 = vunpack.c.h.b16 %v3516
    %v3733 = vunpack.c.l.b16 %v3517
    %v3734 = vunpack.c.l.b16 %v3518
    %v3735 = vunpack.c.h.b16 %v3518
    %v3736 = vunpack.c.l.b16 %v3519
    %v3737 = vunpack.c.l.b16 %v3520
    %v3738 = vunpack.c.h.b16 %v3520
    %v3739 = vunpack.c.l.b16 %v3521
    %v3740 = vunpack.c.l.b16 %v3522
    %v3741 = vunpack.c.h.b16 %v3522
    %v3742 = vunpack.c.l.b16 %v3523
    %v3743 = vunpack.c.l.b16 %v3524
    %v3744 = vunpack.c.h.b16 %v3524
    %v3745 = vunpack.c.l.b16 %v3525
    %v3746 = vunpack.c.l.b16 %v3526
    %v3747 = vunpack.c.h.b16 %v3526
    %v3748 = vunpack.c.l.b16 %v3527
    %v3749 = vunpack.c.l.b16 %v3528
    %v3750 = vunpack.c.h.b16 %v3528
    %v3751 = vunpack.c.l.b16 %v3529
    %v3752 = vunpack.c.l.b16 %v3530
    %v3753 = vunpack.c.h.b16 %v3530
    %v3754 = vunpack.c.l.b16 %v3531
    %v3755 = vunpack.c.l.b16 %v3532
    %v3756 = vunpack.c.h.b16 %v3532
    %v3757 = vunpack.c.l.b16 %v3533
    %v3758 = vunpack.c.l.b16 %v3534
    %v3759 = vunpack.c.h.b16 %v3534
    %v3760 = vunpack.c.l.b16 %v3535
    %v3761 = vunpack.c.l.b16 %v3536
    %v3762 = vunpack.c.h.b16 %v3536
    %v3763 = vunpack.c.l.b16 %v3537
    %v3764 = vunpack.c.l.b16 %v3538
    %v3765 = vunpack.c.h.b16 %v3538
    %v3766 = vunpack.c.l.b16 %v3539
    %v3767 = vunpack.c.l.b16 %v3540
    %v3768 = vunpack.c.h.b16 %v3540
    %v3769 = vunpack.c.l.b16 %v3541
    %v3770 = vunpack.c.l.b16 %v3542
    %v3771 = vunpack.c.h.b16 %v3542
    %v3772 = vunpack.c.l.b16 %v3543
    %v3773 = vunpack.c.l.b16 %v3544
    %v3774 = vunpack.c.h.b16 %v3544
    %v3775 = vunpack.c.l.b16 %v3545
    %v3776 = vunpack.c.l.b16 %v3546
    %v3777 = vunpack.c.h.b16 %v3546
    %v3778 = vunpack.c.l.b16 %v3547
    %v3779 = vunpack.c.l.b16 %v3548
    %v3780 = vunpack.c.h.b16 %v3548
    %v3781 = vunpack.c.l.b16 %v3549
    %v3782 = vunpack.c.l.b16 %v3550
    %v3783 = vunpack.c.h.b16 %v3550
    %v3784 = vunpack.c.l.b16 %v3551
    %v3785 = vunpack.c.l.b16 %v3552
    %v3786 = vunpack.c.h.b16 %v3552
    %v3787 = vunpack.c.l.b16 %v3553
    %v3788 = vunpack.c.l.b16 %v3554
    %v3789 = vunpack.c.h.b16 %v3554
    %v3790 = vunpack.c.l.b16 %v3555
    %v3791 = vunpack.c.l.b16 %v3556
    %v3792 = vunpack.c.h.b16 %v3556
    %v3793 = vunpack.c.l.b16 %v3557
    %v3794 = vunpack.c.l.b16 %v3558
    %v3795 = vunpack.c.h.b16 %v3558
    %v3796 = vunpack.c.l.b16 %v3559
    %v3797 = vunpack.c.l.b16 %v3560
    %v3798 = vunpack.c.h.b16 %v3560
    %v3799 = vunpack.c.l.b16 %v3561
    %v3800 = vunpack.c.l.b16 %v3562
    %v3801 = vunpack.c.h.b16 %v3562
    %v3802 = vunpack.c.l.b16 %v3563
    %v3803 = vunpack.c.l.b16 %v3564
    %v3804 = vunpack.c.h.b16 %v3564
    %v3805 = vunpack.c.l.b16 %v3565
    %v3806 = vunpack.c.l.b16 %v3566
    %v3807 = vunpack.c.h.b16 %v3566
    %v3808 = vunpack.c.l.b16 %v3567
    %v3809 = vunpack.c.l.b16 %v3568
    %v3810 = vunpack.c.h.b16 %v3568
    %v3811 = vunpack.c.l.b16 %v3569
    %v3812 = vunpack.c.l.b16 %v3570
    %v3813 = vunpack.c.h.b16 %v3570
    %v3814 = vunpack.c.l.b16 %v3571
    %v3815 = vunpack.c.l.b16 %v3572
    %v3816 = vunpack.c.h.b16 %v3572
    %v3817 = vunpack.c.l.b16 %v3573
    %v3818 = vunpack.c.l.b16 %v3574
    %v3819 = vunpack.c.h.b16 %v3574
    %v3820 = vunpack.c.l.b16 %v3575
    %v3821 = vunpack.c.l.b16 %v3576
    %v3822 = vunpack.c.h.b16 %v3576
    %v3823 = vunpack.c.l.b16 %v3577
    %v3824 = vunpack.c.l.b16 %v3578
    %v3825 = vunpack.c.h.b16 %v3578
    %v3826 = vunpack.c.l.b16 %v3579
    %v3827 = vunpack.c.l.b16 %v3580
    %v3828 = vunpack.c.h.b16 %v3580
    %v3829 = vunpack.c.l.b16 %v3581
    %v3830 = vunpack.c.l.b16 %v3582
    %v3831 = vunpack.c.h.b16 %v3582
    %v3832 = vunpack.c.l.b16 %v3583
    %v3833 = vunpack.c.l.b16 %v3584
    %v3834 = vunpack.c.h.b16 %v3584
    %v3835 = vunpack.c.l.b16 %v3585
    %v3836 = vunpack.c.l.b16 %v3586
    %v3837 = vunpack.c.h.b16 %v3586
    %v3838 = vunpack.c.l.b16 %v3587
    %v3839 = vunpack.c.l.b16 %v3588
    %v3840 = vunpack.c.h.b16 %v3588
    %v3841 = vunpack.c.l.b16 %v3589
    %v3842 = vunpack.c.l.b16 %v3590
    %v3843 = vunpack.c.h.b16 %v3590
    %v3844 = vunpack.c.l.b16 %v3591
    %v3845 = vunpack.c.l.b16 %v3592
    %v3846 = vunpack.c.h.b16 %v3592
    %v3847 = vunpack.c.l.b16 %v3593
    %v3848 = vunpack.c.l.b16 %v3594
    %v3849 = vunpack.c.h.b16 %v3594
    %v3850 = vunpack.c.l.b16 %v3595
    %v3851 = vunpack.c.l.b16 %v3596
    %v3852 = vunpack.c.h.b16 %v3596
    %v3853 = vunpack.c.l.b16 %v3597
    %v3854 = vunpack.c.l.b16 %v3598
    %v3855 = vunpack.c.h.b16 %v3598
    %v3856 = vunpack.c.l.b16 %v3599
    %v3857 = vunpack.c.l.b16 %v3600
    %v3858 = vunpack.c.h.b16 %v3600
    %v3859 = vunpack.c.l.b16 %v3601
    %v3860 = vunpack.c.l.b16 %v3602
    %v3861 = vunpack.c.h.b16 %v3602
    %v3862 = vunpack.c.l.b16 %v3603
    %v3863 = vunpack.c.l.b16 %v3604
    %v3864 = vunpack.c.h.b16 %v3604
    %v3865 = vunpack.c.l.b16 %v3605
    %v3866 = vpack.c.b16 %v3725, %v3722
    %v3867 = vpack.c.b16 %v3726, %v3723
    %v3868 = vpack.c.b16 %v3727, %v3724
    %v3869 = vpack.c.b16 %v3731, %v3728
    %v3870 = vpack.c.b16 %v3732, %v3729
    %v3871 = vpack.c.b16 %v3733, %v3730
    %v3872 = vpack.c.b16 %v3737, %v3734
    %v3873 = vpack.c.b16 %v3738, %v3735
    %v3874 = vpack.c.b16 %v3739, %v3736
    %v3875 = vpack.c.b16 %v3743, %v3740
    %v3876 = vpack.c.b16 %v3744, %v3741
    %v3877 = vpack.c.b16 %v3745, %v3742
    %v3878 = vpack.c.b16 %v3749, %v3746
    %v3879 = vpack.c.b16 %v3750, %v3747
    %v3880 = vpack.c.b16 %v3751, %v3748
    %v3881 = vpack.c.b16 %v3755, %v3752
    %v3882 = vpack.c.b16 %v3756, %v3753
    %v3883 = vpack.c.b16 %v3757, %v3754
    %v3884 = vpack.c.b16 %v3761, %v3758
    %v3885 = vpack.c.b16 %v3762, %v3759
    %v3886 = vpack.c.b16 %v3763, %v3760
    %v3887 = vpack.c.b16 %v3767, %v3764
    %v3888 = vpack.c.b16 %v3768, %v3765
    %v3889 = vpack.c.b16 %v3769, %v3766
    %v3890 = vpack.c.b16 %v3773, %v3770
    %v3891 = vpack.c.b16 %v3774, %v3771
    %v3892 = vpack.c.b16 %v3775, %v3772
    %v3893 = vpack.c.b16 %v3779, %v3776
    %v3894 = vpack.c.b16 %v3780, %v3777
    %v3895 = vpack.c.b16 %v3781, %v3778
    %v3896 = vpack.c.b16 %v3785, %v3782
    %v3897 = vpack.c.b16 %v3786, %v3783
    %v3898 = vpack.c.b16 %v3787, %v3784
    %v3899 = vpack.c.b16 %v3791, %v3788
    %v3900 = vpack.c.b16 %v3792, %v3789
    %v3901 = vpack.c.b16 %v3793, %v3790
    %v3902 = vpack.c.b16 %v3797, %v3794
    %v3903 = vpack.c.b16 %v3798, %v3795
    %v3904 = vpack.c.b16 %v3799, %v3796
    %v3905 = vpack.c.b16 %v3803, %v3800
    %v3906 = vpack.c.b16 %v3804, %v3801
    %v3907 = vpack.c.b16 %v3805, %v3802
    %v3908 = vpack.c.b16 %v3809, %v3806
    %v3909 = vpack.c.b16 %v3810, %v3807
    %v3910 = vpack.c.b16 %v3811, %v3808
    %v3911 = vpack.c.b16 %v3815, %v3812
    %v3912 = vpack.c.b16 %v3816, %v3813
    %v3913 = vpack.c.b16 %v3817, %v3814
    %v3914 = vpack.c.b16 %v3821, %v3818
    %v3915 = vpack.c.b16 %v3822, %v3819
    %v3916 = vpack.c.b16 %v3823, %v3820
    %v3917 = vpack.c.b16 %v3827, %v3824
    %v3918 = vpack.c.b16 %v3828, %v3825
    %v3919 = vpack.c.b16 %v3829, %v3826
    %v3920 = vpack.c.b16 %v3833, %v3830
    %v3921 = vpack.c.b16 %v3834, %v3831
    %v3922 = vpack.c.b16 %v3835, %v3832
    %v3923 = vpack.c.b16 %v3839, %v3836
    %v3924 = vpack.c.b16 %v3840, %v3837
    %v3925 = vpack.c.b16 %v3841, %v3838
    %v3926 = vpack.c.b16 %v3845, %v3842
    %v3927 = vpack.c.b16 %v3846, %v3843
    %v3928 = vpack.c.b16 %v3847, %v3844
    %v3929 = vpack.c.b16 %v3851, %v3848
    %v3930 = vpack.c.b16 %v3852, %v3849
    %v3931 = vpack.c.b16 %v3853, %v3850
    %v3932 = vpack.c.b16 %v3857, %v3854
    %v3933 = vpack.c.b16 %v3858, %v3855
    %v3934 = vpack.c.b16 %v3859, %v3856
    %v3935 = vpack.c.b16 %v3863, %v3860
    %v3936 = vpack.c.b16 %v3864, %v3861
    %v3937 = vpack.c.b16 %v3865, %v3862
    %4010 = vmatprep.subr.bf16.mxu0 %v3867
    %4011 = vmatpush1.bf16.msra.mxu0 %v3866
    %4012 = vmatprep.subr.bf16.mxu0 %v3870
    %4013 = vmatpush1.bf16.msra.mxu0 %v3869
    %4014 = vmatprep.subr.bf16.mxu0 %v3873
    %4015 = vmatpush1.bf16.msra.mxu0 %v3872
    %4016 = vmatprep.subr.bf16.mxu0 %v3876
    %4017 = vmatpush1.bf16.msra.mxu0 %v3875
    %4018 = vmatprep.subr.bf16.mxu0 %v3879
    %4019 = vmatpush1.bf16.msra.mxu0 %v3878
    %4020 = vmatprep.subr.bf16.mxu0 %v3882
    %4021 = vmatpush1.bf16.msra.mxu0 %v3881
    %4022 = vmatprep.subr.bf16.mxu0 %v3885
    %4023 = vmatpush1.bf16.msra.mxu0 %v3884
    %4024 = vmatprep.subr.bf16.mxu0 %v3888
    %4025 = vmatpush1.bf16.msra.mxu0 %v3887
    %4026 = vmatprep.subr.bf16.mxu0 %v3891
    %4027 = vmatpush1.bf16.msra.mxu0 %v3890
    %4028 = vmatprep.subr.bf16.mxu0 %v3894
    %4029 = vmatpush1.bf16.msra.mxu0 %v3893
    %4030 = vmatprep.subr.bf16.mxu0 %v3897
    %4031 = vmatpush1.bf16.msra.mxu0 %v3896
    %4032 = vmatprep.subr.bf16.mxu0 %v3900
    %4033 = vmatpush1.bf16.msra.mxu0 %v3899
    %4034 = vmatprep.subr.bf16.mxu0 %v3903
    %4035 = vmatpush1.bf16.msra.mxu0 %v3902
    %4036 = vmatprep.subr.bf16.mxu0 %v3906
    %4037 = vmatpush1.bf16.msra.mxu0 %v3905
    %4038 = vmatprep.subr.bf16.mxu0 %v3909
    %4039 = vmatpush1.bf16.msra.mxu0 %v3908
    %4040 = vmatprep.subr.bf16.mxu0 %v3912
    %4041 = vmatpush1.bf16.msra.mxu0 %v3911
    %4042 = vmatprep.mubr.bf16.mxu0 %v3607
    %4043 = vmatmul.mubr.bf16.gmra.mrb[0].mxu0 %v3606
    %v4044 = vpop.f32.mrb[0].mxu0
    %v4045 = vadd.f32 %v3614, %v4044
    %v4046 = vpop.f32.mrb[0].mxu0
    %v4047 = vadd.f32 %v3618, %v4046
    %v4048 = vpop.f32.mrb[0].mxu0
    %v4049 = vpop.f32.mrb[0].mxu0
    %4050 = vdwg.mxu0
    %4051 = vmatprep.subr.bf16.mxu0 %v3915
    %4052 = vmatpush1.bf16.msra.mxu0 %v3914
    %4053 = vmatprep.subr.bf16.mxu0 %v3918
    %4054 = vmatpush1.bf16.msra.mxu0 %v3917
    %4055 = vmatprep.subr.bf16.mxu0 %v3921
    %4056 = vmatpush1.bf16.msra.mxu0 %v3920
    %4057 = vmatprep.subr.bf16.mxu0 %v3924
    %4058 = vmatpush1.bf16.msra.mxu0 %v3923
    %4059 = vmatprep.subr.bf16.mxu0 %v3927
    %4060 = vmatpush1.bf16.msra.mxu0 %v3926
    %4061 = vmatprep.subr.bf16.mxu0 %v3930
    %4062 = vmatpush1.bf16.msra.mxu0 %v3929
    %4063 = vmatprep.subr.bf16.mxu0 %v3933
    %4064 = vmatpush1.bf16.msra.mxu0 %v3932
    %4065 = vmatprep.subr.bf16.mxu0 %v3936
    %4066 = vmatpush1.bf16.msra.mxu0 %v3935
    %4067 = vmatprep.subr.bf16.mxu0 0
    %4068 = vmatpush1.bf16.msra.mxu0 0
    %4069 = vmatprep.subr.bf16.mxu0 0
    %4070 = vmatpush1.bf16.msra.mxu0 0
    %4071 = vmatprep.subr.bf16.mxu0 0
    %4072 = vmatpush1.bf16.msra.mxu0 0
    %4073 = vmatprep.subr.bf16.mxu0 0
    %4074 = vmatpush1.bf16.msra.mxu0 0
    %4075 = vmatprep.subr.bf16.mxu0 0
    %4076 = vmatpush1.bf16.msra.mxu0 0
    %4077 = vmatprep.subr.bf16.mxu0 0
    %4078 = vmatpush1.bf16.msra.mxu0 0
    %4079 = vmatprep.subr.bf16.mxu0 0
    %4080 = vmatpush1.bf16.msra.mxu0 0
    %4081 = vmatprep.subr.bf16.mxu0 0
    %4082 = vmatpush1.bf16.msra.mxu0 0
    %4083 = vmatprep.mubr.bf16.mxu0 0
    %4084 = vmatmul.mubr.bf16.gmra.mrb[0].mxu0 %v3608
    %v4085 = vpop.f32.mrb[0].mxu0
    %v4086 = vadd.f32 %v4045, %v4085
    %v4087 = vpop.f32.mrb[0].mxu0
    %v4088 = vadd.f32 %v4047, %v4087
    %v4089 = vpop.f32.mrb[0].mxu0
    %v4090 = vpop.f32.mrb[0].mxu0
    %4091 = vdwg.mxu0
    %4092 = vmatprep.subr.bf16.mxu0 0
    %4093 = vmatpush1.bf16.msra.mxu0 %v3868
    %4094 = vmatprep.subr.bf16.mxu0 0
    %4095 = vmatpush1.bf16.msra.mxu0 %v3871
    %4096 = vmatprep.subr.bf16.mxu0 0
    %4097 = vmatpush1.bf16.msra.mxu0 %v3874
    %4098 = vmatprep.subr.bf16.mxu0 0
    %4099 = vmatpush1.bf16.msra.mxu0 %v3877
    %4100 = vmatprep.subr.bf16.mxu0 0
    %4101 = vmatpush1.bf16.msra.mxu0 %v3880
    %4102 = vmatprep.subr.bf16.mxu0 0
    %4103 = vmatpush1.bf16.msra.mxu0 %v3883
    %4104 = vmatprep.subr.bf16.mxu0 0
    %4105 = vmatpush1.bf16.msra.mxu0 %v3886
    %4106 = vmatprep.subr.bf16.mxu0 0
    %4107 = vmatpush1.bf16.msra.mxu0 %v3889
    %4108 = vmatprep.subr.bf16.mxu0 0
    %4109 = vmatpush1.bf16.msra.mxu0 %v3892
    %4110 = vmatprep.subr.bf16.mxu0 0
    %4111 = vmatpush1.bf16.msra.mxu0 %v3895
    %4112 = vmatprep.subr.bf16.mxu0 0
    %4113 = vmatpush1.bf16.msra.mxu0 %v3898
    %4114 = vmatprep.subr.bf16.mxu0 0
    %4115 = vmatpush1.bf16.msra.mxu0 %v3901
    %4116 = vmatprep.subr.bf16.mxu0 0
    %4117 = vmatpush1.bf16.msra.mxu0 %v3904
    %4118 = vmatprep.subr.bf16.mxu0 0
    %4119 = vmatpush1.bf16.msra.mxu0 %v3907
    %4120 = vmatprep.subr.bf16.mxu0 0
    %4121 = vmatpush1.bf16.msra.mxu0 %v3910
    %4122 = vmatprep.subr.bf16.mxu0 0
    %4123 = vmatpush1.bf16.msra.mxu0 %v3913
    %4124 = vmatprep.mubr.bf16.mxu0 %v3607
    %4125 = vmatmul.mubr.bf16.gmra.mrb[0].mxu0 %v3606
    %v4126 = vpop.f32.mrb[0].mxu0
    %v4127 = vadd.f32 %v3622, %v4126
    %v4128 = vpop.f32.mrb[0].mxu0
    %v4129 = vpop.f32.mrb[0].mxu0
    %v4130 = vpop.f32.mrb[0].mxu0
    %4131 = vdwg.mxu0
    %4132 = vmatprep.subr.bf16.mxu0 0
    %4133 = vmatpush1.bf16.msra.mxu0 %v3916
    %4134 = vmatprep.subr.bf16.mxu0 0
    %4135 = vmatpush1.bf16.msra.mxu0 %v3919
    %4136 = vmatprep.subr.bf16.mxu0 0
    %4137 = vmatpush1.bf16.msra.mxu0 %v3922
    %4138 = vmatprep.subr.bf16.mxu0 0
    %4139 = vmatpush1.bf16.msra.mxu0 %v3925
    %4140 = vmatprep.subr.bf16.mxu0 0
    %4141 = vmatpush1.bf16.msra.mxu0 %v3928
    %4142 = vmatprep.subr.bf16.mxu0 0
    %4143 = vmatpush1.bf16.msra.mxu0 %v3931
    %4144 = vmatprep.subr.bf16.mxu0 0
    %4145 = vmatpush1.bf16.msra.mxu0 %v3934
    %4146 = vmatprep.subr.bf16.mxu0 0
    %4147 = vmatpush1.bf16.msra.mxu0 %v3937
    %4148 = vmatprep.subr.bf16.mxu0 0
    %4149 = vmatpush1.bf16.msra.mxu0 0
    %4150 = vmatprep.subr.bf16.mxu0 0
    %4151 = vmatpush1.bf16.msra.mxu0 0
    %4152 = vmatprep.subr.bf16.mxu0 0
    %4153 = vmatpush1.bf16.msra.mxu0 0
    %4154 = vmatprep.subr.bf16.mxu0 0
    %4155 = vmatpush1.bf16.msra.mxu0 0
    %4156 = vmatprep.subr.bf16.mxu0 0
    %4157 = vmatpush1.bf16.msra.mxu0 0
    %4158 = vmatprep.subr.bf16.mxu0 0
    %4159 = vmatpush1.bf16.msra.mxu0 0
    %4160 = vmatprep.subr.bf16.mxu0 0
    %4161 = vmatpush1.bf16.msra.mxu0 0
    %4162 = vmatprep.subr.bf16.mxu0 0
    %4163 = vmatpush1.bf16.msra.mxu0 0
    %4164 = vmatprep.mubr.bf16.mxu0 0
    %4165 = vmatmul.mubr.bf16.gmra.mrb[0].mxu0 %v3608
    %v4166 = vpop.f32.mrb[0].mxu0
    %v4167 = vadd.f32 %v4127, %v4166
    %v4168 = vpop.f32.mrb[0].mxu0
    %v4169 = vpop.f32.mrb[0].mxu0
    %v4170 = vpop.f32.mrb[0].mxu0
    %4171 = vdwg.mxu0
    %4172 = vadd.xlane.f32.xlu0 %v4086
    %v4173 = vpop.xlane.xlu0 %4172
    %v4174 = vmul.f32 %v4173, %v2094
    %v4175 = vsub.f32 %v4086, %v4174
    %v4176 = vmul.f32 %v4175, %v4175
    %4177 = vadd.xlane.f32.xlu0 %v4176
    %v4178 = vpop.xlane.xlu0 %4177
    %v4179 = vmul.f32 %v4178, %v2094
    %v4180 = vadd.f32 %v4179, 1e-05
    %v4181 = vrsqrt.pop %v4180
    %v4182 = vmul.f32 %v4175, %v4181
    %4183 = vadd.xlane.f32.xlu0 %v4088
    %v4184 = vpop.xlane.xlu0 %4183
    %v4185 = vmul.f32 %v4184, %v2094
    %v4186 = vsub.f32 %v4088, %v4185
    %v4187 = vmul.f32 %v4186, %v4186
    %4188 = vadd.xlane.f32.xlu0 %v4187
    %v4189 = vpop.xlane.xlu0 %4188
    %v4190 = vmul.f32 %v4189, %v2094
    %v4191 = vadd.f32 %v4190, 1e-05
    %v4192 = vrsqrt.pop %v4191
    %v4193 = vmul.f32 %v4186, %v4192
    %4194 = vadd.xlane.f32.xlu0 %v4167
    %v4195 = vpop.xlane.xlu0 %4194
    %v4196 = vmul.f32 %v4195, %v2094
    %v4197 = vsub.f32 %v4167, %v4196
    %v4198 = vmul.f32 %v4197, %v4197
    %4199 = vadd.xlane.f32.xlu0 %v4198
    %v4200 = vpop.xlane.xlu0 %4199
    %v4201 = vmul.f32 %v4200, %v2094
    %v4202 = vadd.f32 %v4201, 1e-05
    %v4203 = vrsqrt.pop %v4202
    %v4204 = vmul.f32 %v4197, %v4203
    %v4205 = vld [vmem:[%s4 + $0x1f] sm:$0x7]
    %v4207 = vlaneseq
    %v4208 = vshrl.u32 %v4207, 7
    %v4209 = vsub.s32 0, %v4208
    %v4210 = vrot.slane %v4205, %v4209
    %v4211 = vlaneseq
    %v4212 = vshrl.u32 %v4211, 7
    %v4213 = vsub.s32 1, %v4212
    %v4214 = vrot.slane %v4205, %v4213
    %v4215 = vlaneseq
    %v4216 = vshrl.u32 %v4215, 7
    %v4217 = vsub.s32 2, %v4216
    %v4218 = vrot.slane %v4205, %v4217
    %v4222 = vmul.f32 %v4182, %v4210
    %v4223 = vmul.f32 %v4193, %v4214
    %v4224 = vmul.f32 %v4204, %v4218
    %v4225 = vld [vmem:[%s4 + $0x22] sm:$0x7]
    %v4227 = vlaneseq
    %v4228 = vshrl.u32 %v4227, 7
    %v4229 = vsub.s32 0, %v4228
    %v4230 = vrot.slane %v4225, %v4229
    %v4231 = vlaneseq
    %v4232 = vshrl.u32 %v4231, 7
    %v4233 = vsub.s32 1, %v4232
    %v4234 = vrot.slane %v4225, %v4233
    %v4235 = vlaneseq
    %v4236 = vshrl.u32 %v4235, 7
    %v4237 = vsub.s32 2, %v4236
    %v4238 = vrot.slane %v4225, %v4237
    %v4242 = vadd.f32 %v4222, %v4230
    %v4243 = vadd.f32 %v4223, %v4234
    %v4244 = vadd.f32 %v4224, %v4238
    %v4245 = vtanh.pop %v4242
    %v4246 = vtanh.pop %v4243
    %v4247 = vtanh.pop %v4244
    %v4248 = vlaneseq
    %v4249 = vshrl.u32 %v4248, 7
    %vm4250 = vcmp.lt.s32.totalorder %v4249, 2
    %v4251 = vsel %vm4250, 1, 0
    %v4252 = vcvt.s32.f32 %v4251
    %v4253 = vadd.f32 %v3078, 1.0
    %v4254 = vadd.f32 %v3080, 1.0
    %v4255 = vmul.f32 %v2563, %v2563
    %v4256 = vmul.f32 %v2565, %v2565
    %v4257 = vsub.f32 %v4253, %v4255
    %v4258 = vsub.f32 %v4254, %v4256
    %v4259 = vmul.f32 %v3078, 1.442695
    %v4260 = vpow.pop %v4259
    %v4261 = vmul.f32 %v3080, 1.442695
    %v4262 = vpow.pop %v4261
    %v4263 = vsub.f32 %v4257, %v4260
    %v4264 = vsub.f32 %v4258, %v4262
    %v4265 = vmul.f32 %v4252, %v4263
    %v4266 = vmul.f32 %v4252, %v4264
    %v4267 = vsel %vm103, %v4266, 0.0
    %v4268 = vadd.f32 %v4265, %v4267
    %4269 = vadd.xlane.f32.xlu0 %v4268
    %v4270 = vpop.xlane.xlu0 %4269
    %v4271 = vrot.slane %v4270, 4
    %v4272 = vadd.f32 %v4270, %v4271
    %v4273 = vrot.slane %v4272, 2
    %v4274 = vadd.f32 %v4272, %v4273
    %v4275 = vrot.slane %v4274, 1
    %v4276 = vadd.f32 %v4274, %v4275
    %s4277 = vtos %v4276
    %s4278 = smul.f32 %s4277, -0.25
    %v4279 = vsub.f32 %v1427, %v4245
    %v4280 = vsub.f32 %v1428, %v4246
    %v4281 = vsub.f32 %v1429, %v4247
    %v4282 = vmul.f32 %v4252, %v4279
    %v4283 = vmul.f32 %v4252, %v4280
    %v4284 = vmul.f32 %v4252, %v4281
    %v4285 = vmul.f32 %v4282, %v4279
    %v4286 = vmul.f32 %v4283, %v4280
    %v4287 = vmul.f32 %v4284, %v4281
    %v4288 = vadd.f32 %v4285, %v4286
    %v4289 = vadd.f32 %v4288, %v4287
    %4290 = vadd.xlane.f32.xlu0 %v4289
    %v4291 = vpop.xlane.xlu0 %4290
    %v4292 = vrot.slane %v4291, 4
    %v4293 = vadd.f32 %v4291, %v4292
    %v4294 = vrot.slane %v4293, 2
    %v4295 = vadd.f32 %v4293, %v4294
    %v4296 = vrot.slane %v4295, 1
    %v4297 = vadd.f32 %v4295, %v4296
    %s4298 = vtos %v4297
    %v4299 = vrcp.pop 256.0
    %s4300 = vtos %v4299
    %s4301 = smul.f32 %s4298, %s4300
    %4303 = vrot.lane.b32.xlu0 %v3078, 64
    %v4304 = vpop.permute.xlu0 %4303
    %v4306 = vadd.f32 %v3078, %v4304
    %v4307 = vmax.f32 %v4306, 1e-06
    %v4308 = vmin.f32 %v4307, 1.0
    %v4309 = vrcp.pop %v4308
    %v4310 = vmul.f32 %v2563, %v4304
    %4312 = vrot.lane.b32.xlu0 %v4310, 64
    %v4313 = vpop.permute.xlu0 %4312
    %v4315 = vadd.f32 %v4310, %v4313
    %v4316 = vmul.f32 %v4315, %v4309
    %v4317 = vmul.f32 %v3078, %v4304
    %v4318 = vmul.f32 %v4317, %v4309
    %v4319 = vadd.f32 %v4318, %v3080
    %v4320 = vmax.f32 %v4319, 1e-06
    %v4321 = vmin.f32 %v4320, 1.0
    %v4322 = vrcp.pop %v4321
    %v4323 = vmul.f32 %v4316, %v3080
    %v4324 = vmul.f32 %v2565, %v4318
    %v4325 = vadd.f32 %v4323, %v4324
    %v4326 = vmul.f32 %v4325, %v4322
    %v4327 = vmul.f32 %v4318, %v3080
    %v4328 = vmul.f32 %v4327, %v4322
    %v4329 = vmul.f32 %v4328, 0.5
    %v4330 = vmul.f32 %v4329, 1.442695
    %v4331 = vpow.pop %v4330
    %4333 = vrot.lane.b32.xlu0 %v51, 64
    %v4334 = vpop.permute.xlu0 %4333
    %v4336 = vmul.f32 %v4331, %v4334
    %v4337 = vadd.f32 %v4336, %v4326
    %4339 = vrot.lane.b32.xlu0 %v4337, 64
    %v4340 = vpop.permute.xlu0 %4339
    %v4342 = vsel %vm103, %v1244, %v4340
    %v4343 = vld [vmem:[#allocation2 + $0x10] sm:$0xff]
    %v4344 = vld [vmem:[#allocation2 + $0x30] sm:$0xff]
    %v4345 = vld [vmem:[#allocation2 + $0x50] sm:$0xff]
    %v4346 = vld [vmem:[#allocation2 + $0x70] sm:$0xff]
    %v4347 = vld [vmem:[#allocation2 + $0x90] sm:$0xff]
    %v4348 = vld [vmem:[#allocation2 + $0xb0] sm:$0xff]
    %v4349 = vld [vmem:[#allocation2 + $0xd0] sm:$0xff]
    %v4350 = vld [vmem:[#allocation2 + $0xf0] sm:$0xff]
    %v4351 = vld [vmem:[#allocation2 + $0x110] sm:$0xff]
    %v4352 = vld [vmem:[#allocation2 + $0x130] sm:$0xff]
    %v4353 = vld [vmem:[#allocation2 + $0x150] sm:$0xff]
    %v4354 = vld [vmem:[#allocation2 + $0x170] sm:$0xff]
    %v4355 = vld [vmem:[#allocation2 + $0x190] sm:$0xff]
    %v4356 = vld [vmem:[#allocation2 + $0x1b0] sm:$0xff]
    %v4357 = vld [vmem:[#allocation2 + $0x1d0] sm:$0xff]
    %v4358 = vld [vmem:[#allocation2 + $0x1f0] sm:$0xff]
    %v4359 = vld [vmem:[%s4 + $0x25] sm:$0x1]
    %v4361 = vlaneseq
    %v4362 = vshrl.u32 %v4361, 7
    %v4363 = vsub.s32 0, %v4362
    %v4364 = vrot.slane %v4359, %v4363
    %4382 = vrot.lane.b32.xlu0 %v4343, 96
    %v4383 = vpop.permute.xlu0 %4382
    %4384 = vrot.lane.b32.xlu0 %v4344, 96
    %v4385 = vpop.permute.xlu0 %4384
    %4386 = vrot.lane.b32.xlu0 %v4345, 96
    %v4387 = vpop.permute.xlu0 %4386
    %4388 = vrot.lane.b32.xlu0 %v4346, 96
    %v4389 = vpop.permute.xlu0 %4388
    %4390 = vrot.lane.b32.xlu0 %v4347, 96
    %v4391 = vpop.permute.xlu0 %4390
    %4392 = vrot.lane.b32.xlu0 %v4348, 96
    %v4393 = vpop.permute.xlu0 %4392
    %4394 = vrot.lane.b32.xlu0 %v4349, 96
    %v4395 = vpop.permute.xlu0 %4394
    %4396 = vrot.lane.b32.xlu0 %v4350, 96
    %v4397 = vpop.permute.xlu0 %4396
    %4398 = vrot.lane.b32.xlu0 %v4351, 96
    %v4399 = vpop.permute.xlu0 %4398
    %4400 = vrot.lane.b32.xlu0 %v4352, 96
    %v4401 = vpop.permute.xlu0 %4400
    %4402 = vrot.lane.b32.xlu0 %v4353, 96
    %v4403 = vpop.permute.xlu0 %4402
    %4404 = vrot.lane.b32.xlu0 %v4354, 96
    %v4405 = vpop.permute.xlu0 %4404
    %4406 = vrot.lane.b32.xlu0 %v4355, 96
    %v4407 = vpop.permute.xlu0 %4406
    %4408 = vrot.lane.b32.xlu0 %v4356, 96
    %v4409 = vpop.permute.xlu0 %4408
    %4410 = vrot.lane.b32.xlu0 %v4357, 96
    %v4411 = vpop.permute.xlu0 %4410
    %4412 = vrot.lane.b32.xlu0 %v4358, 96
    %v4413 = vpop.permute.xlu0 %4412
    %4430 = vmatprep.subr.mxu0 0.0
    %4431 = vmatpush1.msra.mxu0 %v4383
    %4432 = vmatprep.subr.mxu0 0.0
    %4433 = vmatpush1.msra.mxu0 %v4385
    %4434 = vmatprep.subr.mxu0 0.0
    %4435 = vmatpush1.msra.mxu0 %v4387
    %4436 = vmatprep.subr.mxu0 0.0
    %4437 = vmatpush1.msra.mxu0 %v4389
    %4438 = vmatprep.subr.mxu0 0.0
    %4439 = vmatpush1.msra.mxu0 %v4391
    %4440 = vmatprep.subr.mxu0 0.0
    %4441 = vmatpush1.msra.mxu0 %v4393
    %4442 = vmatprep.subr.mxu0 0.0
    %4443 = vmatpush1.msra.mxu0 %v4395
    %4444 = vmatprep.subr.mxu0 0.0
    %4445 = vmatpush1.msra.mxu0 %v4397
    %4446 = vmatprep.subr.mxu0 0.0
    %4447 = vmatpush1.msra.mxu0 %v4399
    %4448 = vmatprep.subr.mxu0 0.0
    %4449 = vmatpush1.msra.mxu0 %v4401
    %4450 = vmatprep.subr.mxu0 0.0
    %4451 = vmatpush1.msra.mxu0 %v4403
    %4452 = vmatprep.subr.mxu0 0.0
    %4453 = vmatpush1.msra.mxu0 %v4405
    %4454 = vmatprep.subr.mxu0 0.0
    %4455 = vmatpush1.msra.mxu0 %v4407
    %4456 = vmatprep.subr.mxu0 0.0
    %4457 = vmatpush1.msra.mxu0 %v4409
    %4458 = vmatprep.subr.mxu0 0.0
    %4459 = vmatpush1.msra.mxu0 %v4411
    %4460 = vmatprep.subr.mxu0 0.0
    %4461 = vmatpush1.msra.mxu0 %v4413
    %4462 = vmatprep.subr.mxu0 0.0
    %4463 = vmatpush1.msra.mxu0 0.0
    %4464 = vmatprep.subr.mxu0 0.0
    %4465 = vmatpush1.msra.mxu0 0.0
    %4466 = vmatprep.subr.mxu0 0.0
    %4467 = vmatpush1.msra.mxu0 0.0
    %4468 = vmatprep.subr.mxu0 0.0
    %4469 = vmatpush1.msra.mxu0 0.0
    %4470 = vmatprep.subr.mxu0 0.0
    %4471 = vmatpush1.msra.mxu0 0.0
    %4472 = vmatprep.subr.mxu0 0.0
    %4473 = vmatpush1.msra.mxu0 0.0
    %4474 = vmatprep.subr.mxu0 0.0
    %4475 = vmatpush1.msra.mxu0 0.0
    %4476 = vmatprep.subr.mxu0 0.0
    %4477 = vmatpush1.msra.mxu0 0.0
    %4478 = vmatprep.subr.mxu0 0.0
    %4479 = vmatpush1.msra.mxu0 0.0
    %4480 = vmatprep.subr.mxu0 0.0
    %4481 = vmatpush1.msra.mxu0 0.0
    %4482 = vmatprep.subr.mxu0 0.0
    %4483 = vmatpush1.msra.mxu0 0.0
    %4484 = vmatprep.subr.mxu0 0.0
    %4485 = vmatpush1.msra.mxu0 0.0
    %4486 = vmatprep.subr.mxu0 0.0
    %4487 = vmatpush1.msra.mxu0 0.0
    %4488 = vmatprep.subr.mxu0 0.0
    %4489 = vmatpush1.msra.mxu0 0.0
    %4490 = vmatprep.subr.mxu0 0.0
    %4491 = vmatpush1.msra.mxu0 0.0
    %4492 = vmatprep.subr.mxu0 0.0
    %4493 = vmatpush1.msra.mxu0 0.0
    %4494 = vmatprep.mubr.f32.mxu0 0.0
    %4495 = vmatmul.mubr.f32.gmra.mrb[0].mxu0 %v4342
    %v4496 = vpop.f32.mrb[0].mxu0
    %v4497 = vadd.f32 %v4364, %v4496
    %v4498 = vpop.f32.mrb[0].mxu0
    %4499 = vdwg.mxu0
    %v4500 = vmax.f32 %v4497, 0.0
    %v4501 = vld [vmem:[#allocation2 + $0x10] sm:$0xff]
    %v4502 = vld [vmem:[#allocation2 + $0x30] sm:$0xff]
    %v4503 = vld [vmem:[#allocation2 + $0x50] sm:$0xff]
    %v4504 = vld [vmem:[#allocation2 + $0x70] sm:$0xff]
    %v4505 = vld [vmem:[%s4 + $0x26] sm:$0x1]
    %v4507 = vlaneseq
    %v4508 = vshrl.u32 %v4507, 7
    %v4509 = vsub.s32 0, %v4508
    %v4510 = vrot.slane %v4505, %v4509
    %4516 = vrot.lane.b32.xlu0 %v4501, 64
    %v4517 = vpop.permute.xlu0 %4516
    %4518 = vrot.lane.b32.xlu0 %v4502, 64
    %v4519 = vpop.permute.xlu0 %4518
    %4520 = vrot.lane.b32.xlu0 %v4503, 64
    %v4521 = vpop.permute.xlu0 %4520
    %4522 = vrot.lane.b32.xlu0 %v4504, 64
    %v4523 = vpop.permute.xlu0 %4522
    %v4529 = vsel %vm1243, %v4500, 0
    %4531 = vmatprep.subr.mxu0 0.0
    %4532 = vmatpush1.msra.mxu0 %v4517
    %4533 = vmatprep.subr.mxu0 0.0
    %4534 = vmatpush1.msra.mxu0 %v4519
    %4535 = vmatprep.subr.mxu0 0.0
    %4536 = vmatpush1.msra.mxu0 %v4521
    %4537 = vmatprep.subr.mxu0 0.0
    %4538 = vmatpush1.msra.mxu0 %v4523
    %4539 = vmatprep.subr.mxu0 0.0
    %4540 = vmatpush1.msra.mxu0 0.0
    %4541 = vmatprep.subr.mxu0 0.0
    %4542 = vmatpush1.msra.mxu0 0.0
    %4543 = vmatprep.subr.mxu0 0.0
    %4544 = vmatpush1.msra.mxu0 0.0
    %4545 = vmatprep.subr.mxu0 0.0
    %4546 = vmatpush1.msra.mxu0 0.0
    %4547 = vmatprep.subr.mxu0 0.0
    %4548 = vmatpush1.msra.mxu0 0.0
    %4549 = vmatprep.subr.mxu0 0.0
    %4550 = vmatpush1.msra.mxu0 0.0
    %4551 = vmatprep.subr.mxu0 0.0
    %4552 = vmatpush1.msra.mxu0 0.0
    %4553 = vmatprep.subr.mxu0 0.0
    %4554 = vmatpush1.msra.mxu0 0.0
    %4555 = vmatprep.subr.mxu0 0.0
    %4556 = vmatpush1.msra.mxu0 0.0
    %4557 = vmatprep.subr.mxu0 0.0
    %4558 = vmatpush1.msra.mxu0 0.0
    %4559 = vmatprep.subr.mxu0 0.0
    %4560 = vmatpush1.msra.mxu0 0.0
    %4561 = vmatprep.subr.mxu0 0.0
    %4562 = vmatpush1.msra.mxu0 0.0
    %4563 = vmatprep.subr.mxu0 0.0
    %4564 = vmatpush1.msra.mxu0 0.0
    %4565 = vmatprep.subr.mxu0 0.0
    %4566 = vmatpush1.msra.mxu0 0.0
    %4567 = vmatprep.subr.mxu0 0.0
    %4568 = vmatpush1.msra.mxu0 0.0
    %4569 = vmatprep.subr.mxu0 0.0
    %4570 = vmatpush1.msra.mxu0 0.0
    %4571 = vmatprep.subr.mxu0 0.0
    %4572 = vmatpush1.msra.mxu0 0.0
    %4573 = vmatprep.subr.mxu0 0.0
    %4574 = vmatpush1.msra.mxu0 0.0
    %4575 = vmatprep.subr.mxu0 0.0
    %4576 = vmatpush1.msra.mxu0 0.0
    %4577 = vmatprep.subr.mxu0 0.0
    %4578 = vmatpush1.msra.mxu0 0.0
    %4579 = vmatprep.subr.mxu0 0.0
    %4580 = vmatpush1.msra.mxu0 0.0
    %4581 = vmatprep.subr.mxu0 0.0
    %4582 = vmatpush1.msra.mxu0 0.0
    %4583 = vmatprep.subr.mxu0 0.0
    %4584 = vmatpush1.msra.mxu0 0.0
    %4585 = vmatprep.subr.mxu0 0.0
    %4586 = vmatpush1.msra.mxu0 0.0
    %4587 = vmatprep.subr.mxu0 0.0
    %4588 = vmatpush1.msra.mxu0 0.0
    %4589 = vmatprep.subr.mxu0 0.0
    %4590 = vmatpush1.msra.mxu0 0.0
    %4591 = vmatprep.subr.mxu0 0.0
    %4592 = vmatpush1.msra.mxu0 0.0
    %4593 = vmatprep.subr.mxu0 0.0
    %4594 = vmatpush1.msra.mxu0 0.0
    %4595 = vmatprep.mubr.f32.mxu0 0.0
    %4596 = vmatmul.mubr.f32.gmra.mrb[0].mxu0 %v4529
    %v4597 = vpop.f32.mrb[0].mxu0
    %v4598 = vadd.f32 %v4510, %v4597
    %v4599 = vpop.f32.mrb[0].mxu0
    %4600 = vdwg.mxu0
    %v4601 = vmax.f32 %v4598, 0.0
    %v4602 = vld [vmem:[%s4 + $0x27] sm:$0x1]
    %v4604 = vlaneseq
    %v4605 = vshrl.u32 %v4604, 7
    %v4606 = vsub.s32 0, %v4605
    %v4607 = vrot.slane %v4602, %v4606
    %4609 = vrot.lane.b32.xlu0 %v4501, 32
    %v4610 = vpop.permute.xlu0 %4609
    %4611 = vrot.lane.b32.xlu0 %v4502, 32
    %v4612 = vpop.permute.xlu0 %4611
    %4613 = vrot.lane.b32.xlu0 %v4503, 32
    %v4614 = vpop.permute.xlu0 %4613
    %4615 = vrot.lane.b32.xlu0 %v4504, 32
    %v4616 = vpop.permute.xlu0 %4615
    %v4622 = vsel %vm1243, %v4601, 0
    %4624 = vmatprep.subr.mxu0 0.0
    %4625 = vmatpush1.msra.mxu0 %v4610
    %4626 = vmatprep.subr.mxu0 0.0
    %4627 = vmatpush1.msra.mxu0 %v4612
    %4628 = vmatprep.subr.mxu0 0.0
    %4629 = vmatpush1.msra.mxu0 %v4614
    %4630 = vmatprep.subr.mxu0 0.0
    %4631 = vmatpush1.msra.mxu0 %v4616
    %4632 = vmatprep.subr.mxu0 0.0
    %4633 = vmatpush1.msra.mxu0 0.0
    %4634 = vmatprep.subr.mxu0 0.0
    %4635 = vmatpush1.msra.mxu0 0.0
    %4636 = vmatprep.subr.mxu0 0.0
    %4637 = vmatpush1.msra.mxu0 0.0
    %4638 = vmatprep.subr.mxu0 0.0
    %4639 = vmatpush1.msra.mxu0 0.0
    %4640 = vmatprep.subr.mxu0 0.0
    %4641 = vmatpush1.msra.mxu0 0.0
    %4642 = vmatprep.subr.mxu0 0.0
    %4643 = vmatpush1.msra.mxu0 0.0
    %4644 = vmatprep.subr.mxu0 0.0
    %4645 = vmatpush1.msra.mxu0 0.0
    %4646 = vmatprep.subr.mxu0 0.0
    %4647 = vmatpush1.msra.mxu0 0.0
    %4648 = vmatprep.subr.mxu0 0.0
    %4649 = vmatpush1.msra.mxu0 0.0
    %4650 = vmatprep.subr.mxu0 0.0
    %4651 = vmatpush1.msra.mxu0 0.0
    %4652 = vmatprep.subr.mxu0 0.0
    %4653 = vmatpush1.msra.mxu0 0.0
    %4654 = vmatprep.subr.mxu0 0.0
    %4655 = vmatpush1.msra.mxu0 0.0
    %4656 = vmatprep.subr.mxu0 0.0
    %4657 = vmatpush1.msra.mxu0 0.0
    %4658 = vmatprep.subr.mxu0 0.0
    %4659 = vmatpush1.msra.mxu0 0.0
    %4660 = vmatprep.subr.mxu0 0.0
    %4661 = vmatpush1.msra.mxu0 0.0
    %4662 = vmatprep.subr.mxu0 0.0
    %4663 = vmatpush1.msra.mxu0 0.0
    %4664 = vmatprep.subr.mxu0 0.0
    %4665 = vmatpush1.msra.mxu0 0.0
    %4666 = vmatprep.subr.mxu0 0.0
    %4667 = vmatpush1.msra.mxu0 0.0
    %4668 = vmatprep.subr.mxu0 0.0
    %4669 = vmatpush1.msra.mxu0 0.0
    %4670 = vmatprep.subr.mxu0 0.0
    %4671 = vmatpush1.msra.mxu0 0.0
    %4672 = vmatprep.subr.mxu0 0.0
    %4673 = vmatpush1.msra.mxu0 0.0
    %4674 = vmatprep.subr.mxu0 0.0
    %4675 = vmatpush1.msra.mxu0 0.0
    %4676 = vmatprep.subr.mxu0 0.0
    %4677 = vmatpush1.msra.mxu0 0.0
    %4678 = vmatprep.subr.mxu0 0.0
    %4679 = vmatpush1.msra.mxu0 0.0
    %4680 = vmatprep.subr.mxu0 0.0
    %4681 = vmatpush1.msra.mxu0 0.0
    %4682 = vmatprep.subr.mxu0 0.0
    %4683 = vmatpush1.msra.mxu0 0.0
    %4684 = vmatprep.subr.mxu0 0.0
    %4685 = vmatpush1.msra.mxu0 0.0
    %4686 = vmatprep.subr.mxu0 0.0
    %4687 = vmatpush1.msra.mxu0 0.0
    %4688 = vmatprep.mubr.f32.mxu0 0.0
    %4689 = vmatmul.mubr.f32.gmra.mrb[0].mxu0 %v4622
    %v4690 = vpop.f32.mrb[0].mxu0
    %v4691 = vadd.f32 %v4607, %v4690
    %v4692 = vpop.f32.mrb[0].mxu0
    %4693 = vdwg.mxu0
    %v4694 = vld [vmem:[#allocation2 + $0x18] sm:$0xff]
    %v4695 = vld [vmem:[#allocation2 + $0x38] sm:$0xff]
    %v4696 = vld [vmem:[#allocation2 + $0x58] sm:$0xff]
    %v4697 = vld [vmem:[#allocation2 + $0x78] sm:$0xff]
    %v4698 = vld [vmem:[#allocation2 + $0x98] sm:$0xff]
    %v4699 = vld [vmem:[#allocation2 + $0xb8] sm:$0xff]
    %v4700 = vld [vmem:[#allocation2 + $0xd8] sm:$0xff]
    %v4701 = vld [vmem:[#allocation2 + $0xf8] sm:$0xff]
    %v4702 = vld [vmem:[%s4 + $0x28] sm:$0x1]
    %v4704 = vlaneseq
    %v4705 = vshrl.u32 %v4704, 7
    %v4706 = vsub.s32 0, %v4705
    %v4707 = vrot.slane %v4702, %v4706
    %v4710 = vsel %vm103, %v1244, 0
    %4712 = vmatprep.subr.mxu0 0.0
    %4713 = vmatpush1.msra.mxu0 %v4694
    %4714 = vmatprep.subr.mxu0 0.0
    %4715 = vmatpush1.msra.mxu0 %v4695
    %4716 = vmatprep.subr.mxu0 0.0
    %4717 = vmatpush1.msra.mxu0 %v4696
    %4718 = vmatprep.subr.mxu0 0.0
    %4719 = vmatpush1.msra.mxu0 %v4697
    %4720 = vmatprep.subr.mxu0 0.0
    %4721 = vmatpush1.msra.mxu0 %v4698
    %4722 = vmatprep.subr.mxu0 0.0
    %4723 = vmatpush1.msra.mxu0 %v4699
    %4724 = vmatprep.subr.mxu0 0.0
    %4725 = vmatpush1.msra.mxu0 %v4700
    %4726 = vmatprep.subr.mxu0 0.0
    %4727 = vmatpush1.msra.mxu0 %v4701
    %4728 = vmatprep.subr.mxu0 0.0
    %4729 = vmatpush1.msra.mxu0 0.0
    %4730 = vmatprep.subr.mxu0 0.0
    %4731 = vmatpush1.msra.mxu0 0.0
    %4732 = vmatprep.subr.mxu0 0.0
    %4733 = vmatpush1.msra.mxu0 0.0
    %4734 = vmatprep.subr.mxu0 0.0
    %4735 = vmatpush1.msra.mxu0 0.0
    %4736 = vmatprep.subr.mxu0 0.0
    %4737 = vmatpush1.msra.mxu0 0.0
    %4738 = vmatprep.subr.mxu0 0.0
    %4739 = vmatpush1.msra.mxu0 0.0
    %4740 = vmatprep.subr.mxu0 0.0
    %4741 = vmatpush1.msra.mxu0 0.0
    %4742 = vmatprep.subr.mxu0 0.0
    %4743 = vmatpush1.msra.mxu0 0.0
    %4744 = vmatprep.subr.mxu0 0.0
    %4745 = vmatpush1.msra.mxu0 0.0
    %4746 = vmatprep.subr.mxu0 0.0
    %4747 = vmatpush1.msra.mxu0 0.0
    %4748 = vmatprep.subr.mxu0 0.0
    %4749 = vmatpush1.msra.mxu0 0.0
    %4750 = vmatprep.subr.mxu0 0.0
    %4751 = vmatpush1.msra.mxu0 0.0
    %4752 = vmatprep.subr.mxu0 0.0
    %4753 = vmatpush1.msra.mxu0 0.0
    %4754 = vmatprep.subr.mxu0 0.0
    %4755 = vmatpush1.msra.mxu0 0.0
    %4756 = vmatprep.subr.mxu0 0.0
    %4757 = vmatpush1.msra.mxu0 0.0
    %4758 = vmatprep.subr.mxu0 0.0
    %4759 = vmatpush1.msra.mxu0 0.0
    %4760 = vmatprep.subr.mxu0 0.0
    %4761 = vmatpush1.msra.mxu0 0.0
    %4762 = vmatprep.subr.mxu0 0.0
    %4763 = vmatpush1.msra.mxu0 0.0
    %4764 = vmatprep.subr.mxu0 0.0
    %4765 = vmatpush1.msra.mxu0 0.0
    %4766 = vmatprep.subr.mxu0 0.0
    %4767 = vmatpush1.msra.mxu0 0.0
    %4768 = vmatprep.subr.mxu0 0.0
    %4769 = vmatpush1.msra.mxu0 0.0
    %4770 = vmatprep.subr.mxu0 0.0
    %4771 = vmatpush1.msra.mxu0 0.0
    %4772 = vmatprep.subr.mxu0 0.0
    %4773 = vmatpush1.msra.mxu0 0.0
    %4774 = vmatprep.subr.mxu0 0.0
    %4775 = vmatpush1.msra.mxu0 0.0
    %4776 = vmatprep.mubr.f32.mxu0 0.0
    %4777 = vmatmul.mubr.f32.gmra.mrb[0].mxu0 %v4710
    %v4778 = vpop.f32.mrb[0].mxu0
    %v4779 = vadd.f32 %v4707, %v4778
    %v4780 = vpop.f32.mrb[0].mxu0
    %4781 = vdwg.mxu0
    %v4782 = vmax.f32 %v4779, 0.0
    %v4783 = vld [vmem:[#allocation2 + $0x18] sm:$0xff]
    %v4784 = vld [vmem:[#allocation2 + $0x38] sm:$0xff]
    %v4785 = vld [vmem:[#allocation2 + $0x58] sm:$0xff]
    %v4786 = vld [vmem:[#allocation2 + $0x78] sm:$0xff]
    %v4787 = vld [vmem:[#allocation2 + $0x98] sm:$0xff]
    %v4788 = vld [vmem:[#allocation2 + $0xb8] sm:$0xff]
    %v4789 = vld [vmem:[%s4 + $0x29] sm:$0x1]
    %v4791 = vlaneseq
    %v4792 = vshrl.u32 %v4791, 7
    %v4793 = vsub.s32 0, %v4792
    %v4794 = vrot.slane %v4789, %v4793
    %4802 = vrot.lane.b32.xlu0 %v4783, 80
    %v4803 = vpop.permute.xlu0 %4802
    %4804 = vrot.lane.b32.xlu0 %v4784, 80
    %v4805 = vpop.permute.xlu0 %4804
    %4806 = vrot.lane.b32.xlu0 %v4785, 80
    %v4807 = vpop.permute.xlu0 %4806
    %4808 = vrot.lane.b32.xlu0 %v4786, 80
    %v4809 = vpop.permute.xlu0 %4808
    %4810 = vrot.lane.b32.xlu0 %v4787, 80
    %v4811 = vpop.permute.xlu0 %4810
    %4812 = vrot.lane.b32.xlu0 %v4788, 80
    %v4813 = vpop.permute.xlu0 %4812
    %vm4820 = vcmask 392192
    %v4822 = vsel %vm4820, %v4782, 0
    %4824 = vmatprep.subr.mxu0 0.0
    %4825 = vmatpush1.msra.mxu0 %v4803
    %4826 = vmatprep.subr.mxu0 0.0
    %4827 = vmatpush1.msra.mxu0 %v4805
    %4828 = vmatprep.subr.mxu0 0.0
    %4829 = vmatpush1.msra.mxu0 %v4807
    %4830 = vmatprep.subr.mxu0 0.0
    %4831 = vmatpush1.msra.mxu0 %v4809
    %4832 = vmatprep.subr.mxu0 0.0
    %4833 = vmatpush1.msra.mxu0 %v4811
    %4834 = vmatprep.subr.mxu0 0.0
    %4835 = vmatpush1.msra.mxu0 %v4813
    %4836 = vmatprep.subr.mxu0 0.0
    %4837 = vmatpush1.msra.mxu0 0.0
    %4838 = vmatprep.subr.mxu0 0.0
    %4839 = vmatpush1.msra.mxu0 0.0
    %4840 = vmatprep.subr.mxu0 0.0
    %4841 = vmatpush1.msra.mxu0 0.0
    %4842 = vmatprep.subr.mxu0 0.0
    %4843 = vmatpush1.msra.mxu0 0.0
    %4844 = vmatprep.subr.mxu0 0.0
    %4845 = vmatpush1.msra.mxu0 0.0
    %4846 = vmatprep.subr.mxu0 0.0
    %4847 = vmatpush1.msra.mxu0 0.0
    %4848 = vmatprep.subr.mxu0 0.0
    %4849 = vmatpush1.msra.mxu0 0.0
    %4850 = vmatprep.subr.mxu0 0.0
    %4851 = vmatpush1.msra.mxu0 0.0
    %4852 = vmatprep.subr.mxu0 0.0
    %4853 = vmatpush1.msra.mxu0 0.0
    %4854 = vmatprep.subr.mxu0 0.0
    %4855 = vmatpush1.msra.mxu0 0.0
    %4856 = vmatprep.subr.mxu0 0.0
    %4857 = vmatpush1.msra.mxu0 0.0
    %4858 = vmatprep.subr.mxu0 0.0
    %4859 = vmatpush1.msra.mxu0 0.0
    %4860 = vmatprep.subr.mxu0 0.0
    %4861 = vmatpush1.msra.mxu0 0.0
    %4862 = vmatprep.subr.mxu0 0.0
    %4863 = vmatpush1.msra.mxu0 0.0
    %4864 = vmatprep.subr.mxu0 0.0
    %4865 = vmatpush1.msra.mxu0 0.0
    %4866 = vmatprep.subr.mxu0 0.0
    %4867 = vmatpush1.msra.mxu0 0.0
    %4868 = vmatprep.subr.mxu0 0.0
    %4869 = vmatpush1.msra.mxu0 0.0
    %4870 = vmatprep.subr.mxu0 0.0
    %4871 = vmatpush1.msra.mxu0 0.0
    %4872 = vmatprep.subr.mxu0 0.0
    %4873 = vmatpush1.msra.mxu0 0.0
    %4874 = vmatprep.subr.mxu0 0.0
    %4875 = vmatpush1.msra.mxu0 0.0
    %4876 = vmatprep.subr.mxu0 0.0
    %4877 = vmatpush1.msra.mxu0 0.0
    %4878 = vmatprep.subr.mxu0 0.0
    %4879 = vmatpush1.msra.mxu0 0.0
    %4880 = vmatprep.subr.mxu0 0.0
    %4881 = vmatpush1.msra.mxu0 0.0
    %4882 = vmatprep.subr.mxu0 0.0
    %4883 = vmatpush1.msra.mxu0 0.0
    %4884 = vmatprep.subr.mxu0 0.0
    %4885 = vmatpush1.msra.mxu0 0.0
    %4886 = vmatprep.subr.mxu0 0.0
    %4887 = vmatpush1.msra.mxu0 0.0
    %4888 = vmatprep.mubr.f32.mxu0 0.0
    %4889 = vmatmul.mubr.f32.gmra.mrb[0].mxu0 %v4822
    %v4890 = vpop.f32.mrb[0].mxu0
    %v4891 = vadd.f32 %v4794, %v4890
    %v4892 = vpop.f32.mrb[0].mxu0
    %4893 = vdwg.mxu0
    %v4894 = vstv %s4278
    %v4895 = vstv %s4301
    %4897 = vrot.lane.b32.xlu0 %v4891, 1
    %v4898 = vpop.permute.xlu0 %4897
    %vm4900 = vcmask 7168
    %v4901 = vsel %vm4900, %v4691, %v4898
    %vm4902 = vcmask 31744
    %v4903 = vsel %vm4902, %v4901, %v4894
    %vm4904 = vcmask 39936
    %v4905 = vsel %vm4904, %v4903, %v4895
    %vm4906 = vcmask 48128
    %v4907 = vsel %vm4906, %v4905, 0.0
    %4909 = vrot.lane.b32.xlu0 %v4328, 64
    %v4910 = vpop.permute.xlu0 %4909
    %4913 = vrot.lane.b32.xlu0 %v3080, 64
    %v4914 = vpop.permute.xlu0 %4913
    %v4915 = vsel %vm103, %v4304, %v4914
    %v4917 = vsel %vm103, %v4326, %v4910
    %v4918 = vsel %vm103, %v2565, %v4304
    %4919 = vst [vmem:[%s5] sm:$0xff] %v4917
    %4920 = vst [vmem:[%s5 + $0x8] sm:$0xff] %v2563
    %4921 = vst [vmem:[%s5 + $0x10] sm:$0xff] %v4918
    %4922 = vst [vmem:[%s5 + $0x18] sm:$0xff] %v4915
    %4923 = vst [vmem:[%s5 + $0x20] sm:$0xff] %v4907
    // Predicated region
    $region30: #{tmson_forward.1} parent=1 // pred_check
      _
    $region31: #{tmson_forward.1} parent=1 // pred_check_branch
      %4925 = sbr.rel (0) target = $region33
    $region32: #{tmson_forward.1} parent=1 // pred_region
      _
    $region33: #{tmson_forward.1} parent=1 // pred_fallthru
      _
    // Predicated region
    $region34: #{tmson_forward.1} parent=1 // pred_check
      _
    $region35: #{tmson_forward.1} parent=1 // pred_check_branch
      %4927 = sbr.rel (0) target = $region37
    $region36: #{tmson_forward.1} parent=1 // pred_region
      _
    $region37: #{tmson_forward.1} parent=1 // pred_fallthru
      _
    %4928 = vsyncpa [#allocation3], 1
    %4929 = vsyncpa [#allocation5], 1

</llo_original>
